<compile_context>
chip_gen: v5e
topology: v5e:2x2
jax: 0.10.0
libtpu: 0.0.40
codegen_flags: <defaults>
</compile_context>

<pallas_src>
import jax
import jax.numpy as jnp
from jax.experimental import pallas as pl
from jax.experimental.pallas import tpu as pltpu

EPS = 1e-5


def _bn_relu_kernel(x_ref, gamma_ref, beta_ref, o_ref, mean_ref, var_ref):
    # x_ref: (N, tc, HW); gamma_ref / beta_ref: (1, tc, 1)
    # o_ref: (N, tc, HW); mean_ref / var_ref: (tc, 1)
    x = x_ref[...].astype(jnp.float32)
    n = x.shape[0] * x.shape[2]
    inv_n = 1.0 / n

    # Per-channel batch mean (first pass).
    mean = jnp.sum(x, axis=(0, 2), keepdims=True) * inv_n          # (1, tc, 1)

    # Centered second pass for the variance: numerically robust, and the block
    # is already VMEM-resident so this only costs VALU/XLU time that hides
    # under the HBM-bound DMA.  (On v7x, if the bundle profile ever shows the
    # cross-lane reductions saturating the XLU, these sums can be offloaded to
    # the idle MXU via a dot against a ones vector.)
    d = x - mean
    var = jnp.sum(d * d, axis=(0, 2), keepdims=True) * inv_n        # biased

    # y = (x - mean) * (gamma * rsqrt(var + eps)) + beta, then ReLU.
    scale = gamma_ref[...] * jax.lax.rsqrt(var + EPS)
    o_ref[...] = jnp.maximum(d * scale + beta_ref[...], 0.0).astype(o_ref.dtype)

    # Batch statistics for the running-stat update.  PyTorch normalizes with the
    # biased variance (above) but updates running_var with the unbiased one.
    mean_ref[...] = mean[0]
    var_ref[...] = (var * (n / max(n - 1, 1)))[0]


def _round_up(v, m):
    return -(-v // m) * m


def _cdiv(a, b):
    return -(-a // b)


def _pick_channel_tile(C, N, HW, itemsize, target_block_bytes=2 << 20):
    """Channel tile (multiple of 8) and grid size for (N, tc, HW) blocks.

    VMEM accounting uses the *padded* footprint (lane dim rounded up to 128; tc
    is a multiple of 8 so sublanes need no extra padding).  Aims for the largest
    blocks that keep double-buffered in+out blocks plus f32 temporaries well
    under the conservative 16 MiB scoped default, with >=4 grid steps (>=2 per
    TensorCore on v7x) and an even step count for cross-core balance."""
    hw_pad = _round_up(HW, 128)
    bytes_per_ch = N * hw_pad * itemsize

    if C <= 8:
        return C, 1                       # full channel extent (layout-legal)

    max_tc = max(8, (target_block_bytes // bytes_per_ch) // 8 * 8)

    min_grid = 4 if C >= 32 else 2
    grid = max(min_grid, _cdiv(C, max_tc))
    if grid % 2:                          # balance across the 2 v7x cores
        grid += 1
    tc = min(max_tc, _round_up(_cdiv(C, grid), 8))
    grid = _cdiv(C, tc)                   # partial last block is masked by Pallas
    return tc, grid


def batchnorm_relu(x_nchw, gamma, beta):
    """Training-mode BatchNorm2d (batch statistics) + ReLU.

    x_nchw: (N, C, H, W); gamma/beta: (C,).
    Returns (y, batch_mean, batch_var_unbiased) with y.shape == x.shape,
    stats shaped (C,) in float32."""
    N, C, H, W = x_nchw.shape
    HW = H * W
    itemsize = x_nchw.dtype.itemsize

    # Free reshapes only — no transposes, no extra HBM traffic.
    x3 = x_nchw.reshape(N, C, HW)
    gamma3 = gamma.reshape(1, C, 1).astype(jnp.float32)
    beta3 = beta.reshape(1, C, 1).astype(jnp.float32)

    tc, num_blocks = _pick_channel_tile(C, N, HW, itemsize)
    grid = (num_blocks,)

    # Explicit scoped-VMEM accounting: 2x double-buffered input + 2x output
    # blocks + ~3 f32-block temporaries (x upcast, centered diff, pre-store y).
    hw_pad = _round_up(HW, 128)
    block_bytes = N * tc * hw_pad * itemsize
    f32_block = N * tc * hw_pad * 4
    vmem_needed = 4 * block_bytes + 3 * f32_block + (1 << 20)
    vmem_limit = int(vmem_needed) if vmem_needed > (16 << 20) else None

    out3, mean_c, var_c = pl.pallas_call(
        _bn_relu_kernel,
        out_shape=(
            jax.ShapeDtypeStruct((N, C, HW), x_nchw.dtype),
            jax.ShapeDtypeStruct((C, 1), jnp.float32),
            jax.ShapeDtypeStruct((C, 1), jnp.float32),
        ),
        grid_spec=pltpu.PrefetchScalarGridSpec(
            num_scalar_prefetch=0,
            grid=grid,
            in_specs=[
                pl.BlockSpec((N, tc, HW), lambda i: (0, i, 0)),
                pl.BlockSpec((1, tc, 1), lambda i: (0, i, 0)),
                pl.BlockSpec((1, tc, 1), lambda i: (0, i, 0)),
            ],
            out_specs=[
                pl.BlockSpec((N, tc, HW), lambda i: (0, i, 0)),
                pl.BlockSpec((tc, 1), lambda i: (i, 0)),
                pl.BlockSpec((tc, 1), lambda i: (i, 0)),
            ],
        ),
        compiler_params=pltpu.CompilerParams(
            dimension_semantics=("parallel",),
            vmem_limit_bytes=vmem_limit,
        ),
    )(x3, gamma3, beta3)

    return out3.reshape(N, C, H, W), mean_c.reshape(C), var_c.reshape(C)


def update_running_stats(running_mean, running_var, batch_mean, batch_var_unbiased,
                         momentum=0.1):
    """PyTorch-style running-stat momentum blend (O(C), done outside the kernel)."""
    new_mean = (1.0 - momentum) * running_mean + momentum * batch_mean
    new_var = (1.0 - momentum) * running_var + momentum * batch_var_unbiased
    return new_mean, new_var


def _reference(x_nchw, gamma, beta):
    mean = jnp.mean(x_nchw, axis=(0, 2, 3), keepdims=True)
    var = jnp.mean((x_nchw - mean) ** 2, axis=(0, 2, 3), keepdims=True)
    y = (x_nchw - mean) * jax.lax.rsqrt(var + EPS)
    y = y * gamma.reshape(1, -1, 1, 1) + beta.reshape(1, -1, 1, 1)
    return jnp.maximum(y, 0.0)


if __name__ == "__main__":
    # Shape from the original module's forward: (1, 2904, 14, 14) NCHW (~2.3 MB).
    N, C, H, W = 1, 2904, 14, 14
    key = jax.random.PRNGKey(0)
    kx, kg, kb = jax.random.split(key, 3)

    x = jax.random.normal(kx, (N, C, H, W), dtype=jnp.float32)
    gamma = 1.0 + 0.1 * jax.random.normal(kg, (C,), dtype=jnp.float32)
    beta = 0.1 * jax.random.normal(kb, (C,), dtype=jnp.float32)

    y, bmean, bvar = batchnorm_relu(x, gamma, beta)
    y = jax.block_until_ready(y)

    # References.
    y_ref = _reference(x, gamma, beta)
    mean_ref = jnp.mean(x, axis=(0, 2, 3))
    var_unbiased_ref = jnp.var(x, axis=(0, 2, 3), ddof=1)

    assert y.shape == (N, C, H, W)
    assert jnp.allclose(y, y_ref, atol=1e-4, rtol=1e-4), "output mismatch vs reference"
    assert jnp.allclose(bmean, mean_ref, atol=1e-4, rtol=1e-4), "batch mean mismatch"
    assert jnp.allclose(bvar, var_unbiased_ref, atol=1e-4, rtol=1e-4), "batch var mismatch"

    # Running-stat side effect of training-mode BatchNorm2d (momentum=0.1).
    rm, rv = update_running_stats(jnp.zeros((C,)), jnp.ones((C,)), bmean, bvar)
    jax.block_until_ready((rm, rv))

    print("KERNEL_OK")
</pallas_src>

<mosaic_0001>
module attributes {stable_mosaic.version = 11 : i64} {
  func.func @_bn_relu_kernel(%arg0: i32, %arg1: memref<1x728x196xf32, #tpu.memory_space<vmem>>, %arg2: memref<1x728x1xf32, #tpu.memory_space<vmem>>, %arg3: memref<1x728x1xf32, #tpu.memory_space<vmem>>, %arg4: memref<1x728x196xf32, #tpu.memory_space<vmem>>, %arg5: memref<728x1xf32, #tpu.memory_space<vmem>>, %arg6: memref<728x1xf32, #tpu.memory_space<vmem>>) attributes {dimension_semantics = [#tpu.dimension_semantics<parallel>], iteration_bounds = array<i64: 4>, scalar_prefetch = 0 : i64, scratch_operands = 0 : i64, tpu.core_type = #tpu.core_type<tc>, window_params = [{transform_indices = @transform_0, window_bounds = array<i64: 1, 728, 196>}, {transform_indices = @transform_1, window_bounds = array<i64: 1, 728, 1>}, {transform_indices = @transform_2, window_bounds = array<i64: 1, 728, 1>}, {transform_indices = @transform_3, window_bounds = array<i64: 1, 728, 196>}, {transform_indices = @transform_4, window_bounds = array<i64: 728, 1>}, {transform_indices = @transform_5, window_bounds = array<i64: 728, 1>}]} {
    %c0 = arith.constant 0 : index
    %c0_0 = arith.constant 0 : index
    %c0_1 = arith.constant 0 : index
    %0 = vector.load %arg1[%c0, %c0_0, %c0_1] : memref<1x728x196xf32, #tpu.memory_space<vmem>>, vector<1x728x196xf32>
    %cst = arith.constant dense<0.000000e+00> : vector<728xf32>
    %1 = vector.multi_reduction <add>, %0, %cst [0, 2] : vector<1x728x196xf32> to vector<728xf32>
    %2 = vector.shape_cast %1 : vector<728xf32> to vector<1x728x1xf32>
    %cst_2 = arith.constant 0.00510204071 : f32
    %3 = vector.broadcast %cst_2 : f32 to vector<1x728x1xf32>
    %4 = arith.mulf %2, %3 : vector<1x728x1xf32>
    %5 = vector.broadcast %4 : vector<1x728x1xf32> to vector<1x728x196xf32>
    %6 = arith.subf %0, %5 : vector<1x728x196xf32>
    %7 = arith.mulf %6, %6 : vector<1x728x196xf32>
    %cst_3 = arith.constant dense<0.000000e+00> : vector<728xf32>
    %8 = vector.multi_reduction <add>, %7, %cst_3 [0, 2] : vector<1x728x196xf32> to vector<728xf32>
    %9 = vector.shape_cast %8 : vector<728xf32> to vector<1x728x1xf32>
    %cst_4 = arith.constant 0.00510204071 : f32
    %10 = vector.broadcast %cst_4 : f32 to vector<1x728x1xf32>
    %11 = arith.mulf %9, %10 : vector<1x728x1xf32>
    %c0_5 = arith.constant 0 : index
    %c0_6 = arith.constant 0 : index
    %c0_7 = arith.constant 0 : index
    %12 = vector.load %arg2[%c0_5, %c0_6, %c0_7] : memref<1x728x1xf32, #tpu.memory_space<vmem>>, vector<1x728x1xf32>
    %cst_8 = arith.constant 9.99999974E-6 : f32
    %13 = vector.broadcast %cst_8 : f32 to vector<1x728x1xf32>
    %14 = arith.addf %11, %13 : vector<1x728x1xf32>
    %15 = math.rsqrt %14 : vector<1x728x1xf32>
    %16 = arith.mulf %12, %15 : vector<1x728x1xf32>
    %17 = vector.broadcast %16 : vector<1x728x1xf32> to vector<1x728x196xf32>
    %18 = arith.mulf %6, %17 : vector<1x728x196xf32>
    %c0_9 = arith.constant 0 : index
    %c0_10 = arith.constant 0 : index
    %c0_11 = arith.constant 0 : index
    %19 = vector.load %arg3[%c0_9, %c0_10, %c0_11] : memref<1x728x1xf32, #tpu.memory_space<vmem>>, vector<1x728x1xf32>
    %20 = vector.broadcast %19 : vector<1x728x1xf32> to vector<1x728x196xf32>
    %21 = arith.addf %18, %20 : vector<1x728x196xf32>
    %cst_12 = arith.constant 0.000000e+00 : f32
    %22 = vector.broadcast %cst_12 : f32 to vector<1x728x196xf32>
    %23 = arith.maximumf %21, %22 : vector<1x728x196xf32>
    %c0_13 = arith.constant 0 : index
    %c0_14 = arith.constant 0 : index
    %c0_15 = arith.constant 0 : index
    %24 = vector.load %arg4[%c0_13, %c0_14, %c0_15] : memref<1x728x196xf32, #tpu.memory_space<vmem>>, vector<1x728x196xf32>
    tpu.vector_store %arg4[%c0_13, %c0_14, %c0_15], %23 {strides = array<i32>} : memref<1x728x196xf32, #tpu.memory_space<vmem>>, vector<1x728x196xf32>,
    %25 = vector.shape_cast %4 : vector<1x728x1xf32> to vector<728x1xf32>
    %c0_16 = arith.constant 0 : index
    %c0_17 = arith.constant 0 : index
    %26 = vector.load %arg5[%c0_16, %c0_17] : memref<728x1xf32, #tpu.memory_space<vmem>>, vector<728x1xf32>
    tpu.vector_store %arg5[%c0_16, %c0_17], %25 {strides = array<i32>} : memref<728x1xf32, #tpu.memory_space<vmem>>, vector<728x1xf32>,
    %cst_18 = arith.constant 1.00512826 : f32
    %27 = vector.broadcast %cst_18 : f32 to vector<1x728x1xf32>
    %28 = arith.mulf %11, %27 : vector<1x728x1xf32>
    %29 = vector.shape_cast %28 : vector<1x728x1xf32> to vector<728x1xf32>
    %c0_19 = arith.constant 0 : index
    %c0_20 = arith.constant 0 : index
    %30 = vector.load %arg6[%c0_19, %c0_20] : memref<728x1xf32, #tpu.memory_space<vmem>>, vector<728x1xf32>
    tpu.vector_store %arg6[%c0_19, %c0_20], %29 {strides = array<i32>} : memref<728x1xf32, #tpu.memory_space<vmem>>, vector<728x1xf32>,
    return
  }
  func.func @transform_0(%arg0: i32) -> (i32, i32, i32) {
    %c0_i32 = arith.constant 0 : i32
    %c0_i32_0 = arith.constant 0 : i32
    %c0_i32_1 = arith.constant 0 : i32
    return %c0_i32, %arg0, %c0_i32_0 : i32, i32, i32
  }
  func.func @transform_1(%arg0: i32) -> (i32, i32, i32) {
    %c0_i32 = arith.constant 0 : i32
    %c0_i32_0 = arith.constant 0 : i32
    %c0_i32_1 = arith.constant 0 : i32
    return %c0_i32, %arg0, %c0_i32_0 : i32, i32, i32
  }
  func.func @transform_2(%arg0: i32) -> (i32, i32, i32) {
    %c0_i32 = arith.constant 0 : i32
    %c0_i32_0 = arith.constant 0 : i32
    %c0_i32_1 = arith.constant 0 : i32
    return %c0_i32, %arg0, %c0_i32_0 : i32, i32, i32
  }
  func.func @transform_3(%arg0: i32) -> (i32, i32, i32) {
    %c0_i32 = arith.constant 0 : i32
    %c0_i32_0 = arith.constant 0 : i32
    %c0_i32_1 = arith.constant 0 : i32
    return %c0_i32, %arg0, %c0_i32_0 : i32, i32, i32
  }
  func.func @transform_4(%arg0: i32) -> (i32, i32) {
    %c0_i32 = arith.constant 0 : i32
    %c0_i32_0 = arith.constant 0 : i32
    return %arg0, %c0_i32 : i32, i32
  }
  func.func @transform_5(%arg0: i32) -> (i32, i32) {
    %c0_i32 = arith.constant 0 : i32
    %c0_i32_0 = arith.constant 0 : i32
    return %arg0, %c0_i32 : i32, i32
  }
}

</mosaic_0001>

<llo_original>
// kernel: tpu_custom_call.1
$region0: #{tpu_custom_call.1}
  #allocation0 [shape = 'u32[]', space=smem, size = 0x4, offset = 0x4, fixed_abs, tag = 'smem constant byte address 0x4 - core index']
  #allocation1 [shape = 'u32[72,128]{1,0:T(1,128)}', space=vmem, size = 0x9000, scoped, tag = 'internal scratch']
  %s0 = inlined_call_operand.vmem [shape: f32[1,2904,196], index: 0, kind: input, shape index: {}]
  %s1 = inlined_call_operand.vmem [shape: f32[1,2904,1], index: 1, kind: input, shape index: {}]
  %s2 = inlined_call_operand.vmem [shape: f32[1,2904,1], index: 2, kind: input, shape index: {}]
  %s3 = inlined_call_operand.vmem [shape: f32[1,2904,196], index: 3, kind: output, shape index: {0}]
  %s4 = inlined_call_operand.vmem [shape: f32[2904,1], index: 4, kind: output, shape index: {1}]
  %s5 = inlined_call_operand.vmem [shape: f32[2904,1], index: 5, kind: output, shape index: {2}]
  %6 = xla_tuple %s3, %s4, %s5
  %s7 = sld [smem:[#allocation0]]
  $region183: #{tpu_custom_call.1} parent=0
    _
  %s9 = ssub.s32 1, %s7
  %s10 = scalar_select 0, %s9, %s7
  $region1: #{tpu_custom_call.1} parent=0
    #allocation2 [shape = 'u8[1490944]{0}', space=vmem, size = 0x16c000, scoped, tag = 'output window, operand 0']
    #allocation3 [shape = 'u8[745472]{0}', space=vmem, size = 0xb6000, scoped, tag = 'output window, operand 1']
    #allocation4 [shape = 'u8[745472]{0}', space=vmem, size = 0xb6000, scoped, tag = 'output window, operand 2']
    loop: start=0, step=1, limit=6
    $region2: #{tpu_custom_call.1} parent=1 // loop_pre_header
      _
    $region3: #{tpu_custom_call.1} parent=1 // loop_header
      %s12 = sphi 0, %s16
      %p13 = scmp.ge.s32.totalorder %s12, 6
      %s22 = sphi 0, %s24
      %s25 = sphi 0, %s22
      %s26 = sphi 0, %s25
      %s42 = sphi 0, %s26
      %s48 = sphi 0, %s50
      %s51 = sphi 0, %s48
      %s52 = sphi 0, %s51
      %s68 = sphi 0, %s52
      %s74 = sphi 0, %s76
      %s77 = sphi 0, %s74
      %s78 = sphi 0, %s77
      %s94 = sphi 0, %s78
      %s100 = sphi 0, %s102
      %s103 = sphi 0, %s100
      %s104 = sphi 0, %s103
      %s120 = sphi 0, %s104
      %s126 = sphi 0, %s128
      %s129 = sphi 0, %s126
      %s130 = sphi 0, %s129
      %s146 = sphi 0, %s130
      %s152 = sphi 0, %s154
      %s155 = sphi 0, %s152
      %s156 = sphi 0, %s155
      %s172 = sphi 0, %s156
    $region4: #{tpu_custom_call.1} parent=1 // loop_header_branch
      %15 = sbr.rel (%p13) target = $region8
    $region5: #{tpu_custom_call.1} parent=1 // loop_body
      %s17 = ssub.s32 %s12, 1
      %s18 = ssub.s32 %s12, 2
      %s19 = sadd.s32 %s12, 1
      %s20 = ssub.s32 %s12, %s19
      %p21 = scmp.eq.s32.totalorder %s20, 0
      %s23 = sadd.s32 %s22, 1
      %s24 = scalar_select %p21, %s22, %s23
      %p27 = pneg %p21
      %p28 = scmp.eq.s32.totalorder %s12, 3
      %p29 = por %p27, %p28
      %p30 = scmp.ne.s32.totalorder %s22, %s25
      %p31 = scmp.eq.s32.totalorder %s12, 0
      %p32 = por %p30, %p31
      %p33 = scmp.ne.s32.totalorder %s22, %s25
      %p34 = scmp.eq.s32.totalorder %s17, 3
      %p35 = por %p33, %p34
      %p36 = scmp.ne.s32.totalorder %s25, %s26
      %p37 = scmp.eq.s32.totalorder %s17, 0
      %p38 = por %p36, %p37
      %p39 = scmp.ne.s32.totalorder %s25, %s26
      %p40 = scmp.eq.s32.totalorder %s18, 3
      %p41 = por %p39, %p40
      %p43 = scmp.ne.s32.totalorder %s26, %s42
      %p44 = scmp.eq.s32.totalorder %s18, 0
      %p45 = por %p43, %p44
      %s46 = ssub.s32 %s12, %s19
      %p47 = scmp.eq.s32.totalorder %s46, 0
      %s49 = sadd.s32 %s48, 1
      %s50 = scalar_select %p47, %s48, %s49
      %p53 = pneg %p47
      %p54 = scmp.eq.s32.totalorder %s12, 3
      %p55 = por %p53, %p54
      %p56 = scmp.ne.s32.totalorder %s48, %s51
      %p57 = scmp.eq.s32.totalorder %s12, 0
      %p58 = por %p56, %p57
      %p59 = scmp.ne.s32.totalorder %s48, %s51
      %p60 = scmp.eq.s32.totalorder %s17, 3
      %p61 = por %p59, %p60
      %p62 = scmp.ne.s32.totalorder %s51, %s52
      %p63 = scmp.eq.s32.totalorder %s17, 0
      %p64 = por %p62, %p63
      %p65 = scmp.ne.s32.totalorder %s51, %s52
      %p66 = scmp.eq.s32.totalorder %s18, 3
      %p67 = por %p65, %p66
      %p69 = scmp.ne.s32.totalorder %s52, %s68
      %p70 = scmp.eq.s32.totalorder %s18, 0
      %p71 = por %p69, %p70
      %s72 = ssub.s32 %s12, %s19
      %p73 = scmp.eq.s32.totalorder %s72, 0
      %s75 = sadd.s32 %s74, 1
      %s76 = scalar_select %p73, %s74, %s75
      %p79 = pneg %p73
      %p80 = scmp.eq.s32.totalorder %s12, 3
      %p81 = por %p79, %p80
      %p82 = scmp.ne.s32.totalorder %s74, %s77
      %p83 = scmp.eq.s32.totalorder %s12, 0
      %p84 = por %p82, %p83
      %p85 = scmp.ne.s32.totalorder %s74, %s77
      %p86 = scmp.eq.s32.totalorder %s17, 3
      %p87 = por %p85, %p86
      %p88 = scmp.ne.s32.totalorder %s77, %s78
      %p89 = scmp.eq.s32.totalorder %s17, 0
      %p90 = por %p88, %p89
      %p91 = scmp.ne.s32.totalorder %s77, %s78
      %p92 = scmp.eq.s32.totalorder %s18, 3
      %p93 = por %p91, %p92
      %p95 = scmp.ne.s32.totalorder %s78, %s94
      %p96 = scmp.eq.s32.totalorder %s18, 0
      %p97 = por %p95, %p96
      %s98 = ssub.s32 %s12, %s19
      %p99 = scmp.eq.s32.totalorder %s98, 0
      %s101 = sadd.s32 %s100, 1
      %s102 = scalar_select %p99, %s100, %s101
      %p105 = pneg %p99
      %p106 = scmp.eq.s32.totalorder %s12, 3
      %p107 = por %p105, %p106
      %p108 = scmp.ne.s32.totalorder %s100, %s103
      %p109 = scmp.eq.s32.totalorder %s12, 0
      %p110 = por %p108, %p109
      %p111 = scmp.ne.s32.totalorder %s100, %s103
      %p112 = scmp.eq.s32.totalorder %s17, 3
      %p113 = por %p111, %p112
      %p114 = scmp.ne.s32.totalorder %s103, %s104
      %p115 = scmp.eq.s32.totalorder %s17, 0
      %p116 = por %p114, %p115
      %p117 = scmp.ne.s32.totalorder %s103, %s104
      %p118 = scmp.eq.s32.totalorder %s18, 3
      %p119 = por %p117, %p118
      %p121 = scmp.ne.s32.totalorder %s104, %s120
      %p122 = scmp.eq.s32.totalorder %s18, 0
      %p123 = por %p121, %p122
      %s124 = ssub.s32 %s12, %s19
      %p125 = scmp.eq.s32.totalorder %s124, 0
      %s127 = sadd.s32 %s126, 1
      %s128 = scalar_select %p125, %s126, %s127
      %p131 = pneg %p125
      %p132 = scmp.eq.s32.totalorder %s12, 3
      %p133 = por %p131, %p132
      %p134 = scmp.ne.s32.totalorder %s126, %s129
      %p135 = scmp.eq.s32.totalorder %s12, 0
      %p136 = por %p134, %p135
      %p137 = scmp.ne.s32.totalorder %s126, %s129
      %p138 = scmp.eq.s32.totalorder %s17, 3
      %p139 = por %p137, %p138
      %p140 = scmp.ne.s32.totalorder %s129, %s130
      %p141 = scmp.eq.s32.totalorder %s17, 0
      %p142 = por %p140, %p141
      %p143 = scmp.ne.s32.totalorder %s129, %s130
      %p144 = scmp.eq.s32.totalorder %s18, 3
      %p145 = por %p143, %p144
      %p147 = scmp.ne.s32.totalorder %s130, %s146
      %p148 = scmp.eq.s32.totalorder %s18, 0
      %p149 = por %p147, %p148
      %s150 = ssub.s32 %s12, %s19
      %p151 = scmp.eq.s32.totalorder %s150, 0
      %s153 = sadd.s32 %s152, 1
      %s154 = scalar_select %p151, %s152, %s153
      %p157 = pneg %p151
      %p158 = scmp.eq.s32.totalorder %s12, 3
      %p159 = por %p157, %p158
      %p160 = scmp.ne.s32.totalorder %s152, %s155
      %p161 = scmp.eq.s32.totalorder %s12, 0
      %p162 = por %p160, %p161
      %p163 = scmp.ne.s32.totalorder %s152, %s155
      %p164 = scmp.eq.s32.totalorder %s17, 3
      %p165 = por %p163, %p164
      %p166 = scmp.ne.s32.totalorder %s155, %s156
      %p167 = scmp.eq.s32.totalorder %s17, 0
      %p168 = por %p166, %p167
      %p169 = scmp.ne.s32.totalorder %s155, %s156
      %p170 = scmp.eq.s32.totalorder %s18, 3
      %p171 = por %p169, %p170
      %p173 = scmp.ne.s32.totalorder %s156, %s172
      %p174 = scmp.eq.s32.totalorder %s18, 0
      %p175 = por %p173, %p174
      %p176 = scmp.le.s32.totalorder 1, %s12
      %p177 = scmp.lt.s32.totalorder %s12, 5
      %p178 = pnand %p176, %p177
      %p179 = pneg %p178
      // Predicated region
      $region9: #{tpu_custom_call.1} parent=5 // pred_check
        _
      $region10: #{tpu_custom_call.1} parent=5 // pred_check_branch
        %181 = sbr.rel (%p178) target = $region12
      $region11: #{tpu_custom_call.1} parent=5 // pred_region
        %s182 = ssub.s32 %s12, 1
      $region12: #{tpu_custom_call.1} parent=5 // pred_fallthru
        _
      %p183 = scmp.lt.s32.totalorder %s12, 4
      // Predicated region
      $region13: #{tpu_custom_call.1} parent=5 // pred_check
        %p184 = pneg %p183
      $region14: #{tpu_custom_call.1} parent=5 // pred_check_branch
        %186 = sbr.rel (%p184) target = $region16
      $region15: #{tpu_custom_call.1} parent=5 // pred_region
        // Predicated region
        $region17: #{tpu_custom_call.1} parent=15 // pred_check
          %p187 = pneg %p32
        $region18: #{tpu_custom_call.1} parent=15 // pred_check_branch
          %189 = sbr.rel (%p187) target = $region20
        $region19: #{tpu_custom_call.1} parent=15 // pred_region
          %s190 = smul.u32 91, %s12
          %s191 = ssub.s32 363, %s190
          %p192 = scmp.lt.s32.totalorder %s191, 91
          %s193 = scalar_select %p192, %s191, 91
          %s194 = smul.u32 8, %s193
          %s195 = smul.u32 %s194, 2
          %p196 = scmp.lt.s32.totalorder %s190, 362
          %s197 = scalar_select %p196, %s190, 362
          %s198 = smul.addr %s197, 2
          %s199 = smul.addr %s198, 8
          %s200 = scalar_lea.vmem %s0, %s199
          %s201 = smul.u32 91, %s12
          %s202 = ssub.s32 363, %s201
          %p203 = scmp.lt.s32.totalorder %s202, 91
          %s204 = scalar_select %p203, %s202, 91
          %s205 = smul.u32 8, %s204
          %s206 = smul.u32 %s205, 2
        $region20: #{tpu_custom_call.1} parent=15 // pred_fallthru
          _
        // Predicated region
        $region21: #{tpu_custom_call.1} parent=15 // pred_check
          %p207 = pneg %p58
        $region22: #{tpu_custom_call.1} parent=15 // pred_check_branch
          %209 = sbr.rel (%p207) target = $region24
        $region23: #{tpu_custom_call.1} parent=15 // pred_region
          %s210 = smul.u32 91, %s12
          %s211 = ssub.s32 363, %s210
          %p212 = scmp.lt.s32.totalorder %s211, 91
          %s213 = scalar_select %p212, %s211, 91
          %s214 = smul.u32 8, %s213
          %p215 = scmp.lt.s32.totalorder %s210, 362
          %s216 = scalar_select %p215, %s210, 362
          %s217 = smul.addr %s216, 8
          %s218 = scalar_lea.vmem %s1, %s217
          %s219 = smul.u32 91, %s12
          %s220 = ssub.s32 363, %s219
          %p221 = scmp.lt.s32.totalorder %s220, 91
          %s222 = scalar_select %p221, %s220, 91
          %s223 = smul.u32 8, %s222
        $region24: #{tpu_custom_call.1} parent=15 // pred_fallthru
          _
        // Predicated region
        $region25: #{tpu_custom_call.1} parent=15 // pred_check
          %p224 = pneg %p84
        $region26: #{tpu_custom_call.1} parent=15 // pred_check_branch
          %226 = sbr.rel (%p224) target = $region28
        $region27: #{tpu_custom_call.1} parent=15 // pred_region
          %s227 = smul.u32 91, %s12
          %s228 = ssub.s32 363, %s227
          %p229 = scmp.lt.s32.totalorder %s228, 91
          %s230 = scalar_select %p229, %s228, 91
          %s231 = smul.u32 8, %s230
          %p232 = scmp.lt.s32.totalorder %s227, 362
          %s233 = scalar_select %p232, %s227, 362
          %s234 = smul.addr %s233, 8
          %s235 = scalar_lea.vmem %s2, %s234
          %s236 = smul.u32 91, %s12
          %s237 = ssub.s32 363, %s236
          %p238 = scmp.lt.s32.totalorder %s237, 91
          %s239 = scalar_select %p238, %s237, 91
          %s240 = smul.u32 8, %s239
        $region28: #{tpu_custom_call.1} parent=15 // pred_fallthru
          _
      $region16: #{tpu_custom_call.1} parent=5 // pred_fallthru
        _
      %p241 = scmp.le.s32.totalorder 1, %s12
      %p242 = scmp.lt.s32.totalorder %s12, 5
      %p243 = pnand %p241, %p242
      %p244 = pneg %p243
      // Predicated region
      $region29: #{tpu_custom_call.1} parent=5 // pred_check
        _
      $region30: #{tpu_custom_call.1} parent=5 // pred_check_branch
        %246 = sbr.rel (%p243) target = $region32
      $region31: #{tpu_custom_call.1} parent=5 // pred_region
        %s247 = ssub.s32 %s12, 1
        %s248 = smul.u32 91, %s17
        %s249 = ssub.s32 363, %s248
        %p250 = scmp.lt.s32.totalorder %s249, 91
        %s251 = scalar_select %p250, %s249, 91
        %s252 = smul.u32 8, %s251
        %s253 = smul.u32 %s252, 2
        %p254 = scmp.lt.s32.totalorder %s248, 362
        %s255 = scalar_select %p254, %s248, 362
        %s256 = smul.addr %s255, 2
        %s257 = smul.addr %s256, 8
        %s258 = scalar_lea.vmem %s0, %s257
        %p259 = pneg %p38
        %p260 = pneg %p35
        %s261 = smul.u32 91, %s17
        %s262 = ssub.s32 363, %s261
        %p263 = scmp.lt.s32.totalorder %s262, 91
        %s264 = scalar_select %p263, %s262, 91
        %s265 = smul.u32 8, %s264
        %p266 = scmp.lt.s32.totalorder %s261, 362
        %s267 = scalar_select %p266, %s261, 362
        %s268 = smul.addr %s267, 8
        %s269 = scalar_lea.vmem %s1, %s268
        %p270 = pneg %p64
        %p271 = pneg %p61
        %s272 = smul.u32 91, %s17
        %s273 = ssub.s32 363, %s272
        %p274 = scmp.lt.s32.totalorder %s273, 91
        %s275 = scalar_select %p274, %s273, 91
        %s276 = smul.u32 8, %s275
        %p277 = scmp.lt.s32.totalorder %s272, 362
        %s278 = scalar_select %p277, %s272, 362
        %s279 = smul.addr %s278, 8
        %s280 = scalar_lea.vmem %s2, %s279
        %p281 = pneg %p90
        %p282 = pneg %p87
        %p283 = pneg %p116
        %p284 = pneg %p113
        %s285 = sand.u32 %s103, 1
        %s286 = sand.u32 %s103, 1
        %s287 = smul.addr %s286, 1456
        %s288 = scalar_lea.vmem [#allocation2], %s287
        %p289 = pneg %p142
        %p290 = pneg %p139
        %s291 = sand.u32 %s129, 1
        %s292 = sand.u32 %s129, 1
        %s293 = smul.addr %s292, 728
        %s294 = scalar_lea.vmem [#allocation3], %s293
        %p295 = pneg %p168
        %p296 = pneg %p165
        %s297 = sand.u32 %s155, 1
        %s298 = sand.u32 %s155, 1
        %s299 = smul.addr %s298, 728
        %s300 = scalar_lea.vmem [#allocation4], %s299
        %s301 = smul.u32 91, %s17
        %s302 = ssub.s32 363, %s301
        %p303 = scmp.lt.s32.totalorder %s302, 91
        %s304 = scalar_select %p303, %s302, 91
        %s305 = smul.u32 8, %s304
        %s306 = smul.u32 %s305, 2
        %p307 = scmp.lt.s32.totalorder %s301, 362
        %s308 = scalar_select %p307, %s301, 362
        %s309 = smul.addr %s308, 2
        %s310 = smul.addr %s309, 8
        %s311 = scalar_lea.vmem %s0, %s310
        %s312 = smul.u32 91, %s17
        %s313 = ssub.s32 363, %s312
        %p314 = scmp.lt.s32.totalorder %s313, 91
        %s315 = scalar_select %p314, %s313, 91
        %s316 = smul.u32 8, %s315
        %s317 = smul.u32 %s316, 2
        %s318 = smul.u32 91, %s17
        %s319 = ssub.s32 363, %s318
        %p320 = scmp.lt.s32.totalorder %s319, 91
        %s321 = scalar_select %p320, %s319, 91
        %s322 = smul.u32 8, %s321
        %p323 = scmp.lt.s32.totalorder %s318, 362
        %s324 = scalar_select %p323, %s318, 362
        %s325 = smul.addr %s324, 8
        %s326 = scalar_lea.vmem %s1, %s325
        %s327 = smul.u32 91, %s17
        %s328 = ssub.s32 363, %s327
        %p329 = scmp.lt.s32.totalorder %s328, 91
        %s330 = scalar_select %p329, %s328, 91
        %s331 = smul.u32 8, %s330
        %s332 = smul.u32 91, %s17
        %s333 = ssub.s32 363, %s332
        %p334 = scmp.lt.s32.totalorder %s333, 91
        %s335 = scalar_select %p334, %s333, 91
        %s336 = smul.u32 8, %s335
        %p337 = scmp.lt.s32.totalorder %s332, 362
        %s338 = scalar_select %p337, %s332, 362
        %s339 = smul.addr %s338, 8
        %s340 = scalar_lea.vmem %s2, %s339
        %s341 = smul.u32 91, %s17
        %s342 = ssub.s32 363, %s341
        %p343 = scmp.lt.s32.totalorder %s342, 91
        %s344 = scalar_select %p343, %s342, 91
        %s345 = smul.u32 8, %s344
        %s346 = smul.u32 91, %s17
        %s347 = ssub.s32 363, %s346
        %p348 = scmp.lt.s32.totalorder %s347, 91
        %s349 = scalar_select %p348, %s347, 91
        %s350 = smul.u32 8, %s349
        %s351 = smul.u32 %s350, 2
        %s352 = smul.u32 91, %s17
        %s353 = ssub.s32 363, %s352
        %p354 = scmp.lt.s32.totalorder %s353, 91
        %s355 = scalar_select %p354, %s353, 91
        %s356 = smul.u32 8, %s355
        %s357 = smul.u32 91, %s17
        %s358 = ssub.s32 363, %s357
        %p359 = scmp.lt.s32.totalorder %s358, 91
        %s360 = scalar_select %p359, %s358, 91
        %s361 = smul.u32 8, %s360
        %v362 = vld [vmem:[%s311] sm:$0xff]
        %v363 = vld [vmem:[%s311 + $0x8] sm:$0xff]
        %v364 = vld [vmem:[%s311 + $0x10] sm:$0xff]
        %v365 = vld [vmem:[%s311 + $0x18] sm:$0xff]
        %v366 = vld [vmem:[%s311 + $0x20] sm:$0xff]
        %v367 = vld [vmem:[%s311 + $0x28] sm:$0xff]
        %v368 = vld [vmem:[%s311 + $0x30] sm:$0xff]
        %v369 = vld [vmem:[%s311 + $0x38] sm:$0xff]
        %v370 = vld [vmem:[%s311 + $0x40] sm:$0xff]
        %v371 = vld [vmem:[%s311 + $0x48] sm:$0xff]
        %v372 = vld [vmem:[%s311 + $0x50] sm:$0xff]
        %v373 = vld [vmem:[%s311 + $0x58] sm:$0xff]
        %v374 = vld [vmem:[%s311 + $0x60] sm:$0xff]
        %v375 = vld [vmem:[%s311 + $0x68] sm:$0xff]
        %v376 = vld [vmem:[%s311 + $0x70] sm:$0xff]
        %v377 = vld [vmem:[%s311 + $0x78] sm:$0xff]
        %v378 = vld [vmem:[%s311 + $0x80] sm:$0xff]
        %v379 = vld [vmem:[%s311 + $0x88] sm:$0xff]
        %v380 = vld [vmem:[%s311 + $0x90] sm:$0xff]
        %v381 = vld [vmem:[%s311 + $0x98] sm:$0xff]
        %v382 = vld [vmem:[%s311 + $0xa0] sm:$0xff]
        %v383 = vld [vmem:[%s311 + $0xa8] sm:$0xff]
        %v384 = vld [vmem:[%s311 + $0xb0] sm:$0xff]
        %v385 = vld [vmem:[%s311 + $0xb8] sm:$0xff]
        %v386 = vld [vmem:[%s311 + $0xc0] sm:$0xff]
        %v387 = vld [vmem:[%s311 + $0xc8] sm:$0xff]
        %v388 = vld [vmem:[%s311 + $0xd0] sm:$0xff]
        %v389 = vld [vmem:[%s311 + $0xd8] sm:$0xff]
        %v390 = vld [vmem:[%s311 + $0xe0] sm:$0xff]
        %v391 = vld [vmem:[%s311 + $0xe8] sm:$0xff]
        %v392 = vld [vmem:[%s311 + $0xf0] sm:$0xff]
        %v393 = vld [vmem:[%s311 + $0xf8] sm:$0xff]
        %v394 = vld [vmem:[%s311 + $0x100] sm:$0xff]
        %v395 = vld [vmem:[%s311 + $0x108] sm:$0xff]
        %v396 = vld [vmem:[%s311 + $0x110] sm:$0xff]
        %v397 = vld [vmem:[%s311 + $0x118] sm:$0xff]
        %v398 = vld [vmem:[%s311 + $0x120] sm:$0xff]
        %v399 = vld [vmem:[%s311 + $0x128] sm:$0xff]
        %v400 = vld [vmem:[%s311 + $0x130] sm:$0xff]
        %v401 = vld [vmem:[%s311 + $0x138] sm:$0xff]
        %v402 = vld [vmem:[%s311 + $0x140] sm:$0xff]
        %v403 = vld [vmem:[%s311 + $0x148] sm:$0xff]
        %v404 = vld [vmem:[%s311 + $0x150] sm:$0xff]
        %v405 = vld [vmem:[%s311 + $0x158] sm:$0xff]
        %v406 = vld [vmem:[%s311 + $0x160] sm:$0xff]
        %v407 = vld [vmem:[%s311 + $0x168] sm:$0xff]
        %v408 = vld [vmem:[%s311 + $0x170] sm:$0xff]
        %v409 = vld [vmem:[%s311 + $0x178] sm:$0xff]
        %v410 = vld [vmem:[%s311 + $0x180] sm:$0xff]
        %v411 = vld [vmem:[%s311 + $0x188] sm:$0xff]
        %v412 = vld [vmem:[%s311 + $0x190] sm:$0xff]
        %v413 = vld [vmem:[%s311 + $0x198] sm:$0xff]
        %v414 = vld [vmem:[%s311 + $0x1a0] sm:$0xff]
        %v415 = vld [vmem:[%s311 + $0x1a8] sm:$0xff]
        %v416 = vld [vmem:[%s311 + $0x1b0] sm:$0xff]
        %v417 = vld [vmem:[%s311 + $0x1b8] sm:$0xff]
        %v418 = vld [vmem:[%s311 + $0x1c0] sm:$0xff]
        %v419 = vld [vmem:[%s311 + $0x1c8] sm:$0xff]
        %v420 = vld [vmem:[%s311 + $0x1d0] sm:$0xff]
        %v421 = vld [vmem:[%s311 + $0x1d8] sm:$0xff]
        %v422 = vld [vmem:[%s311 + $0x1e0] sm:$0xff]
        %v423 = vld [vmem:[%s311 + $0x1e8] sm:$0xff]
        %v424 = vld [vmem:[%s311 + $0x1f0] sm:$0xff]
        %v425 = vld [vmem:[%s311 + $0x1f8] sm:$0xff]
        %v426 = vld [vmem:[%s311 + $0x200] sm:$0xff]
        %v427 = vld [vmem:[%s311 + $0x208] sm:$0xff]
        %v428 = vld [vmem:[%s311 + $0x210] sm:$0xff]
        %v429 = vld [vmem:[%s311 + $0x218] sm:$0xff]
        %v430 = vld [vmem:[%s311 + $0x220] sm:$0xff]
        %v431 = vld [vmem:[%s311 + $0x228] sm:$0xff]
        %v432 = vld [vmem:[%s311 + $0x230] sm:$0xff]
        %v433 = vld [vmem:[%s311 + $0x238] sm:$0xff]
        %v434 = vld [vmem:[%s311 + $0x240] sm:$0xff]
        %v435 = vld [vmem:[%s311 + $0x248] sm:$0xff]
        %v436 = vld [vmem:[%s311 + $0x250] sm:$0xff]
        %v437 = vld [vmem:[%s311 + $0x258] sm:$0xff]
        %v438 = vld [vmem:[%s311 + $0x260] sm:$0xff]
        %v439 = vld [vmem:[%s311 + $0x268] sm:$0xff]
        %v440 = vld [vmem:[%s311 + $0x270] sm:$0xff]
        %v441 = vld [vmem:[%s311 + $0x278] sm:$0xff]
        %v442 = vld [vmem:[%s311 + $0x280] sm:$0xff]
        %v443 = vld [vmem:[%s311 + $0x288] sm:$0xff]
        %v444 = vld [vmem:[%s311 + $0x290] sm:$0xff]
        %v445 = vld [vmem:[%s311 + $0x298] sm:$0xff]
        %v446 = vld [vmem:[%s311 + $0x2a0] sm:$0xff]
        %v447 = vld [vmem:[%s311 + $0x2a8] sm:$0xff]
        %v448 = vld [vmem:[%s311 + $0x2b0] sm:$0xff]
        %v449 = vld [vmem:[%s311 + $0x2b8] sm:$0xff]
        %v450 = vld [vmem:[%s311 + $0x2c0] sm:$0xff]
        %v451 = vld [vmem:[%s311 + $0x2c8] sm:$0xff]
        %v452 = vld [vmem:[%s311 + $0x2d0] sm:$0xff]
        %v453 = vld [vmem:[%s311 + $0x2d8] sm:$0xff]
        %v454 = vld [vmem:[%s311 + $0x2e0] sm:$0xff]
        %v455 = vld [vmem:[%s311 + $0x2e8] sm:$0xff]
        %v456 = vld [vmem:[%s311 + $0x2f0] sm:$0xff]
        %v457 = vld [vmem:[%s311 + $0x2f8] sm:$0xff]
        %v458 = vld [vmem:[%s311 + $0x300] sm:$0xff]
        %v459 = vld [vmem:[%s311 + $0x308] sm:$0xff]
        %v460 = vld [vmem:[%s311 + $0x310] sm:$0xff]
        %v461 = vld [vmem:[%s311 + $0x318] sm:$0xff]
        %v462 = vld [vmem:[%s311 + $0x320] sm:$0xff]
        %v463 = vld [vmem:[%s311 + $0x328] sm:$0xff]
        %v464 = vld [vmem:[%s311 + $0x330] sm:$0xff]
        %v465 = vld [vmem:[%s311 + $0x338] sm:$0xff]
        %v466 = vld [vmem:[%s311 + $0x340] sm:$0xff]
        %v467 = vld [vmem:[%s311 + $0x348] sm:$0xff]
        %v468 = vld [vmem:[%s311 + $0x350] sm:$0xff]
        %v469 = vld [vmem:[%s311 + $0x358] sm:$0xff]
        %v470 = vld [vmem:[%s311 + $0x360] sm:$0xff]
        %v471 = vld [vmem:[%s311 + $0x368] sm:$0xff]
        %v472 = vld [vmem:[%s311 + $0x370] sm:$0xff]
        %v473 = vld [vmem:[%s311 + $0x378] sm:$0xff]
        %v474 = vld [vmem:[%s311 + $0x380] sm:$0xff]
        %v475 = vld [vmem:[%s311 + $0x388] sm:$0xff]
        %v476 = vld [vmem:[%s311 + $0x390] sm:$0xff]
        %v477 = vld [vmem:[%s311 + $0x398] sm:$0xff]
        %v478 = vld [vmem:[%s311 + $0x3a0] sm:$0xff]
        %v479 = vld [vmem:[%s311 + $0x3a8] sm:$0xff]
        %v480 = vld [vmem:[%s311 + $0x3b0] sm:$0xff]
        %v481 = vld [vmem:[%s311 + $0x3b8] sm:$0xff]
        %v482 = vld [vmem:[%s311 + $0x3c0] sm:$0xff]
        %v483 = vld [vmem:[%s311 + $0x3c8] sm:$0xff]
        %v484 = vld [vmem:[%s311 + $0x3d0] sm:$0xff]
        %v485 = vld [vmem:[%s311 + $0x3d8] sm:$0xff]
        %v486 = vld [vmem:[%s311 + $0x3e0] sm:$0xff]
        %v487 = vld [vmem:[%s311 + $0x3e8] sm:$0xff]
        %v488 = vld [vmem:[%s311 + $0x3f0] sm:$0xff]
        %v489 = vld [vmem:[%s311 + $0x3f8] sm:$0xff]
        %v490 = vld [vmem:[%s311 + $0x400] sm:$0xff]
        %v491 = vld [vmem:[%s311 + $0x408] sm:$0xff]
        %v492 = vld [vmem:[%s311 + $0x410] sm:$0xff]
        %v493 = vld [vmem:[%s311 + $0x418] sm:$0xff]
        %v494 = vld [vmem:[%s311 + $0x420] sm:$0xff]
        %v495 = vld [vmem:[%s311 + $0x428] sm:$0xff]
        %v496 = vld [vmem:[%s311 + $0x430] sm:$0xff]
        %v497 = vld [vmem:[%s311 + $0x438] sm:$0xff]
        %v498 = vld [vmem:[%s311 + $0x440] sm:$0xff]
        %v499 = vld [vmem:[%s311 + $0x448] sm:$0xff]
        %v500 = vld [vmem:[%s311 + $0x450] sm:$0xff]
        %v501 = vld [vmem:[%s311 + $0x458] sm:$0xff]
        %v502 = vld [vmem:[%s311 + $0x460] sm:$0xff]
        %v503 = vld [vmem:[%s311 + $0x468] sm:$0xff]
        %v504 = vld [vmem:[%s311 + $0x470] sm:$0xff]
        %v505 = vld [vmem:[%s311 + $0x478] sm:$0xff]
        %v506 = vld [vmem:[%s311 + $0x480] sm:$0xff]
        %v507 = vld [vmem:[%s311 + $0x488] sm:$0xff]
        %v508 = vld [vmem:[%s311 + $0x490] sm:$0xff]
        %v509 = vld [vmem:[%s311 + $0x498] sm:$0xff]
        %v510 = vld [vmem:[%s311 + $0x4a0] sm:$0xff]
        %v511 = vld [vmem:[%s311 + $0x4a8] sm:$0xff]
        %v512 = vld [vmem:[%s311 + $0x4b0] sm:$0xff]
        %v513 = vld [vmem:[%s311 + $0x4b8] sm:$0xff]
        %v514 = vld [vmem:[%s311 + $0x4c0] sm:$0xff]
        %v515 = vld [vmem:[%s311 + $0x4c8] sm:$0xff]
        %v516 = vld [vmem:[%s311 + $0x4d0] sm:$0xff]
        %v517 = vld [vmem:[%s311 + $0x4d8] sm:$0xff]
        %v518 = vld [vmem:[%s311 + $0x4e0] sm:$0xff]
        %v519 = vld [vmem:[%s311 + $0x4e8] sm:$0xff]
        %v520 = vld [vmem:[%s311 + $0x4f0] sm:$0xff]
        %v521 = vld [vmem:[%s311 + $0x4f8] sm:$0xff]
        %v522 = vld [vmem:[%s311 + $0x500] sm:$0xff]
        %v523 = vld [vmem:[%s311 + $0x508] sm:$0xff]
        %v524 = vld [vmem:[%s311 + $0x510] sm:$0xff]
        %v525 = vld [vmem:[%s311 + $0x518] sm:$0xff]
        %v526 = vld [vmem:[%s311 + $0x520] sm:$0xff]
        %v527 = vld [vmem:[%s311 + $0x528] sm:$0xff]
        %v528 = vld [vmem:[%s311 + $0x530] sm:$0xff]
        %v529 = vld [vmem:[%s311 + $0x538] sm:$0xff]
        %v530 = vld [vmem:[%s311 + $0x540] sm:$0xff]
        %v531 = vld [vmem:[%s311 + $0x548] sm:$0xff]
        %v532 = vld [vmem:[%s311 + $0x550] sm:$0xff]
        %v533 = vld [vmem:[%s311 + $0x558] sm:$0xff]
        %v534 = vld [vmem:[%s311 + $0x560] sm:$0xff]
        %v535 = vld [vmem:[%s311 + $0x568] sm:$0xff]
        %v536 = vld [vmem:[%s311 + $0x570] sm:$0xff]
        %v537 = vld [vmem:[%s311 + $0x578] sm:$0xff]
        %v538 = vld [vmem:[%s311 + $0x580] sm:$0xff]
        %v539 = vld [vmem:[%s311 + $0x588] sm:$0xff]
        %v540 = vld [vmem:[%s311 + $0x590] sm:$0xff]
        %v541 = vld [vmem:[%s311 + $0x598] sm:$0xff]
        %v542 = vld [vmem:[%s311 + $0x5a0] sm:$0xff]
        %v543 = vld [vmem:[%s311 + $0x5a8] sm:$0xff]
        %vm544 = vcmask 556032
        %v545 = vsel %vm544, %v363, 0.0
        %v546 = vadd.f32 %v362, %v545
        %547 = vadd.xlane.f32.xlu0 %v546
        %v548 = vpop.xlane.xlu0 %547
        %v549 = vsel %vm544, %v365, 0.0
        %v550 = vadd.f32 %v364, %v549
        %551 = vadd.xlane.f32.xlu0 %v550
        %v552 = vpop.xlane.xlu0 %551
        %v553 = vsel %vm544, %v367, 0.0
        %v554 = vadd.f32 %v366, %v553
        %555 = vadd.xlane.f32.xlu0 %v554
        %v556 = vpop.xlane.xlu0 %555
        %v557 = vsel %vm544, %v369, 0.0
        %v558 = vadd.f32 %v368, %v557
        %559 = vadd.xlane.f32.xlu0 %v558
        %v560 = vpop.xlane.xlu0 %559
        %v561 = vsel %vm544, %v371, 0.0
        %v562 = vadd.f32 %v370, %v561
        %563 = vadd.xlane.f32.xlu0 %v562
        %v564 = vpop.xlane.xlu0 %563
        %v565 = vsel %vm544, %v373, 0.0
        %v566 = vadd.f32 %v372, %v565
        %567 = vadd.xlane.f32.xlu0 %v566
        %v568 = vpop.xlane.xlu0 %567
        %v569 = vsel %vm544, %v375, 0.0
        %v570 = vadd.f32 %v374, %v569
        %571 = vadd.xlane.f32.xlu0 %v570
        %v572 = vpop.xlane.xlu0 %571
        %v573 = vsel %vm544, %v377, 0.0
        %v574 = vadd.f32 %v376, %v573
        %575 = vadd.xlane.f32.xlu0 %v574
        %v576 = vpop.xlane.xlu0 %575
        %v577 = vsel %vm544, %v379, 0.0
        %v578 = vadd.f32 %v378, %v577
        %579 = vadd.xlane.f32.xlu0 %v578
        %v580 = vpop.xlane.xlu0 %579
        %v581 = vsel %vm544, %v381, 0.0
        %v582 = vadd.f32 %v380, %v581
        %583 = vadd.xlane.f32.xlu0 %v582
        %v584 = vpop.xlane.xlu0 %583
        %v585 = vsel %vm544, %v383, 0.0
        %v586 = vadd.f32 %v382, %v585
        %587 = vadd.xlane.f32.xlu0 %v586
        %v588 = vpop.xlane.xlu0 %587
        %v589 = vsel %vm544, %v385, 0.0
        %v590 = vadd.f32 %v384, %v589
        %591 = vadd.xlane.f32.xlu0 %v590
        %v592 = vpop.xlane.xlu0 %591
        %v593 = vsel %vm544, %v387, 0.0
        %v594 = vadd.f32 %v386, %v593
        %595 = vadd.xlane.f32.xlu0 %v594
        %v596 = vpop.xlane.xlu0 %595
        %v597 = vsel %vm544, %v389, 0.0
        %v598 = vadd.f32 %v388, %v597
        %599 = vadd.xlane.f32.xlu0 %v598
        %v600 = vpop.xlane.xlu0 %599
        %v601 = vsel %vm544, %v391, 0.0
        %v602 = vadd.f32 %v390, %v601
        %603 = vadd.xlane.f32.xlu0 %v602
        %v604 = vpop.xlane.xlu0 %603
        %v605 = vsel %vm544, %v393, 0.0
        %v606 = vadd.f32 %v392, %v605
        %607 = vadd.xlane.f32.xlu0 %v606
        %v608 = vpop.xlane.xlu0 %607
        %v609 = vsel %vm544, %v395, 0.0
        %v610 = vadd.f32 %v394, %v609
        %611 = vadd.xlane.f32.xlu0 %v610
        %v612 = vpop.xlane.xlu0 %611
        %v613 = vsel %vm544, %v397, 0.0
        %v614 = vadd.f32 %v396, %v613
        %615 = vadd.xlane.f32.xlu0 %v614
        %v616 = vpop.xlane.xlu0 %615
        %v617 = vsel %vm544, %v399, 0.0
        %v618 = vadd.f32 %v398, %v617
        %619 = vadd.xlane.f32.xlu0 %v618
        %v620 = vpop.xlane.xlu0 %619
        %v621 = vsel %vm544, %v401, 0.0
        %v622 = vadd.f32 %v400, %v621
        %623 = vadd.xlane.f32.xlu0 %v622
        %v624 = vpop.xlane.xlu0 %623
        %v625 = vsel %vm544, %v403, 0.0
        %v626 = vadd.f32 %v402, %v625
        %627 = vadd.xlane.f32.xlu0 %v626
        %v628 = vpop.xlane.xlu0 %627
        %v629 = vsel %vm544, %v405, 0.0
        %v630 = vadd.f32 %v404, %v629
        %631 = vadd.xlane.f32.xlu0 %v630
        %v632 = vpop.xlane.xlu0 %631
        %v633 = vsel %vm544, %v407, 0.0
        %v634 = vadd.f32 %v406, %v633
        %635 = vadd.xlane.f32.xlu0 %v634
        %v636 = vpop.xlane.xlu0 %635
        %v637 = vsel %vm544, %v409, 0.0
        %v638 = vadd.f32 %v408, %v637
        %639 = vadd.xlane.f32.xlu0 %v638
        %v640 = vpop.xlane.xlu0 %639
        %v641 = vsel %vm544, %v411, 0.0
        %v642 = vadd.f32 %v410, %v641
        %643 = vadd.xlane.f32.xlu0 %v642
        %v644 = vpop.xlane.xlu0 %643
        %v645 = vsel %vm544, %v413, 0.0
        %v646 = vadd.f32 %v412, %v645
        %647 = vadd.xlane.f32.xlu0 %v646
        %v648 = vpop.xlane.xlu0 %647
        %v649 = vsel %vm544, %v415, 0.0
        %v650 = vadd.f32 %v414, %v649
        %651 = vadd.xlane.f32.xlu0 %v650
        %v652 = vpop.xlane.xlu0 %651
        %v653 = vsel %vm544, %v417, 0.0
        %v654 = vadd.f32 %v416, %v653
        %655 = vadd.xlane.f32.xlu0 %v654
        %v656 = vpop.xlane.xlu0 %655
        %v657 = vsel %vm544, %v419, 0.0
        %v658 = vadd.f32 %v418, %v657
        %659 = vadd.xlane.f32.xlu0 %v658
        %v660 = vpop.xlane.xlu0 %659
        %v661 = vsel %vm544, %v421, 0.0
        %v662 = vadd.f32 %v420, %v661
        %663 = vadd.xlane.f32.xlu0 %v662
        %v664 = vpop.xlane.xlu0 %663
        %v665 = vsel %vm544, %v423, 0.0
        %v666 = vadd.f32 %v422, %v665
        %667 = vadd.xlane.f32.xlu0 %v666
        %v668 = vpop.xlane.xlu0 %667
        %v669 = vsel %vm544, %v425, 0.0
        %v670 = vadd.f32 %v424, %v669
        %671 = vadd.xlane.f32.xlu0 %v670
        %v672 = vpop.xlane.xlu0 %671
        %v673 = vsel %vm544, %v427, 0.0
        %v674 = vadd.f32 %v426, %v673
        %675 = vadd.xlane.f32.xlu0 %v674
        %v676 = vpop.xlane.xlu0 %675
        %v677 = vsel %vm544, %v429, 0.0
        %v678 = vadd.f32 %v428, %v677
        %679 = vadd.xlane.f32.xlu0 %v678
        %v680 = vpop.xlane.xlu0 %679
        %v681 = vsel %vm544, %v431, 0.0
        %v682 = vadd.f32 %v430, %v681
        %683 = vadd.xlane.f32.xlu0 %v682
        %v684 = vpop.xlane.xlu0 %683
        %v685 = vsel %vm544, %v433, 0.0
        %v686 = vadd.f32 %v432, %v685
        %687 = vadd.xlane.f32.xlu0 %v686
        %v688 = vpop.xlane.xlu0 %687
        %v689 = vsel %vm544, %v435, 0.0
        %v690 = vadd.f32 %v434, %v689
        %691 = vadd.xlane.f32.xlu0 %v690
        %v692 = vpop.xlane.xlu0 %691
        %v693 = vsel %vm544, %v437, 0.0
        %v694 = vadd.f32 %v436, %v693
        %695 = vadd.xlane.f32.xlu0 %v694
        %v696 = vpop.xlane.xlu0 %695
        %v697 = vsel %vm544, %v439, 0.0
        %v698 = vadd.f32 %v438, %v697
        %699 = vadd.xlane.f32.xlu0 %v698
        %v700 = vpop.xlane.xlu0 %699
        %v701 = vsel %vm544, %v441, 0.0
        %v702 = vadd.f32 %v440, %v701
        %703 = vadd.xlane.f32.xlu0 %v702
        %v704 = vpop.xlane.xlu0 %703
        %v705 = vsel %vm544, %v443, 0.0
        %v706 = vadd.f32 %v442, %v705
        %707 = vadd.xlane.f32.xlu0 %v706
        %v708 = vpop.xlane.xlu0 %707
        %v709 = vsel %vm544, %v445, 0.0
        %v710 = vadd.f32 %v444, %v709
        %711 = vadd.xlane.f32.xlu0 %v710
        %v712 = vpop.xlane.xlu0 %711
        %v713 = vsel %vm544, %v447, 0.0
        %v714 = vadd.f32 %v446, %v713
        %715 = vadd.xlane.f32.xlu0 %v714
        %v716 = vpop.xlane.xlu0 %715
        %v717 = vsel %vm544, %v449, 0.0
        %v718 = vadd.f32 %v448, %v717
        %719 = vadd.xlane.f32.xlu0 %v718
        %v720 = vpop.xlane.xlu0 %719
        %v721 = vsel %vm544, %v451, 0.0
        %v722 = vadd.f32 %v450, %v721
        %723 = vadd.xlane.f32.xlu0 %v722
        %v724 = vpop.xlane.xlu0 %723
        %v725 = vsel %vm544, %v453, 0.0
        %v726 = vadd.f32 %v452, %v725
        %727 = vadd.xlane.f32.xlu0 %v726
        %v728 = vpop.xlane.xlu0 %727
        %v729 = vsel %vm544, %v455, 0.0
        %v730 = vadd.f32 %v454, %v729
        %731 = vadd.xlane.f32.xlu0 %v730
        %v732 = vpop.xlane.xlu0 %731
        %v733 = vsel %vm544, %v457, 0.0
        %v734 = vadd.f32 %v456, %v733
        %735 = vadd.xlane.f32.xlu0 %v734
        %v736 = vpop.xlane.xlu0 %735
        %v737 = vsel %vm544, %v459, 0.0
        %v738 = vadd.f32 %v458, %v737
        %739 = vadd.xlane.f32.xlu0 %v738
        %v740 = vpop.xlane.xlu0 %739
        %v741 = vsel %vm544, %v461, 0.0
        %v742 = vadd.f32 %v460, %v741
        %743 = vadd.xlane.f32.xlu0 %v742
        %v744 = vpop.xlane.xlu0 %743
        %v745 = vsel %vm544, %v463, 0.0
        %v746 = vadd.f32 %v462, %v745
        %747 = vadd.xlane.f32.xlu0 %v746
        %v748 = vpop.xlane.xlu0 %747
        %v749 = vsel %vm544, %v465, 0.0
        %v750 = vadd.f32 %v464, %v749
        %751 = vadd.xlane.f32.xlu0 %v750
        %v752 = vpop.xlane.xlu0 %751
        %v753 = vsel %vm544, %v467, 0.0
        %v754 = vadd.f32 %v466, %v753
        %755 = vadd.xlane.f32.xlu0 %v754
        %v756 = vpop.xlane.xlu0 %755
        %v757 = vsel %vm544, %v469, 0.0
        %v758 = vadd.f32 %v468, %v757
        %759 = vadd.xlane.f32.xlu0 %v758
        %v760 = vpop.xlane.xlu0 %759
        %v761 = vsel %vm544, %v471, 0.0
        %v762 = vadd.f32 %v470, %v761
        %763 = vadd.xlane.f32.xlu0 %v762
        %v764 = vpop.xlane.xlu0 %763
        %v765 = vsel %vm544, %v473, 0.0
        %v766 = vadd.f32 %v472, %v765
        %767 = vadd.xlane.f32.xlu0 %v766
        %v768 = vpop.xlane.xlu0 %767
        %v769 = vsel %vm544, %v475, 0.0
        %v770 = vadd.f32 %v474, %v769
        %771 = vadd.xlane.f32.xlu0 %v770
        %v772 = vpop.xlane.xlu0 %771
        %v773 = vsel %vm544, %v477, 0.0
        %v774 = vadd.f32 %v476, %v773
        %775 = vadd.xlane.f32.xlu0 %v774
        %v776 = vpop.xlane.xlu0 %775
        %v777 = vsel %vm544, %v479, 0.0
        %v778 = vadd.f32 %v478, %v777
        %779 = vadd.xlane.f32.xlu0 %v778
        %v780 = vpop.xlane.xlu0 %779
        %v781 = vsel %vm544, %v481, 0.0
        %v782 = vadd.f32 %v480, %v781
        %783 = vadd.xlane.f32.xlu0 %v782
        %v784 = vpop.xlane.xlu0 %783
        %v785 = vsel %vm544, %v483, 0.0
        %v786 = vadd.f32 %v482, %v785
        %787 = vadd.xlane.f32.xlu0 %v786
        %v788 = vpop.xlane.xlu0 %787
        %v789 = vsel %vm544, %v485, 0.0
        %v790 = vadd.f32 %v484, %v789
        %791 = vadd.xlane.f32.xlu0 %v790
        %v792 = vpop.xlane.xlu0 %791
        %v793 = vsel %vm544, %v487, 0.0
        %v794 = vadd.f32 %v486, %v793
        %795 = vadd.xlane.f32.xlu0 %v794
        %v796 = vpop.xlane.xlu0 %795
        %v797 = vsel %vm544, %v489, 0.0
        %v798 = vadd.f32 %v488, %v797
        %799 = vadd.xlane.f32.xlu0 %v798
        %v800 = vpop.xlane.xlu0 %799
        %v801 = vsel %vm544, %v491, 0.0
        %v802 = vadd.f32 %v490, %v801
        %803 = vadd.xlane.f32.xlu0 %v802
        %v804 = vpop.xlane.xlu0 %803
        %v805 = vsel %vm544, %v493, 0.0
        %v806 = vadd.f32 %v492, %v805
        %807 = vadd.xlane.f32.xlu0 %v806
        %v808 = vpop.xlane.xlu0 %807
        %v809 = vsel %vm544, %v495, 0.0
        %v810 = vadd.f32 %v494, %v809
        %811 = vadd.xlane.f32.xlu0 %v810
        %v812 = vpop.xlane.xlu0 %811
        %v813 = vsel %vm544, %v497, 0.0
        %v814 = vadd.f32 %v496, %v813
        %815 = vadd.xlane.f32.xlu0 %v814
        %v816 = vpop.xlane.xlu0 %815
        %v817 = vsel %vm544, %v499, 0.0
        %v818 = vadd.f32 %v498, %v817
        %819 = vadd.xlane.f32.xlu0 %v818
        %v820 = vpop.xlane.xlu0 %819
        %v821 = vsel %vm544, %v501, 0.0
        %v822 = vadd.f32 %v500, %v821
        %823 = vadd.xlane.f32.xlu0 %v822
        %v824 = vpop.xlane.xlu0 %823
        %v825 = vsel %vm544, %v503, 0.0
        %v826 = vadd.f32 %v502, %v825
        %827 = vadd.xlane.f32.xlu0 %v826
        %v828 = vpop.xlane.xlu0 %827
        %v829 = vsel %vm544, %v505, 0.0
        %v830 = vadd.f32 %v504, %v829
        %831 = vadd.xlane.f32.xlu0 %v830
        %v832 = vpop.xlane.xlu0 %831
        %v833 = vsel %vm544, %v507, 0.0
        %v834 = vadd.f32 %v506, %v833
        %835 = vadd.xlane.f32.xlu0 %v834
        %v836 = vpop.xlane.xlu0 %835
        %v837 = vsel %vm544, %v509, 0.0
        %v838 = vadd.f32 %v508, %v837
        %839 = vadd.xlane.f32.xlu0 %v838
        %v840 = vpop.xlane.xlu0 %839
        %v841 = vsel %vm544, %v511, 0.0
        %v842 = vadd.f32 %v510, %v841
        %843 = vadd.xlane.f32.xlu0 %v842
        %v844 = vpop.xlane.xlu0 %843
        %v845 = vsel %vm544, %v513, 0.0
        %v846 = vadd.f32 %v512, %v845
        %847 = vadd.xlane.f32.xlu0 %v846
        %v848 = vpop.xlane.xlu0 %847
        %v849 = vsel %vm544, %v515, 0.0
        %v850 = vadd.f32 %v514, %v849
        %851 = vadd.xlane.f32.xlu0 %v850
        %v852 = vpop.xlane.xlu0 %851
        %v853 = vsel %vm544, %v517, 0.0
        %v854 = vadd.f32 %v516, %v853
        %855 = vadd.xlane.f32.xlu0 %v854
        %v856 = vpop.xlane.xlu0 %855
        %v857 = vsel %vm544, %v519, 0.0
        %v858 = vadd.f32 %v518, %v857
        %859 = vadd.xlane.f32.xlu0 %v858
        %v860 = vpop.xlane.xlu0 %859
        %v861 = vsel %vm544, %v521, 0.0
        %v862 = vadd.f32 %v520, %v861
        %863 = vadd.xlane.f32.xlu0 %v862
        %v864 = vpop.xlane.xlu0 %863
        %v865 = vsel %vm544, %v523, 0.0
        %v866 = vadd.f32 %v522, %v865
        %867 = vadd.xlane.f32.xlu0 %v866
        %v868 = vpop.xlane.xlu0 %867
        %v869 = vsel %vm544, %v525, 0.0
        %v870 = vadd.f32 %v524, %v869
        %871 = vadd.xlane.f32.xlu0 %v870
        %v872 = vpop.xlane.xlu0 %871
        %v873 = vsel %vm544, %v527, 0.0
        %v874 = vadd.f32 %v526, %v873
        %875 = vadd.xlane.f32.xlu0 %v874
        %v876 = vpop.xlane.xlu0 %875
        %v877 = vsel %vm544, %v529, 0.0
        %v878 = vadd.f32 %v528, %v877
        %879 = vadd.xlane.f32.xlu0 %v878
        %v880 = vpop.xlane.xlu0 %879
        %v881 = vsel %vm544, %v531, 0.0
        %v882 = vadd.f32 %v530, %v881
        %883 = vadd.xlane.f32.xlu0 %v882
        %v884 = vpop.xlane.xlu0 %883
        %v885 = vsel %vm544, %v533, 0.0
        %v886 = vadd.f32 %v532, %v885
        %887 = vadd.xlane.f32.xlu0 %v886
        %v888 = vpop.xlane.xlu0 %887
        %v889 = vsel %vm544, %v535, 0.0
        %v890 = vadd.f32 %v534, %v889
        %891 = vadd.xlane.f32.xlu0 %v890
        %v892 = vpop.xlane.xlu0 %891
        %v893 = vsel %vm544, %v537, 0.0
        %v894 = vadd.f32 %v536, %v893
        %895 = vadd.xlane.f32.xlu0 %v894
        %v896 = vpop.xlane.xlu0 %895
        %v897 = vsel %vm544, %v539, 0.0
        %v898 = vadd.f32 %v538, %v897
        %899 = vadd.xlane.f32.xlu0 %v898
        %v900 = vpop.xlane.xlu0 %899
        %v901 = vsel %vm544, %v541, 0.0
        %v902 = vadd.f32 %v540, %v901
        %903 = vadd.xlane.f32.xlu0 %v902
        %v904 = vpop.xlane.xlu0 %903
        %v905 = vsel %vm544, %v543, 0.0
        %v906 = vadd.f32 %v542, %v905
        %907 = vadd.xlane.f32.xlu0 %v906
        %v908 = vpop.xlane.xlu0 %907
        %v909 = vmul.f32 %v548, 0.0051020407
        %v910 = vmul.f32 %v552, 0.0051020407
        %v911 = vmul.f32 %v556, 0.0051020407
        %v912 = vmul.f32 %v560, 0.0051020407
        %v913 = vmul.f32 %v564, 0.0051020407
        %v914 = vmul.f32 %v568, 0.0051020407
        %v915 = vmul.f32 %v572, 0.0051020407
        %v916 = vmul.f32 %v576, 0.0051020407
        %v917 = vmul.f32 %v580, 0.0051020407
        %v918 = vmul.f32 %v584, 0.0051020407
        %v919 = vmul.f32 %v588, 0.0051020407
        %v920 = vmul.f32 %v592, 0.0051020407
        %v921 = vmul.f32 %v596, 0.0051020407
        %v922 = vmul.f32 %v600, 0.0051020407
        %v923 = vmul.f32 %v604, 0.0051020407
        %v924 = vmul.f32 %v608, 0.0051020407
        %v925 = vmul.f32 %v612, 0.0051020407
        %v926 = vmul.f32 %v616, 0.0051020407
        %v927 = vmul.f32 %v620, 0.0051020407
        %v928 = vmul.f32 %v624, 0.0051020407
        %v929 = vmul.f32 %v628, 0.0051020407
        %v930 = vmul.f32 %v632, 0.0051020407
        %v931 = vmul.f32 %v636, 0.0051020407
        %v932 = vmul.f32 %v640, 0.0051020407
        %v933 = vmul.f32 %v644, 0.0051020407
        %v934 = vmul.f32 %v648, 0.0051020407
        %v935 = vmul.f32 %v652, 0.0051020407
        %v936 = vmul.f32 %v656, 0.0051020407
        %v937 = vmul.f32 %v660, 0.0051020407
        %v938 = vmul.f32 %v664, 0.0051020407
        %v939 = vmul.f32 %v668, 0.0051020407
        %v940 = vmul.f32 %v672, 0.0051020407
        %v941 = vmul.f32 %v676, 0.0051020407
        %v942 = vmul.f32 %v680, 0.0051020407
        %v943 = vmul.f32 %v684, 0.0051020407
        %v944 = vmul.f32 %v688, 0.0051020407
        %v945 = vmul.f32 %v692, 0.0051020407
        %v946 = vmul.f32 %v696, 0.0051020407
        %v947 = vmul.f32 %v700, 0.0051020407
        %v948 = vmul.f32 %v704, 0.0051020407
        %v949 = vmul.f32 %v708, 0.0051020407
        %v950 = vmul.f32 %v712, 0.0051020407
        %v951 = vmul.f32 %v716, 0.0051020407
        %v952 = vmul.f32 %v720, 0.0051020407
        %v953 = vmul.f32 %v724, 0.0051020407
        %v954 = vmul.f32 %v728, 0.0051020407
        %v955 = vmul.f32 %v732, 0.0051020407
        %v956 = vmul.f32 %v736, 0.0051020407
        %v957 = vmul.f32 %v740, 0.0051020407
        %v958 = vmul.f32 %v744, 0.0051020407
        %v959 = vmul.f32 %v748, 0.0051020407
        %v960 = vmul.f32 %v752, 0.0051020407
        %v961 = vmul.f32 %v756, 0.0051020407
        %v962 = vmul.f32 %v760, 0.0051020407
        %v963 = vmul.f32 %v764, 0.0051020407
        %v964 = vmul.f32 %v768, 0.0051020407
        %v965 = vmul.f32 %v772, 0.0051020407
        %v966 = vmul.f32 %v776, 0.0051020407
        %v967 = vmul.f32 %v780, 0.0051020407
        %v968 = vmul.f32 %v784, 0.0051020407
        %v969 = vmul.f32 %v788, 0.0051020407
        %v970 = vmul.f32 %v792, 0.0051020407
        %v971 = vmul.f32 %v796, 0.0051020407
        %v972 = vmul.f32 %v800, 0.0051020407
        %v973 = vmul.f32 %v804, 0.0051020407
        %v974 = vmul.f32 %v808, 0.0051020407
        %v975 = vmul.f32 %v812, 0.0051020407
        %v976 = vmul.f32 %v816, 0.0051020407
        %v977 = vmul.f32 %v820, 0.0051020407
        %v978 = vmul.f32 %v824, 0.0051020407
        %v979 = vmul.f32 %v828, 0.0051020407
        %v980 = vmul.f32 %v832, 0.0051020407
        %v981 = vmul.f32 %v836, 0.0051020407
        %v982 = vmul.f32 %v840, 0.0051020407
        %v983 = vmul.f32 %v844, 0.0051020407
        %v984 = vmul.f32 %v848, 0.0051020407
        %v985 = vmul.f32 %v852, 0.0051020407
        %v986 = vmul.f32 %v856, 0.0051020407
        %v987 = vmul.f32 %v860, 0.0051020407
        %v988 = vmul.f32 %v864, 0.0051020407
        %v989 = vmul.f32 %v868, 0.0051020407
        %v990 = vmul.f32 %v872, 0.0051020407
        %v991 = vmul.f32 %v876, 0.0051020407
        %v992 = vmul.f32 %v880, 0.0051020407
        %v993 = vmul.f32 %v884, 0.0051020407
        %v994 = vmul.f32 %v888, 0.0051020407
        %v995 = vmul.f32 %v892, 0.0051020407
        %v996 = vmul.f32 %v896, 0.0051020407
        %v997 = vmul.f32 %v900, 0.0051020407
        %v998 = vmul.f32 %v904, 0.0051020407
        %v999 = vmul.f32 %v908, 0.0051020407
        %v1000 = vsub.f32 %v362, %v909
        %v1001 = vsub.f32 %v363, %v909
        %v1002 = vsub.f32 %v364, %v910
        %v1003 = vsub.f32 %v365, %v910
        %v1004 = vsub.f32 %v366, %v911
        %v1005 = vsub.f32 %v367, %v911
        %v1006 = vsub.f32 %v368, %v912
        %v1007 = vsub.f32 %v369, %v912
        %v1008 = vsub.f32 %v370, %v913
        %v1009 = vsub.f32 %v371, %v913
        %v1010 = vsub.f32 %v372, %v914
        %v1011 = vsub.f32 %v373, %v914
        %v1012 = vsub.f32 %v374, %v915
        %v1013 = vsub.f32 %v375, %v915
        %v1014 = vsub.f32 %v376, %v916
        %v1015 = vsub.f32 %v377, %v916
        %v1016 = vsub.f32 %v378, %v917
        %v1017 = vsub.f32 %v379, %v917
        %v1018 = vsub.f32 %v380, %v918
        %v1019 = vsub.f32 %v381, %v918
        %v1020 = vsub.f32 %v382, %v919
        %v1021 = vsub.f32 %v383, %v919
        %v1022 = vsub.f32 %v384, %v920
        %v1023 = vsub.f32 %v385, %v920
        %v1024 = vsub.f32 %v386, %v921
        %v1025 = vsub.f32 %v387, %v921
        %v1026 = vsub.f32 %v388, %v922
        %v1027 = vsub.f32 %v389, %v922
        %v1028 = vsub.f32 %v390, %v923
        %v1029 = vsub.f32 %v391, %v923
        %v1030 = vsub.f32 %v392, %v924
        %v1031 = vsub.f32 %v393, %v924
        %v1032 = vsub.f32 %v394, %v925
        %v1033 = vsub.f32 %v395, %v925
        %v1034 = vsub.f32 %v396, %v926
        %v1035 = vsub.f32 %v397, %v926
        %v1036 = vsub.f32 %v398, %v927
        %v1037 = vsub.f32 %v399, %v927
        %v1038 = vsub.f32 %v400, %v928
        %v1039 = vsub.f32 %v401, %v928
        %v1040 = vsub.f32 %v402, %v929
        %v1041 = vsub.f32 %v403, %v929
        %v1042 = vsub.f32 %v404, %v930
        %v1043 = vsub.f32 %v405, %v930
        %v1044 = vsub.f32 %v406, %v931
        %v1045 = vsub.f32 %v407, %v931
        %v1046 = vsub.f32 %v408, %v932
        %v1047 = vsub.f32 %v409, %v932
        %v1048 = vsub.f32 %v410, %v933
        %v1049 = vsub.f32 %v411, %v933
        %v1050 = vsub.f32 %v412, %v934
        %v1051 = vsub.f32 %v413, %v934
        %v1052 = vsub.f32 %v414, %v935
        %v1053 = vsub.f32 %v415, %v935
        %v1054 = vsub.f32 %v416, %v936
        %v1055 = vsub.f32 %v417, %v936
        %v1056 = vsub.f32 %v418, %v937
        %v1057 = vsub.f32 %v419, %v937
        %v1058 = vsub.f32 %v420, %v938
        %v1059 = vsub.f32 %v421, %v938
        %v1060 = vsub.f32 %v422, %v939
        %v1061 = vsub.f32 %v423, %v939
        %v1062 = vsub.f32 %v424, %v940
        %v1063 = vsub.f32 %v425, %v940
        %v1064 = vsub.f32 %v426, %v941
        %v1065 = vsub.f32 %v427, %v941
        %v1066 = vsub.f32 %v428, %v942
        %v1067 = vsub.f32 %v429, %v942
        %v1068 = vsub.f32 %v430, %v943
        %v1069 = vsub.f32 %v431, %v943
        %v1070 = vsub.f32 %v432, %v944
        %v1071 = vsub.f32 %v433, %v944
        %v1072 = vsub.f32 %v434, %v945
        %v1073 = vsub.f32 %v435, %v945
        %v1074 = vsub.f32 %v436, %v946
        %v1075 = vsub.f32 %v437, %v946
        %v1076 = vsub.f32 %v438, %v947
        %v1077 = vsub.f32 %v439, %v947
        %v1078 = vsub.f32 %v440, %v948
        %v1079 = vsub.f32 %v441, %v948
        %v1080 = vsub.f32 %v442, %v949
        %v1081 = vsub.f32 %v443, %v949
        %v1082 = vsub.f32 %v444, %v950
        %v1083 = vsub.f32 %v445, %v950
        %v1084 = vsub.f32 %v446, %v951
        %v1085 = vsub.f32 %v447, %v951
        %v1086 = vsub.f32 %v448, %v952
        %v1087 = vsub.f32 %v449, %v952
        %v1088 = vsub.f32 %v450, %v953
        %v1089 = vsub.f32 %v451, %v953
        %v1090 = vsub.f32 %v452, %v954
        %v1091 = vsub.f32 %v453, %v954
        %v1092 = vsub.f32 %v454, %v955
        %v1093 = vsub.f32 %v455, %v955
        %v1094 = vsub.f32 %v456, %v956
        %v1095 = vsub.f32 %v457, %v956
        %v1096 = vsub.f32 %v458, %v957
        %v1097 = vsub.f32 %v459, %v957
        %v1098 = vsub.f32 %v460, %v958
        %v1099 = vsub.f32 %v461, %v958
        %v1100 = vsub.f32 %v462, %v959
        %v1101 = vsub.f32 %v463, %v959
        %v1102 = vsub.f32 %v464, %v960
        %v1103 = vsub.f32 %v465, %v960
        %v1104 = vsub.f32 %v466, %v961
        %v1105 = vsub.f32 %v467, %v961
        %v1106 = vsub.f32 %v468, %v962
        %v1107 = vsub.f32 %v469, %v962
        %v1108 = vsub.f32 %v470, %v963
        %v1109 = vsub.f32 %v471, %v963
        %v1110 = vsub.f32 %v472, %v964
        %v1111 = vsub.f32 %v473, %v964
        %v1112 = vsub.f32 %v474, %v965
        %v1113 = vsub.f32 %v475, %v965
        %v1114 = vsub.f32 %v476, %v966
        %v1115 = vsub.f32 %v477, %v966
        %v1116 = vsub.f32 %v478, %v967
        %v1117 = vsub.f32 %v479, %v967
        %v1118 = vsub.f32 %v480, %v968
        %v1119 = vsub.f32 %v481, %v968
        %v1120 = vsub.f32 %v482, %v969
        %v1121 = vsub.f32 %v483, %v969
        %v1122 = vsub.f32 %v484, %v970
        %v1123 = vsub.f32 %v485, %v970
        %v1124 = vsub.f32 %v486, %v971
        %v1125 = vsub.f32 %v487, %v971
        %v1126 = vsub.f32 %v488, %v972
        %v1127 = vsub.f32 %v489, %v972
        %v1128 = vsub.f32 %v490, %v973
        %v1129 = vsub.f32 %v491, %v973
        %v1130 = vsub.f32 %v492, %v974
        %v1131 = vsub.f32 %v493, %v974
        %v1132 = vsub.f32 %v494, %v975
        %v1133 = vsub.f32 %v495, %v975
        %v1134 = vsub.f32 %v496, %v976
        %v1135 = vsub.f32 %v497, %v976
        %v1136 = vsub.f32 %v498, %v977
        %v1137 = vsub.f32 %v499, %v977
        %v1138 = vsub.f32 %v500, %v978
        %v1139 = vsub.f32 %v501, %v978
        %v1140 = vsub.f32 %v502, %v979
        %v1141 = vsub.f32 %v503, %v979
        %v1142 = vsub.f32 %v504, %v980
        %v1143 = vsub.f32 %v505, %v980
        %v1144 = vsub.f32 %v506, %v981
        %v1145 = vsub.f32 %v507, %v981
        %v1146 = vsub.f32 %v508, %v982
        %v1147 = vsub.f32 %v509, %v982
        %v1148 = vsub.f32 %v510, %v983
        %v1149 = vsub.f32 %v511, %v983
        %v1150 = vsub.f32 %v512, %v984
        %v1151 = vsub.f32 %v513, %v984
        %v1152 = vsub.f32 %v514, %v985
        %v1153 = vsub.f32 %v515, %v985
        %v1154 = vsub.f32 %v516, %v986
        %v1155 = vsub.f32 %v517, %v986
        %v1156 = vsub.f32 %v518, %v987
        %v1157 = vsub.f32 %v519, %v987
        %v1158 = vsub.f32 %v520, %v988
        %v1159 = vsub.f32 %v521, %v988
        %v1160 = vsub.f32 %v522, %v989
        %v1161 = vsub.f32 %v523, %v989
        %v1162 = vsub.f32 %v524, %v990
        %v1163 = vsub.f32 %v525, %v990
        %v1164 = vsub.f32 %v526, %v991
        %v1165 = vsub.f32 %v527, %v991
        %v1166 = vsub.f32 %v528, %v992
        %v1167 = vsub.f32 %v529, %v992
        %v1168 = vsub.f32 %v530, %v993
        %v1169 = vsub.f32 %v531, %v993
        %v1170 = vsub.f32 %v532, %v994
        %v1171 = vsub.f32 %v533, %v994
        %v1172 = vsub.f32 %v534, %v995
        %v1173 = vsub.f32 %v535, %v995
        %v1174 = vsub.f32 %v536, %v996
        %v1175 = vsub.f32 %v537, %v996
        %v1176 = vsub.f32 %v538, %v997
        %v1177 = vsub.f32 %v539, %v997
        %v1178 = vsub.f32 %v540, %v998
        %v1179 = vsub.f32 %v541, %v998
        %v1180 = vsub.f32 %v542, %v999
        %v1181 = vsub.f32 %v543, %v999
        %v1182 = vmul.f32 %v1000, %v1000
        %v1183 = vmul.f32 %v1001, %v1001
        %v1184 = vmul.f32 %v1002, %v1002
        %v1185 = vmul.f32 %v1003, %v1003
        %v1186 = vmul.f32 %v1004, %v1004
        %v1187 = vmul.f32 %v1005, %v1005
        %v1188 = vmul.f32 %v1006, %v1006
        %v1189 = vmul.f32 %v1007, %v1007
        %v1190 = vmul.f32 %v1008, %v1008
        %v1191 = vmul.f32 %v1009, %v1009
        %v1192 = vmul.f32 %v1010, %v1010
        %v1193 = vmul.f32 %v1011, %v1011
        %v1194 = vmul.f32 %v1012, %v1012
        %v1195 = vmul.f32 %v1013, %v1013
        %v1196 = vmul.f32 %v1014, %v1014
        %v1197 = vmul.f32 %v1015, %v1015
        %v1198 = vmul.f32 %v1016, %v1016
        %v1199 = vmul.f32 %v1017, %v1017
        %v1200 = vmul.f32 %v1018, %v1018
        %v1201 = vmul.f32 %v1019, %v1019
        %v1202 = vmul.f32 %v1020, %v1020
        %v1203 = vmul.f32 %v1021, %v1021
        %v1204 = vmul.f32 %v1022, %v1022
        %v1205 = vmul.f32 %v1023, %v1023
        %v1206 = vmul.f32 %v1024, %v1024
        %v1207 = vmul.f32 %v1025, %v1025
        %v1208 = vmul.f32 %v1026, %v1026
        %v1209 = vmul.f32 %v1027, %v1027
        %v1210 = vmul.f32 %v1028, %v1028
        %v1211 = vmul.f32 %v1029, %v1029
        %v1212 = vmul.f32 %v1030, %v1030
        %v1213 = vmul.f32 %v1031, %v1031
        %v1214 = vmul.f32 %v1032, %v1032
        %v1215 = vmul.f32 %v1033, %v1033
        %v1216 = vmul.f32 %v1034, %v1034
        %v1217 = vmul.f32 %v1035, %v1035
        %v1218 = vmul.f32 %v1036, %v1036
        %v1219 = vmul.f32 %v1037, %v1037
        %v1220 = vmul.f32 %v1038, %v1038
        %v1221 = vmul.f32 %v1039, %v1039
        %v1222 = vmul.f32 %v1040, %v1040
        %v1223 = vmul.f32 %v1041, %v1041
        %v1224 = vmul.f32 %v1042, %v1042
        %v1225 = vmul.f32 %v1043, %v1043
        %v1226 = vmul.f32 %v1044, %v1044
        %v1227 = vmul.f32 %v1045, %v1045
        %v1228 = vmul.f32 %v1046, %v1046
        %v1229 = vmul.f32 %v1047, %v1047
        %v1230 = vmul.f32 %v1048, %v1048
        %v1231 = vmul.f32 %v1049, %v1049
        %v1232 = vmul.f32 %v1050, %v1050
        %v1233 = vmul.f32 %v1051, %v1051
        %v1234 = vmul.f32 %v1052, %v1052
        %v1235 = vmul.f32 %v1053, %v1053
        %v1236 = vmul.f32 %v1054, %v1054
        %v1237 = vmul.f32 %v1055, %v1055
        %v1238 = vmul.f32 %v1056, %v1056
        %v1239 = vmul.f32 %v1057, %v1057
        %v1240 = vmul.f32 %v1058, %v1058
        %v1241 = vmul.f32 %v1059, %v1059
        %v1242 = vmul.f32 %v1060, %v1060
        %v1243 = vmul.f32 %v1061, %v1061
        %v1244 = vmul.f32 %v1062, %v1062
        %v1245 = vmul.f32 %v1063, %v1063
        %v1246 = vmul.f32 %v1064, %v1064
        %v1247 = vmul.f32 %v1065, %v1065
        %v1248 = vmul.f32 %v1066, %v1066
        %v1249 = vmul.f32 %v1067, %v1067
        %v1250 = vmul.f32 %v1068, %v1068
        %v1251 = vmul.f32 %v1069, %v1069
        %v1252 = vmul.f32 %v1070, %v1070
        %v1253 = vmul.f32 %v1071, %v1071
        %v1254 = vmul.f32 %v1072, %v1072
        %v1255 = vmul.f32 %v1073, %v1073
        %v1256 = vmul.f32 %v1074, %v1074
        %v1257 = vmul.f32 %v1075, %v1075
        %v1258 = vmul.f32 %v1076, %v1076
        %v1259 = vmul.f32 %v1077, %v1077
        %v1260 = vmul.f32 %v1078, %v1078
        %v1261 = vmul.f32 %v1079, %v1079
        %v1262 = vmul.f32 %v1080, %v1080
        %v1263 = vmul.f32 %v1081, %v1081
        %v1264 = vmul.f32 %v1082, %v1082
        %v1265 = vmul.f32 %v1083, %v1083
        %v1266 = vmul.f32 %v1084, %v1084
        %v1267 = vmul.f32 %v1085, %v1085
        %v1268 = vmul.f32 %v1086, %v1086
        %v1269 = vmul.f32 %v1087, %v1087
        %v1270 = vmul.f32 %v1088, %v1088
        %v1271 = vmul.f32 %v1089, %v1089
        %v1272 = vmul.f32 %v1090, %v1090
        %v1273 = vmul.f32 %v1091, %v1091
        %v1274 = vmul.f32 %v1092, %v1092
        %v1275 = vmul.f32 %v1093, %v1093
        %v1276 = vmul.f32 %v1094, %v1094
        %v1277 = vmul.f32 %v1095, %v1095
        %v1278 = vmul.f32 %v1096, %v1096
        %v1279 = vmul.f32 %v1097, %v1097
        %v1280 = vmul.f32 %v1098, %v1098
        %v1281 = vmul.f32 %v1099, %v1099
        %v1282 = vmul.f32 %v1100, %v1100
        %v1283 = vmul.f32 %v1101, %v1101
        %v1284 = vmul.f32 %v1102, %v1102
        %v1285 = vmul.f32 %v1103, %v1103
        %v1286 = vmul.f32 %v1104, %v1104
        %v1287 = vmul.f32 %v1105, %v1105
        %v1288 = vmul.f32 %v1106, %v1106
        %v1289 = vmul.f32 %v1107, %v1107
        %v1290 = vmul.f32 %v1108, %v1108
        %v1291 = vmul.f32 %v1109, %v1109
        %v1292 = vmul.f32 %v1110, %v1110
        %v1293 = vmul.f32 %v1111, %v1111
        %v1294 = vmul.f32 %v1112, %v1112
        %v1295 = vmul.f32 %v1113, %v1113
        %v1296 = vmul.f32 %v1114, %v1114
        %v1297 = vmul.f32 %v1115, %v1115
        %v1298 = vmul.f32 %v1116, %v1116
        %v1299 = vmul.f32 %v1117, %v1117
        %v1300 = vmul.f32 %v1118, %v1118
        %v1301 = vmul.f32 %v1119, %v1119
        %v1302 = vmul.f32 %v1120, %v1120
        %v1303 = vmul.f32 %v1121, %v1121
        %v1304 = vmul.f32 %v1122, %v1122
        %v1305 = vmul.f32 %v1123, %v1123
        %v1306 = vmul.f32 %v1124, %v1124
        %v1307 = vmul.f32 %v1125, %v1125
        %v1308 = vmul.f32 %v1126, %v1126
        %v1309 = vmul.f32 %v1127, %v1127
        %v1310 = vmul.f32 %v1128, %v1128
        %v1311 = vmul.f32 %v1129, %v1129
        %v1312 = vmul.f32 %v1130, %v1130
        %v1313 = vmul.f32 %v1131, %v1131
        %v1314 = vmul.f32 %v1132, %v1132
        %v1315 = vmul.f32 %v1133, %v1133
        %v1316 = vmul.f32 %v1134, %v1134
        %v1317 = vmul.f32 %v1135, %v1135
        %v1318 = vmul.f32 %v1136, %v1136
        %v1319 = vmul.f32 %v1137, %v1137
        %v1320 = vmul.f32 %v1138, %v1138
        %v1321 = vmul.f32 %v1139, %v1139
        %v1322 = vmul.f32 %v1140, %v1140
        %v1323 = vmul.f32 %v1141, %v1141
        %v1324 = vmul.f32 %v1142, %v1142
        %v1325 = vmul.f32 %v1143, %v1143
        %v1326 = vmul.f32 %v1144, %v1144
        %v1327 = vmul.f32 %v1145, %v1145
        %v1328 = vmul.f32 %v1146, %v1146
        %v1329 = vmul.f32 %v1147, %v1147
        %v1330 = vmul.f32 %v1148, %v1148
        %v1331 = vmul.f32 %v1149, %v1149
        %v1332 = vmul.f32 %v1150, %v1150
        %v1333 = vmul.f32 %v1151, %v1151
        %v1334 = vmul.f32 %v1152, %v1152
        %v1335 = vmul.f32 %v1153, %v1153
        %v1336 = vmul.f32 %v1154, %v1154
        %v1337 = vmul.f32 %v1155, %v1155
        %v1338 = vmul.f32 %v1156, %v1156
        %v1339 = vmul.f32 %v1157, %v1157
        %v1340 = vmul.f32 %v1158, %v1158
        %v1341 = vmul.f32 %v1159, %v1159
        %v1342 = vmul.f32 %v1160, %v1160
        %v1343 = vmul.f32 %v1161, %v1161
        %v1344 = vmul.f32 %v1162, %v1162
        %v1345 = vmul.f32 %v1163, %v1163
        %v1346 = vmul.f32 %v1164, %v1164
        %v1347 = vmul.f32 %v1165, %v1165
        %v1348 = vmul.f32 %v1166, %v1166
        %v1349 = vmul.f32 %v1167, %v1167
        %v1350 = vmul.f32 %v1168, %v1168
        %v1351 = vmul.f32 %v1169, %v1169
        %v1352 = vmul.f32 %v1170, %v1170
        %v1353 = vmul.f32 %v1171, %v1171
        %v1354 = vmul.f32 %v1172, %v1172
        %v1355 = vmul.f32 %v1173, %v1173
        %v1356 = vmul.f32 %v1174, %v1174
        %v1357 = vmul.f32 %v1175, %v1175
        %v1358 = vmul.f32 %v1176, %v1176
        %v1359 = vmul.f32 %v1177, %v1177
        %v1360 = vmul.f32 %v1178, %v1178
        %v1361 = vmul.f32 %v1179, %v1179
        %v1362 = vmul.f32 %v1180, %v1180
        %v1363 = vmul.f32 %v1181, %v1181
        %v1364 = vsel %vm544, %v1183, 0.0
        %v1365 = vadd.f32 %v1182, %v1364
        %1366 = vadd.xlane.f32.xlu0 %v1365
        %v1367 = vpop.xlane.xlu0 %1366
        %v1368 = vsel %vm544, %v1185, 0.0
        %v1369 = vadd.f32 %v1184, %v1368
        %1370 = vadd.xlane.f32.xlu0 %v1369
        %v1371 = vpop.xlane.xlu0 %1370
        %v1372 = vsel %vm544, %v1187, 0.0
        %v1373 = vadd.f32 %v1186, %v1372
        %1374 = vadd.xlane.f32.xlu0 %v1373
        %v1375 = vpop.xlane.xlu0 %1374
        %v1376 = vsel %vm544, %v1189, 0.0
        %v1377 = vadd.f32 %v1188, %v1376
        %1378 = vadd.xlane.f32.xlu0 %v1377
        %v1379 = vpop.xlane.xlu0 %1378
        %v1380 = vsel %vm544, %v1191, 0.0
        %v1381 = vadd.f32 %v1190, %v1380
        %1382 = vadd.xlane.f32.xlu0 %v1381
        %v1383 = vpop.xlane.xlu0 %1382
        %v1384 = vsel %vm544, %v1193, 0.0
        %v1385 = vadd.f32 %v1192, %v1384
        %1386 = vadd.xlane.f32.xlu0 %v1385
        %v1387 = vpop.xlane.xlu0 %1386
        %v1388 = vsel %vm544, %v1195, 0.0
        %v1389 = vadd.f32 %v1194, %v1388
        %1390 = vadd.xlane.f32.xlu0 %v1389
        %v1391 = vpop.xlane.xlu0 %1390
        %v1392 = vsel %vm544, %v1197, 0.0
        %v1393 = vadd.f32 %v1196, %v1392
        %1394 = vadd.xlane.f32.xlu0 %v1393
        %v1395 = vpop.xlane.xlu0 %1394
        %v1396 = vsel %vm544, %v1199, 0.0
        %v1397 = vadd.f32 %v1198, %v1396
        %1398 = vadd.xlane.f32.xlu0 %v1397
        %v1399 = vpop.xlane.xlu0 %1398
        %v1400 = vsel %vm544, %v1201, 0.0
        %v1401 = vadd.f32 %v1200, %v1400
        %1402 = vadd.xlane.f32.xlu0 %v1401
        %v1403 = vpop.xlane.xlu0 %1402
        %v1404 = vsel %vm544, %v1203, 0.0
        %v1405 = vadd.f32 %v1202, %v1404
        %1406 = vadd.xlane.f32.xlu0 %v1405
        %v1407 = vpop.xlane.xlu0 %1406
        %v1408 = vsel %vm544, %v1205, 0.0
        %v1409 = vadd.f32 %v1204, %v1408
        %1410 = vadd.xlane.f32.xlu0 %v1409
        %v1411 = vpop.xlane.xlu0 %1410
        %v1412 = vsel %vm544, %v1207, 0.0
        %v1413 = vadd.f32 %v1206, %v1412
        %1414 = vadd.xlane.f32.xlu0 %v1413
        %v1415 = vpop.xlane.xlu0 %1414
        %v1416 = vsel %vm544, %v1209, 0.0
        %v1417 = vadd.f32 %v1208, %v1416
        %1418 = vadd.xlane.f32.xlu0 %v1417
        %v1419 = vpop.xlane.xlu0 %1418
        %v1420 = vsel %vm544, %v1211, 0.0
        %v1421 = vadd.f32 %v1210, %v1420
        %1422 = vadd.xlane.f32.xlu0 %v1421
        %v1423 = vpop.xlane.xlu0 %1422
        %v1424 = vsel %vm544, %v1213, 0.0
        %v1425 = vadd.f32 %v1212, %v1424
        %1426 = vadd.xlane.f32.xlu0 %v1425
        %v1427 = vpop.xlane.xlu0 %1426
        %v1428 = vsel %vm544, %v1215, 0.0
        %v1429 = vadd.f32 %v1214, %v1428
        %1430 = vadd.xlane.f32.xlu0 %v1429
        %v1431 = vpop.xlane.xlu0 %1430
        %v1432 = vsel %vm544, %v1217, 0.0
        %v1433 = vadd.f32 %v1216, %v1432
        %1434 = vadd.xlane.f32.xlu0 %v1433
        %v1435 = vpop.xlane.xlu0 %1434
        %v1436 = vsel %vm544, %v1219, 0.0
        %v1437 = vadd.f32 %v1218, %v1436
        %1438 = vadd.xlane.f32.xlu0 %v1437
        %v1439 = vpop.xlane.xlu0 %1438
        %v1440 = vsel %vm544, %v1221, 0.0
        %v1441 = vadd.f32 %v1220, %v1440
        %1442 = vadd.xlane.f32.xlu0 %v1441
        %v1443 = vpop.xlane.xlu0 %1442
        %v1444 = vsel %vm544, %v1223, 0.0
        %v1445 = vadd.f32 %v1222, %v1444
        %1446 = vadd.xlane.f32.xlu0 %v1445
        %v1447 = vpop.xlane.xlu0 %1446
        %v1448 = vsel %vm544, %v1225, 0.0
        %v1449 = vadd.f32 %v1224, %v1448
        %1450 = vadd.xlane.f32.xlu0 %v1449
        %v1451 = vpop.xlane.xlu0 %1450
        %v1452 = vsel %vm544, %v1227, 0.0
        %v1453 = vadd.f32 %v1226, %v1452
        %1454 = vadd.xlane.f32.xlu0 %v1453
        %v1455 = vpop.xlane.xlu0 %1454
        %v1456 = vsel %vm544, %v1229, 0.0
        %v1457 = vadd.f32 %v1228, %v1456
        %1458 = vadd.xlane.f32.xlu0 %v1457
        %v1459 = vpop.xlane.xlu0 %1458
        %v1460 = vsel %vm544, %v1231, 0.0
        %v1461 = vadd.f32 %v1230, %v1460
        %1462 = vadd.xlane.f32.xlu0 %v1461
        %v1463 = vpop.xlane.xlu0 %1462
        %v1464 = vsel %vm544, %v1233, 0.0
        %v1465 = vadd.f32 %v1232, %v1464
        %1466 = vadd.xlane.f32.xlu0 %v1465
        %v1467 = vpop.xlane.xlu0 %1466
        %v1468 = vsel %vm544, %v1235, 0.0
        %v1469 = vadd.f32 %v1234, %v1468
        %1470 = vadd.xlane.f32.xlu0 %v1469
        %v1471 = vpop.xlane.xlu0 %1470
        %v1472 = vsel %vm544, %v1237, 0.0
        %v1473 = vadd.f32 %v1236, %v1472
        %1474 = vadd.xlane.f32.xlu0 %v1473
        %v1475 = vpop.xlane.xlu0 %1474
        %v1476 = vsel %vm544, %v1239, 0.0
        %v1477 = vadd.f32 %v1238, %v1476
        %1478 = vadd.xlane.f32.xlu0 %v1477
        %v1479 = vpop.xlane.xlu0 %1478
        %v1480 = vsel %vm544, %v1241, 0.0
        %v1481 = vadd.f32 %v1240, %v1480
        %1482 = vadd.xlane.f32.xlu0 %v1481
        %v1483 = vpop.xlane.xlu0 %1482
        %v1484 = vsel %vm544, %v1243, 0.0
        %v1485 = vadd.f32 %v1242, %v1484
        %1486 = vadd.xlane.f32.xlu0 %v1485
        %v1487 = vpop.xlane.xlu0 %1486
        %v1488 = vsel %vm544, %v1245, 0.0
        %v1489 = vadd.f32 %v1244, %v1488
        %1490 = vadd.xlane.f32.xlu0 %v1489
        %v1491 = vpop.xlane.xlu0 %1490
        %v1492 = vsel %vm544, %v1247, 0.0
        %v1493 = vadd.f32 %v1246, %v1492
        %1494 = vadd.xlane.f32.xlu0 %v1493
        %v1495 = vpop.xlane.xlu0 %1494
        %v1496 = vsel %vm544, %v1249, 0.0
        %v1497 = vadd.f32 %v1248, %v1496
        %1498 = vadd.xlane.f32.xlu0 %v1497
        %v1499 = vpop.xlane.xlu0 %1498
        %v1500 = vsel %vm544, %v1251, 0.0
        %v1501 = vadd.f32 %v1250, %v1500
        %1502 = vadd.xlane.f32.xlu0 %v1501
        %v1503 = vpop.xlane.xlu0 %1502
        %v1504 = vsel %vm544, %v1253, 0.0
        %v1505 = vadd.f32 %v1252, %v1504
        %1506 = vadd.xlane.f32.xlu0 %v1505
        %v1507 = vpop.xlane.xlu0 %1506
        %v1508 = vsel %vm544, %v1255, 0.0
        %v1509 = vadd.f32 %v1254, %v1508
        %1510 = vadd.xlane.f32.xlu0 %v1509
        %v1511 = vpop.xlane.xlu0 %1510
        %v1512 = vsel %vm544, %v1257, 0.0
        %v1513 = vadd.f32 %v1256, %v1512
        %1514 = vadd.xlane.f32.xlu0 %v1513
        %v1515 = vpop.xlane.xlu0 %1514
        %v1516 = vsel %vm544, %v1259, 0.0
        %v1517 = vadd.f32 %v1258, %v1516
        %1518 = vadd.xlane.f32.xlu0 %v1517
        %v1519 = vpop.xlane.xlu0 %1518
        %v1520 = vsel %vm544, %v1261, 0.0
        %v1521 = vadd.f32 %v1260, %v1520
        %1522 = vadd.xlane.f32.xlu0 %v1521
        %v1523 = vpop.xlane.xlu0 %1522
        %v1524 = vsel %vm544, %v1263, 0.0
        %v1525 = vadd.f32 %v1262, %v1524
        %1526 = vadd.xlane.f32.xlu0 %v1525
        %v1527 = vpop.xlane.xlu0 %1526
        %v1528 = vsel %vm544, %v1265, 0.0
        %v1529 = vadd.f32 %v1264, %v1528
        %1530 = vadd.xlane.f32.xlu0 %v1529
        %v1531 = vpop.xlane.xlu0 %1530
        %v1532 = vsel %vm544, %v1267, 0.0
        %v1533 = vadd.f32 %v1266, %v1532
        %1534 = vadd.xlane.f32.xlu0 %v1533
        %v1535 = vpop.xlane.xlu0 %1534
        %v1536 = vsel %vm544, %v1269, 0.0
        %v1537 = vadd.f32 %v1268, %v1536
        %1538 = vadd.xlane.f32.xlu0 %v1537
        %v1539 = vpop.xlane.xlu0 %1538
        %v1540 = vsel %vm544, %v1271, 0.0
        %v1541 = vadd.f32 %v1270, %v1540
        %1542 = vadd.xlane.f32.xlu0 %v1541
        %v1543 = vpop.xlane.xlu0 %1542
        %v1544 = vsel %vm544, %v1273, 0.0
        %v1545 = vadd.f32 %v1272, %v1544
        %1546 = vadd.xlane.f32.xlu0 %v1545
        %v1547 = vpop.xlane.xlu0 %1546
        %v1548 = vsel %vm544, %v1275, 0.0
        %v1549 = vadd.f32 %v1274, %v1548
        %1550 = vadd.xlane.f32.xlu0 %v1549
        %v1551 = vpop.xlane.xlu0 %1550
        %v1552 = vsel %vm544, %v1277, 0.0
        %v1553 = vadd.f32 %v1276, %v1552
        %1554 = vadd.xlane.f32.xlu0 %v1553
        %v1555 = vpop.xlane.xlu0 %1554
        %v1556 = vsel %vm544, %v1279, 0.0
        %v1557 = vadd.f32 %v1278, %v1556
        %1558 = vadd.xlane.f32.xlu0 %v1557
        %v1559 = vpop.xlane.xlu0 %1558
        %v1560 = vsel %vm544, %v1281, 0.0
        %v1561 = vadd.f32 %v1280, %v1560
        %1562 = vadd.xlane.f32.xlu0 %v1561
        %v1563 = vpop.xlane.xlu0 %1562
        %v1564 = vsel %vm544, %v1283, 0.0
        %v1565 = vadd.f32 %v1282, %v1564
        %1566 = vadd.xlane.f32.xlu0 %v1565
        %v1567 = vpop.xlane.xlu0 %1566
        %v1568 = vsel %vm544, %v1285, 0.0
        %v1569 = vadd.f32 %v1284, %v1568
        %1570 = vadd.xlane.f32.xlu0 %v1569
        %v1571 = vpop.xlane.xlu0 %1570
        %v1572 = vsel %vm544, %v1287, 0.0
        %v1573 = vadd.f32 %v1286, %v1572
        %1574 = vadd.xlane.f32.xlu0 %v1573
        %v1575 = vpop.xlane.xlu0 %1574
        %v1576 = vsel %vm544, %v1289, 0.0
        %v1577 = vadd.f32 %v1288, %v1576
        %1578 = vadd.xlane.f32.xlu0 %v1577
        %v1579 = vpop.xlane.xlu0 %1578
        %v1580 = vsel %vm544, %v1291, 0.0
        %v1581 = vadd.f32 %v1290, %v1580
        %1582 = vadd.xlane.f32.xlu0 %v1581
        %v1583 = vpop.xlane.xlu0 %1582
        %v1584 = vsel %vm544, %v1293, 0.0
        %v1585 = vadd.f32 %v1292, %v1584
        %1586 = vadd.xlane.f32.xlu0 %v1585
        %v1587 = vpop.xlane.xlu0 %1586
        %v1588 = vsel %vm544, %v1295, 0.0
        %v1589 = vadd.f32 %v1294, %v1588
        %1590 = vadd.xlane.f32.xlu0 %v1589
        %v1591 = vpop.xlane.xlu0 %1590
        %v1592 = vsel %vm544, %v1297, 0.0
        %v1593 = vadd.f32 %v1296, %v1592
        %1594 = vadd.xlane.f32.xlu0 %v1593
        %v1595 = vpop.xlane.xlu0 %1594
        %v1596 = vsel %vm544, %v1299, 0.0
        %v1597 = vadd.f32 %v1298, %v1596
        %1598 = vadd.xlane.f32.xlu0 %v1597
        %v1599 = vpop.xlane.xlu0 %1598
        %v1600 = vsel %vm544, %v1301, 0.0
        %v1601 = vadd.f32 %v1300, %v1600
        %1602 = vadd.xlane.f32.xlu0 %v1601
        %v1603 = vpop.xlane.xlu0 %1602
        %v1604 = vsel %vm544, %v1303, 0.0
        %v1605 = vadd.f32 %v1302, %v1604
        %1606 = vadd.xlane.f32.xlu0 %v1605
        %v1607 = vpop.xlane.xlu0 %1606
        %v1608 = vsel %vm544, %v1305, 0.0
        %v1609 = vadd.f32 %v1304, %v1608
        %1610 = vadd.xlane.f32.xlu0 %v1609
        %v1611 = vpop.xlane.xlu0 %1610
        %v1612 = vsel %vm544, %v1307, 0.0
        %v1613 = vadd.f32 %v1306, %v1612
        %1614 = vadd.xlane.f32.xlu0 %v1613
        %v1615 = vpop.xlane.xlu0 %1614
        %v1616 = vsel %vm544, %v1309, 0.0
        %v1617 = vadd.f32 %v1308, %v1616
        %1618 = vadd.xlane.f32.xlu0 %v1617
        %v1619 = vpop.xlane.xlu0 %1618
        %v1620 = vsel %vm544, %v1311, 0.0
        %v1621 = vadd.f32 %v1310, %v1620
        %1622 = vadd.xlane.f32.xlu0 %v1621
        %v1623 = vpop.xlane.xlu0 %1622
        %v1624 = vsel %vm544, %v1313, 0.0
        %v1625 = vadd.f32 %v1312, %v1624
        %1626 = vadd.xlane.f32.xlu0 %v1625
        %v1627 = vpop.xlane.xlu0 %1626
        %v1628 = vsel %vm544, %v1315, 0.0
        %v1629 = vadd.f32 %v1314, %v1628
        %1630 = vadd.xlane.f32.xlu0 %v1629
        %v1631 = vpop.xlane.xlu0 %1630
        %v1632 = vsel %vm544, %v1317, 0.0
        %v1633 = vadd.f32 %v1316, %v1632
        %1634 = vadd.xlane.f32.xlu0 %v1633
        %v1635 = vpop.xlane.xlu0 %1634
        %v1636 = vsel %vm544, %v1319, 0.0
        %v1637 = vadd.f32 %v1318, %v1636
        %1638 = vadd.xlane.f32.xlu0 %v1637
        %v1639 = vpop.xlane.xlu0 %1638
        %v1640 = vsel %vm544, %v1321, 0.0
        %v1641 = vadd.f32 %v1320, %v1640
        %1642 = vadd.xlane.f32.xlu0 %v1641
        %v1643 = vpop.xlane.xlu0 %1642
        %v1644 = vsel %vm544, %v1323, 0.0
        %v1645 = vadd.f32 %v1322, %v1644
        %1646 = vadd.xlane.f32.xlu0 %v1645
        %v1647 = vpop.xlane.xlu0 %1646
        %v1648 = vsel %vm544, %v1325, 0.0
        %v1649 = vadd.f32 %v1324, %v1648
        %1650 = vadd.xlane.f32.xlu0 %v1649
        %v1651 = vpop.xlane.xlu0 %1650
        %v1652 = vsel %vm544, %v1327, 0.0
        %v1653 = vadd.f32 %v1326, %v1652
        %1654 = vadd.xlane.f32.xlu0 %v1653
        %v1655 = vpop.xlane.xlu0 %1654
        %v1656 = vsel %vm544, %v1329, 0.0
        %v1657 = vadd.f32 %v1328, %v1656
        %1658 = vadd.xlane.f32.xlu0 %v1657
        %v1659 = vpop.xlane.xlu0 %1658
        %v1660 = vsel %vm544, %v1331, 0.0
        %v1661 = vadd.f32 %v1330, %v1660
        %1662 = vadd.xlane.f32.xlu0 %v1661
        %v1663 = vpop.xlane.xlu0 %1662
        %v1664 = vsel %vm544, %v1333, 0.0
        %v1665 = vadd.f32 %v1332, %v1664
        %1666 = vadd.xlane.f32.xlu0 %v1665
        %v1667 = vpop.xlane.xlu0 %1666
        %v1668 = vsel %vm544, %v1335, 0.0
        %v1669 = vadd.f32 %v1334, %v1668
        %1670 = vadd.xlane.f32.xlu0 %v1669
        %v1671 = vpop.xlane.xlu0 %1670
        %v1672 = vsel %vm544, %v1337, 0.0
        %v1673 = vadd.f32 %v1336, %v1672
        %1674 = vadd.xlane.f32.xlu0 %v1673
        %v1675 = vpop.xlane.xlu0 %1674
        %v1676 = vsel %vm544, %v1339, 0.0
        %v1677 = vadd.f32 %v1338, %v1676
        %1678 = vadd.xlane.f32.xlu0 %v1677
        %v1679 = vpop.xlane.xlu0 %1678
        %v1680 = vsel %vm544, %v1341, 0.0
        %v1681 = vadd.f32 %v1340, %v1680
        %1682 = vadd.xlane.f32.xlu0 %v1681
        %v1683 = vpop.xlane.xlu0 %1682
        %v1684 = vsel %vm544, %v1343, 0.0
        %v1685 = vadd.f32 %v1342, %v1684
        %1686 = vadd.xlane.f32.xlu0 %v1685
        %v1687 = vpop.xlane.xlu0 %1686
        %v1688 = vsel %vm544, %v1345, 0.0
        %v1689 = vadd.f32 %v1344, %v1688
        %1690 = vadd.xlane.f32.xlu0 %v1689
        %v1691 = vpop.xlane.xlu0 %1690
        %v1692 = vsel %vm544, %v1347, 0.0
        %v1693 = vadd.f32 %v1346, %v1692
        %1694 = vadd.xlane.f32.xlu0 %v1693
        %v1695 = vpop.xlane.xlu0 %1694
        %v1696 = vsel %vm544, %v1349, 0.0
        %v1697 = vadd.f32 %v1348, %v1696
        %1698 = vadd.xlane.f32.xlu0 %v1697
        %v1699 = vpop.xlane.xlu0 %1698
        %v1700 = vsel %vm544, %v1351, 0.0
        %v1701 = vadd.f32 %v1350, %v1700
        %1702 = vadd.xlane.f32.xlu0 %v1701
        %v1703 = vpop.xlane.xlu0 %1702
        %v1704 = vsel %vm544, %v1353, 0.0
        %v1705 = vadd.f32 %v1352, %v1704
        %1706 = vadd.xlane.f32.xlu0 %v1705
        %v1707 = vpop.xlane.xlu0 %1706
        %v1708 = vsel %vm544, %v1355, 0.0
        %v1709 = vadd.f32 %v1354, %v1708
        %1710 = vadd.xlane.f32.xlu0 %v1709
        %v1711 = vpop.xlane.xlu0 %1710
        %v1712 = vsel %vm544, %v1357, 0.0
        %v1713 = vadd.f32 %v1356, %v1712
        %1714 = vadd.xlane.f32.xlu0 %v1713
        %v1715 = vpop.xlane.xlu0 %1714
        %v1716 = vsel %vm544, %v1359, 0.0
        %v1717 = vadd.f32 %v1358, %v1716
        %1718 = vadd.xlane.f32.xlu0 %v1717
        %v1719 = vpop.xlane.xlu0 %1718
        %v1720 = vsel %vm544, %v1361, 0.0
        %v1721 = vadd.f32 %v1360, %v1720
        %1722 = vadd.xlane.f32.xlu0 %v1721
        %v1723 = vpop.xlane.xlu0 %1722
        %v1724 = vsel %vm544, %v1363, 0.0
        %v1725 = vadd.f32 %v1362, %v1724
        %1726 = vadd.xlane.f32.xlu0 %v1725
        %v1727 = vpop.xlane.xlu0 %1726
        %v1728 = vmul.f32 %v1367, 0.0051020407
        %v1729 = vmul.f32 %v1371, 0.0051020407
        %v1730 = vmul.f32 %v1375, 0.0051020407
        %v1731 = vmul.f32 %v1379, 0.0051020407
        %v1732 = vmul.f32 %v1383, 0.0051020407
        %v1733 = vmul.f32 %v1387, 0.0051020407
        %v1734 = vmul.f32 %v1391, 0.0051020407
        %v1735 = vmul.f32 %v1395, 0.0051020407
        %v1736 = vmul.f32 %v1399, 0.0051020407
        %v1737 = vmul.f32 %v1403, 0.0051020407
        %v1738 = vmul.f32 %v1407, 0.0051020407
        %v1739 = vmul.f32 %v1411, 0.0051020407
        %v1740 = vmul.f32 %v1415, 0.0051020407
        %v1741 = vmul.f32 %v1419, 0.0051020407
        %v1742 = vmul.f32 %v1423, 0.0051020407
        %v1743 = vmul.f32 %v1427, 0.0051020407
        %v1744 = vmul.f32 %v1431, 0.0051020407
        %v1745 = vmul.f32 %v1435, 0.0051020407
        %v1746 = vmul.f32 %v1439, 0.0051020407
        %v1747 = vmul.f32 %v1443, 0.0051020407
        %v1748 = vmul.f32 %v1447, 0.0051020407
        %v1749 = vmul.f32 %v1451, 0.0051020407
        %v1750 = vmul.f32 %v1455, 0.0051020407
        %v1751 = vmul.f32 %v1459, 0.0051020407
        %v1752 = vmul.f32 %v1463, 0.0051020407
        %v1753 = vmul.f32 %v1467, 0.0051020407
        %v1754 = vmul.f32 %v1471, 0.0051020407
        %v1755 = vmul.f32 %v1475, 0.0051020407
        %v1756 = vmul.f32 %v1479, 0.0051020407
        %v1757 = vmul.f32 %v1483, 0.0051020407
        %v1758 = vmul.f32 %v1487, 0.0051020407
        %v1759 = vmul.f32 %v1491, 0.0051020407
        %v1760 = vmul.f32 %v1495, 0.0051020407
        %v1761 = vmul.f32 %v1499, 0.0051020407
        %v1762 = vmul.f32 %v1503, 0.0051020407
        %v1763 = vmul.f32 %v1507, 0.0051020407
        %v1764 = vmul.f32 %v1511, 0.0051020407
        %v1765 = vmul.f32 %v1515, 0.0051020407
        %v1766 = vmul.f32 %v1519, 0.0051020407
        %v1767 = vmul.f32 %v1523, 0.0051020407
        %v1768 = vmul.f32 %v1527, 0.0051020407
        %v1769 = vmul.f32 %v1531, 0.0051020407
        %v1770 = vmul.f32 %v1535, 0.0051020407
        %v1771 = vmul.f32 %v1539, 0.0051020407
        %v1772 = vmul.f32 %v1543, 0.0051020407
        %v1773 = vmul.f32 %v1547, 0.0051020407
        %v1774 = vmul.f32 %v1551, 0.0051020407
        %v1775 = vmul.f32 %v1555, 0.0051020407
        %v1776 = vmul.f32 %v1559, 0.0051020407
        %v1777 = vmul.f32 %v1563, 0.0051020407
        %v1778 = vmul.f32 %v1567, 0.0051020407
        %v1779 = vmul.f32 %v1571, 0.0051020407
        %v1780 = vmul.f32 %v1575, 0.0051020407
        %v1781 = vmul.f32 %v1579, 0.0051020407
        %v1782 = vmul.f32 %v1583, 0.0051020407
        %v1783 = vmul.f32 %v1587, 0.0051020407
        %v1784 = vmul.f32 %v1591, 0.0051020407
        %v1785 = vmul.f32 %v1595, 0.0051020407
        %v1786 = vmul.f32 %v1599, 0.0051020407
        %v1787 = vmul.f32 %v1603, 0.0051020407
        %v1788 = vmul.f32 %v1607, 0.0051020407
        %v1789 = vmul.f32 %v1611, 0.0051020407
        %v1790 = vmul.f32 %v1615, 0.0051020407
        %v1791 = vmul.f32 %v1619, 0.0051020407
        %v1792 = vmul.f32 %v1623, 0.0051020407
        %v1793 = vmul.f32 %v1627, 0.0051020407
        %v1794 = vmul.f32 %v1631, 0.0051020407
        %v1795 = vmul.f32 %v1635, 0.0051020407
        %v1796 = vmul.f32 %v1639, 0.0051020407
        %v1797 = vmul.f32 %v1643, 0.0051020407
        %v1798 = vmul.f32 %v1647, 0.0051020407
        %v1799 = vmul.f32 %v1651, 0.0051020407
        %v1800 = vmul.f32 %v1655, 0.0051020407
        %v1801 = vmul.f32 %v1659, 0.0051020407
        %v1802 = vmul.f32 %v1663, 0.0051020407
        %v1803 = vmul.f32 %v1667, 0.0051020407
        %v1804 = vmul.f32 %v1671, 0.0051020407
        %v1805 = vmul.f32 %v1675, 0.0051020407
        %v1806 = vmul.f32 %v1679, 0.0051020407
        %v1807 = vmul.f32 %v1683, 0.0051020407
        %v1808 = vmul.f32 %v1687, 0.0051020407
        %v1809 = vmul.f32 %v1691, 0.0051020407
        %v1810 = vmul.f32 %v1695, 0.0051020407
        %v1811 = vmul.f32 %v1699, 0.0051020407
        %v1812 = vmul.f32 %v1703, 0.0051020407
        %v1813 = vmul.f32 %v1707, 0.0051020407
        %v1814 = vmul.f32 %v1711, 0.0051020407
        %v1815 = vmul.f32 %v1715, 0.0051020407
        %v1816 = vmul.f32 %v1719, 0.0051020407
        %v1817 = vmul.f32 %v1723, 0.0051020407
        %v1818 = vmul.f32 %v1727, 0.0051020407
        %v1819 = vld [vmem:[%s326] sm:$0xff]
        %v1820 = vld [vmem:[%s326 + $0x8] sm:$0xff]
        %v1821 = vld [vmem:[%s326 + $0x10] sm:$0xff]
        %v1822 = vld [vmem:[%s326 + $0x18] sm:$0xff]
        %v1823 = vld [vmem:[%s326 + $0x20] sm:$0xff]
        %v1824 = vld [vmem:[%s326 + $0x28] sm:$0xff]
        %v1825 = vld [vmem:[%s326 + $0x30] sm:$0xff]
        %v1826 = vld [vmem:[%s326 + $0x38] sm:$0xff]
        %v1827 = vld [vmem:[%s326 + $0x40] sm:$0xff]
        %v1828 = vld [vmem:[%s326 + $0x48] sm:$0xff]
        %v1829 = vld [vmem:[%s326 + $0x50] sm:$0xff]
        %v1830 = vld [vmem:[%s326 + $0x58] sm:$0xff]
        %v1831 = vld [vmem:[%s326 + $0x60] sm:$0xff]
        %v1832 = vld [vmem:[%s326 + $0x68] sm:$0xff]
        %v1833 = vld [vmem:[%s326 + $0x70] sm:$0xff]
        %v1834 = vld [vmem:[%s326 + $0x78] sm:$0xff]
        %v1835 = vld [vmem:[%s326 + $0x80] sm:$0xff]
        %v1836 = vld [vmem:[%s326 + $0x88] sm:$0xff]
        %v1837 = vld [vmem:[%s326 + $0x90] sm:$0xff]
        %v1838 = vld [vmem:[%s326 + $0x98] sm:$0xff]
        %v1839 = vld [vmem:[%s326 + $0xa0] sm:$0xff]
        %v1840 = vld [vmem:[%s326 + $0xa8] sm:$0xff]
        %v1841 = vld [vmem:[%s326 + $0xb0] sm:$0xff]
        %v1842 = vld [vmem:[%s326 + $0xb8] sm:$0xff]
        %v1843 = vld [vmem:[%s326 + $0xc0] sm:$0xff]
        %v1844 = vld [vmem:[%s326 + $0xc8] sm:$0xff]
        %v1845 = vld [vmem:[%s326 + $0xd0] sm:$0xff]
        %v1846 = vld [vmem:[%s326 + $0xd8] sm:$0xff]
        %v1847 = vld [vmem:[%s326 + $0xe0] sm:$0xff]
        %v1848 = vld [vmem:[%s326 + $0xe8] sm:$0xff]
        %v1849 = vld [vmem:[%s326 + $0xf0] sm:$0xff]
        %v1850 = vld [vmem:[%s326 + $0xf8] sm:$0xff]
        %v1851 = vld [vmem:[%s326 + $0x100] sm:$0xff]
        %v1852 = vld [vmem:[%s326 + $0x108] sm:$0xff]
        %v1853 = vld [vmem:[%s326 + $0x110] sm:$0xff]
        %v1854 = vld [vmem:[%s326 + $0x118] sm:$0xff]
        %v1855 = vld [vmem:[%s326 + $0x120] sm:$0xff]
        %v1856 = vld [vmem:[%s326 + $0x128] sm:$0xff]
        %v1857 = vld [vmem:[%s326 + $0x130] sm:$0xff]
        %v1858 = vld [vmem:[%s326 + $0x138] sm:$0xff]
        %v1859 = vld [vmem:[%s326 + $0x140] sm:$0xff]
        %v1860 = vld [vmem:[%s326 + $0x148] sm:$0xff]
        %v1861 = vld [vmem:[%s326 + $0x150] sm:$0xff]
        %v1862 = vld [vmem:[%s326 + $0x158] sm:$0xff]
        %v1863 = vld [vmem:[%s326 + $0x160] sm:$0xff]
        %v1864 = vld [vmem:[%s326 + $0x168] sm:$0xff]
        %v1865 = vld [vmem:[%s326 + $0x170] sm:$0xff]
        %v1866 = vld [vmem:[%s326 + $0x178] sm:$0xff]
        %v1867 = vld [vmem:[%s326 + $0x180] sm:$0xff]
        %v1868 = vld [vmem:[%s326 + $0x188] sm:$0xff]
        %v1869 = vld [vmem:[%s326 + $0x190] sm:$0xff]
        %v1870 = vld [vmem:[%s326 + $0x198] sm:$0xff]
        %v1871 = vld [vmem:[%s326 + $0x1a0] sm:$0xff]
        %v1872 = vld [vmem:[%s326 + $0x1a8] sm:$0xff]
        %v1873 = vld [vmem:[%s326 + $0x1b0] sm:$0xff]
        %v1874 = vld [vmem:[%s326 + $0x1b8] sm:$0xff]
        %v1875 = vld [vmem:[%s326 + $0x1c0] sm:$0xff]
        %v1876 = vld [vmem:[%s326 + $0x1c8] sm:$0xff]
        %v1877 = vld [vmem:[%s326 + $0x1d0] sm:$0xff]
        %v1878 = vld [vmem:[%s326 + $0x1d8] sm:$0xff]
        %v1879 = vld [vmem:[%s326 + $0x1e0] sm:$0xff]
        %v1880 = vld [vmem:[%s326 + $0x1e8] sm:$0xff]
        %v1881 = vld [vmem:[%s326 + $0x1f0] sm:$0xff]
        %v1882 = vld [vmem:[%s326 + $0x1f8] sm:$0xff]
        %v1883 = vld [vmem:[%s326 + $0x200] sm:$0xff]
        %v1884 = vld [vmem:[%s326 + $0x208] sm:$0xff]
        %v1885 = vld [vmem:[%s326 + $0x210] sm:$0xff]
        %v1886 = vld [vmem:[%s326 + $0x218] sm:$0xff]
        %v1887 = vld [vmem:[%s326 + $0x220] sm:$0xff]
        %v1888 = vld [vmem:[%s326 + $0x228] sm:$0xff]
        %v1889 = vld [vmem:[%s326 + $0x230] sm:$0xff]
        %v1890 = vld [vmem:[%s326 + $0x238] sm:$0xff]
        %v1891 = vld [vmem:[%s326 + $0x240] sm:$0xff]
        %v1892 = vld [vmem:[%s326 + $0x248] sm:$0xff]
        %v1893 = vld [vmem:[%s326 + $0x250] sm:$0xff]
        %v1894 = vld [vmem:[%s326 + $0x258] sm:$0xff]
        %v1895 = vld [vmem:[%s326 + $0x260] sm:$0xff]
        %v1896 = vld [vmem:[%s326 + $0x268] sm:$0xff]
        %v1897 = vld [vmem:[%s326 + $0x270] sm:$0xff]
        %v1898 = vld [vmem:[%s326 + $0x278] sm:$0xff]
        %v1899 = vld [vmem:[%s326 + $0x280] sm:$0xff]
        %v1900 = vld [vmem:[%s326 + $0x288] sm:$0xff]
        %v1901 = vld [vmem:[%s326 + $0x290] sm:$0xff]
        %v1902 = vld [vmem:[%s326 + $0x298] sm:$0xff]
        %v1903 = vld [vmem:[%s326 + $0x2a0] sm:$0xff]
        %v1904 = vld [vmem:[%s326 + $0x2a8] sm:$0xff]
        %v1905 = vld [vmem:[%s326 + $0x2b0] sm:$0xff]
        %v1906 = vld [vmem:[%s326 + $0x2b8] sm:$0xff]
        %v1907 = vld [vmem:[%s326 + $0x2c0] sm:$0xff]
        %v1908 = vld [vmem:[%s326 + $0x2c8] sm:$0xff]
        %v1909 = vld [vmem:[%s326 + $0x2d0] sm:$0xff]
        %v1910 = vadd.f32 %v1728, 1e-05
        %v1911 = vadd.f32 %v1729, 1e-05
        %v1912 = vadd.f32 %v1730, 1e-05
        %v1913 = vadd.f32 %v1731, 1e-05
        %v1914 = vadd.f32 %v1732, 1e-05
        %v1915 = vadd.f32 %v1733, 1e-05
        %v1916 = vadd.f32 %v1734, 1e-05
        %v1917 = vadd.f32 %v1735, 1e-05
        %v1918 = vadd.f32 %v1736, 1e-05
        %v1919 = vadd.f32 %v1737, 1e-05
        %v1920 = vadd.f32 %v1738, 1e-05
        %v1921 = vadd.f32 %v1739, 1e-05
        %v1922 = vadd.f32 %v1740, 1e-05
        %v1923 = vadd.f32 %v1741, 1e-05
        %v1924 = vadd.f32 %v1742, 1e-05
        %v1925 = vadd.f32 %v1743, 1e-05
        %v1926 = vadd.f32 %v1744, 1e-05
        %v1927 = vadd.f32 %v1745, 1e-05
        %v1928 = vadd.f32 %v1746, 1e-05
        %v1929 = vadd.f32 %v1747, 1e-05
        %v1930 = vadd.f32 %v1748, 1e-05
        %v1931 = vadd.f32 %v1749, 1e-05
        %v1932 = vadd.f32 %v1750, 1e-05
        %v1933 = vadd.f32 %v1751, 1e-05
        %v1934 = vadd.f32 %v1752, 1e-05
        %v1935 = vadd.f32 %v1753, 1e-05
        %v1936 = vadd.f32 %v1754, 1e-05
        %v1937 = vadd.f32 %v1755, 1e-05
        %v1938 = vadd.f32 %v1756, 1e-05
        %v1939 = vadd.f32 %v1757, 1e-05
        %v1940 = vadd.f32 %v1758, 1e-05
        %v1941 = vadd.f32 %v1759, 1e-05
        %v1942 = vadd.f32 %v1760, 1e-05
        %v1943 = vadd.f32 %v1761, 1e-05
        %v1944 = vadd.f32 %v1762, 1e-05
        %v1945 = vadd.f32 %v1763, 1e-05
        %v1946 = vadd.f32 %v1764, 1e-05
        %v1947 = vadd.f32 %v1765, 1e-05
        %v1948 = vadd.f32 %v1766, 1e-05
        %v1949 = vadd.f32 %v1767, 1e-05
        %v1950 = vadd.f32 %v1768, 1e-05
        %v1951 = vadd.f32 %v1769, 1e-05
        %v1952 = vadd.f32 %v1770, 1e-05
        %v1953 = vadd.f32 %v1771, 1e-05
        %v1954 = vadd.f32 %v1772, 1e-05
        %v1955 = vadd.f32 %v1773, 1e-05
        %v1956 = vadd.f32 %v1774, 1e-05
        %v1957 = vadd.f32 %v1775, 1e-05
        %v1958 = vadd.f32 %v1776, 1e-05
        %v1959 = vadd.f32 %v1777, 1e-05
        %v1960 = vadd.f32 %v1778, 1e-05
        %v1961 = vadd.f32 %v1779, 1e-05
        %v1962 = vadd.f32 %v1780, 1e-05
        %v1963 = vadd.f32 %v1781, 1e-05
        %v1964 = vadd.f32 %v1782, 1e-05
        %v1965 = vadd.f32 %v1783, 1e-05
        %v1966 = vadd.f32 %v1784, 1e-05
        %v1967 = vadd.f32 %v1785, 1e-05
        %v1968 = vadd.f32 %v1786, 1e-05
        %v1969 = vadd.f32 %v1787, 1e-05
        %v1970 = vadd.f32 %v1788, 1e-05
        %v1971 = vadd.f32 %v1789, 1e-05
        %v1972 = vadd.f32 %v1790, 1e-05
        %v1973 = vadd.f32 %v1791, 1e-05
        %v1974 = vadd.f32 %v1792, 1e-05
        %v1975 = vadd.f32 %v1793, 1e-05
        %v1976 = vadd.f32 %v1794, 1e-05
        %v1977 = vadd.f32 %v1795, 1e-05
        %v1978 = vadd.f32 %v1796, 1e-05
        %v1979 = vadd.f32 %v1797, 1e-05
        %v1980 = vadd.f32 %v1798, 1e-05
        %v1981 = vadd.f32 %v1799, 1e-05
        %v1982 = vadd.f32 %v1800, 1e-05
        %v1983 = vadd.f32 %v1801, 1e-05
        %v1984 = vadd.f32 %v1802, 1e-05
        %v1985 = vadd.f32 %v1803, 1e-05
        %v1986 = vadd.f32 %v1804, 1e-05
        %v1987 = vadd.f32 %v1805, 1e-05
        %v1988 = vadd.f32 %v1806, 1e-05
        %v1989 = vadd.f32 %v1807, 1e-05
        %v1990 = vadd.f32 %v1808, 1e-05
        %v1991 = vadd.f32 %v1809, 1e-05
        %v1992 = vadd.f32 %v1810, 1e-05
        %v1993 = vadd.f32 %v1811, 1e-05
        %v1994 = vadd.f32 %v1812, 1e-05
        %v1995 = vadd.f32 %v1813, 1e-05
        %v1996 = vadd.f32 %v1814, 1e-05
        %v1997 = vadd.f32 %v1815, 1e-05
        %v1998 = vadd.f32 %v1816, 1e-05
        %v1999 = vadd.f32 %v1817, 1e-05
        %v2000 = vadd.f32 %v1818, 1e-05
        %v2001 = vrsqrt.pop %v1910
        %v2002 = vmul.f32 %v2001, %v1910
        %v2003 = vmul.f32 %v2002, %v2001
        %v2004 = vmul.f32 0.5, %v2003
        %v2005 = vsub.f32 1.5, %v2004
        %v2006 = vmul.f32 %v2001, %v2005
        %vm2007 = vweird.f32 %v1910
        %vm2008 = vweird.f32 %v2001
        %vm2009 = vmor %vm2007, %vm2008
        %v2010 = vsel %vm2009, %v2001, %v2006
        %v2011 = vrsqrt.pop %v1911
        %v2012 = vmul.f32 %v2011, %v1911
        %v2013 = vmul.f32 %v2012, %v2011
        %v2014 = vmul.f32 0.5, %v2013
        %v2015 = vsub.f32 1.5, %v2014
        %v2016 = vmul.f32 %v2011, %v2015
        %vm2017 = vweird.f32 %v1911
        %vm2018 = vweird.f32 %v2011
        %vm2019 = vmor %vm2017, %vm2018
        %v2020 = vsel %vm2019, %v2011, %v2016
        %v2021 = vrsqrt.pop %v1912
        %v2022 = vmul.f32 %v2021, %v1912
        %v2023 = vmul.f32 %v2022, %v2021
        %v2024 = vmul.f32 0.5, %v2023
        %v2025 = vsub.f32 1.5, %v2024
        %v2026 = vmul.f32 %v2021, %v2025
        %vm2027 = vweird.f32 %v1912
        %vm2028 = vweird.f32 %v2021
        %vm2029 = vmor %vm2027, %vm2028
        %v2030 = vsel %vm2029, %v2021, %v2026
        %v2031 = vrsqrt.pop %v1913
        %v2032 = vmul.f32 %v2031, %v1913
        %v2033 = vmul.f32 %v2032, %v2031
        %v2034 = vmul.f32 0.5, %v2033
        %v2035 = vsub.f32 1.5, %v2034
        %v2036 = vmul.f32 %v2031, %v2035
        %vm2037 = vweird.f32 %v1913
        %vm2038 = vweird.f32 %v2031
        %vm2039 = vmor %vm2037, %vm2038
        %v2040 = vsel %vm2039, %v2031, %v2036
        %v2041 = vrsqrt.pop %v1914
        %v2042 = vmul.f32 %v2041, %v1914
        %v2043 = vmul.f32 %v2042, %v2041
        %v2044 = vmul.f32 0.5, %v2043
        %v2045 = vsub.f32 1.5, %v2044
        %v2046 = vmul.f32 %v2041, %v2045
        %vm2047 = vweird.f32 %v1914
        %vm2048 = vweird.f32 %v2041
        %vm2049 = vmor %vm2047, %vm2048
        %v2050 = vsel %vm2049, %v2041, %v2046
        %v2051 = vrsqrt.pop %v1915
        %v2052 = vmul.f32 %v2051, %v1915
        %v2053 = vmul.f32 %v2052, %v2051
        %v2054 = vmul.f32 0.5, %v2053
        %v2055 = vsub.f32 1.5, %v2054
        %v2056 = vmul.f32 %v2051, %v2055
        %vm2057 = vweird.f32 %v1915
        %vm2058 = vweird.f32 %v2051
        %vm2059 = vmor %vm2057, %vm2058
        %v2060 = vsel %vm2059, %v2051, %v2056
        %v2061 = vrsqrt.pop %v1916
        %v2062 = vmul.f32 %v2061, %v1916
        %v2063 = vmul.f32 %v2062, %v2061
        %v2064 = vmul.f32 0.5, %v2063
        %v2065 = vsub.f32 1.5, %v2064
        %v2066 = vmul.f32 %v2061, %v2065
        %vm2067 = vweird.f32 %v1916
        %vm2068 = vweird.f32 %v2061
        %vm2069 = vmor %vm2067, %vm2068
        %v2070 = vsel %vm2069, %v2061, %v2066
        %v2071 = vrsqrt.pop %v1917
        %v2072 = vmul.f32 %v2071, %v1917
        %v2073 = vmul.f32 %v2072, %v2071
        %v2074 = vmul.f32 0.5, %v2073
        %v2075 = vsub.f32 1.5, %v2074
        %v2076 = vmul.f32 %v2071, %v2075
        %vm2077 = vweird.f32 %v1917
        %vm2078 = vweird.f32 %v2071
        %vm2079 = vmor %vm2077, %vm2078
        %v2080 = vsel %vm2079, %v2071, %v2076
        %v2081 = vrsqrt.pop %v1918
        %v2082 = vmul.f32 %v2081, %v1918
        %v2083 = vmul.f32 %v2082, %v2081
        %v2084 = vmul.f32 0.5, %v2083
        %v2085 = vsub.f32 1.5, %v2084
        %v2086 = vmul.f32 %v2081, %v2085
        %vm2087 = vweird.f32 %v1918
        %vm2088 = vweird.f32 %v2081
        %vm2089 = vmor %vm2087, %vm2088
        %v2090 = vsel %vm2089, %v2081, %v2086
        %v2091 = vrsqrt.pop %v1919
        %v2092 = vmul.f32 %v2091, %v1919
        %v2093 = vmul.f32 %v2092, %v2091
        %v2094 = vmul.f32 0.5, %v2093
        %v2095 = vsub.f32 1.5, %v2094
        %v2096 = vmul.f32 %v2091, %v2095
        %vm2097 = vweird.f32 %v1919
        %vm2098 = vweird.f32 %v2091
        %vm2099 = vmor %vm2097, %vm2098
        %v2100 = vsel %vm2099, %v2091, %v2096
        %v2101 = vrsqrt.pop %v1920
        %v2102 = vmul.f32 %v2101, %v1920
        %v2103 = vmul.f32 %v2102, %v2101
        %v2104 = vmul.f32 0.5, %v2103
        %v2105 = vsub.f32 1.5, %v2104
        %v2106 = vmul.f32 %v2101, %v2105
        %vm2107 = vweird.f32 %v1920
        %vm2108 = vweird.f32 %v2101
        %vm2109 = vmor %vm2107, %vm2108
        %v2110 = vsel %vm2109, %v2101, %v2106
        %v2111 = vrsqrt.pop %v1921
        %v2112 = vmul.f32 %v2111, %v1921
        %v2113 = vmul.f32 %v2112, %v2111
        %v2114 = vmul.f32 0.5, %v2113
        %v2115 = vsub.f32 1.5, %v2114
        %v2116 = vmul.f32 %v2111, %v2115
        %vm2117 = vweird.f32 %v1921
        %vm2118 = vweird.f32 %v2111
        %vm2119 = vmor %vm2117, %vm2118
        %v2120 = vsel %vm2119, %v2111, %v2116
        %v2121 = vrsqrt.pop %v1922
        %v2122 = vmul.f32 %v2121, %v1922
        %v2123 = vmul.f32 %v2122, %v2121
        %v2124 = vmul.f32 0.5, %v2123
        %v2125 = vsub.f32 1.5, %v2124
        %v2126 = vmul.f32 %v2121, %v2125
        %vm2127 = vweird.f32 %v1922
        %vm2128 = vweird.f32 %v2121
        %vm2129 = vmor %vm2127, %vm2128
        %v2130 = vsel %vm2129, %v2121, %v2126
        %v2131 = vrsqrt.pop %v1923
        %v2132 = vmul.f32 %v2131, %v1923
        %v2133 = vmul.f32 %v2132, %v2131
        %v2134 = vmul.f32 0.5, %v2133
        %v2135 = vsub.f32 1.5, %v2134
        %v2136 = vmul.f32 %v2131, %v2135
        %vm2137 = vweird.f32 %v1923
        %vm2138 = vweird.f32 %v2131
        %vm2139 = vmor %vm2137, %vm2138
        %v2140 = vsel %vm2139, %v2131, %v2136
        %v2141 = vrsqrt.pop %v1924
        %v2142 = vmul.f32 %v2141, %v1924
        %v2143 = vmul.f32 %v2142, %v2141
        %v2144 = vmul.f32 0.5, %v2143
        %v2145 = vsub.f32 1.5, %v2144
        %v2146 = vmul.f32 %v2141, %v2145
        %vm2147 = vweird.f32 %v1924
        %vm2148 = vweird.f32 %v2141
        %vm2149 = vmor %vm2147, %vm2148
        %v2150 = vsel %vm2149, %v2141, %v2146
        %v2151 = vrsqrt.pop %v1925
        %v2152 = vmul.f32 %v2151, %v1925
        %v2153 = vmul.f32 %v2152, %v2151
        %v2154 = vmul.f32 0.5, %v2153
        %v2155 = vsub.f32 1.5, %v2154
        %v2156 = vmul.f32 %v2151, %v2155
        %vm2157 = vweird.f32 %v1925
        %vm2158 = vweird.f32 %v2151
        %vm2159 = vmor %vm2157, %vm2158
        %v2160 = vsel %vm2159, %v2151, %v2156
        %v2161 = vrsqrt.pop %v1926
        %v2162 = vmul.f32 %v2161, %v1926
        %v2163 = vmul.f32 %v2162, %v2161
        %v2164 = vmul.f32 0.5, %v2163
        %v2165 = vsub.f32 1.5, %v2164
        %v2166 = vmul.f32 %v2161, %v2165
        %vm2167 = vweird.f32 %v1926
        %vm2168 = vweird.f32 %v2161
        %vm2169 = vmor %vm2167, %vm2168
        %v2170 = vsel %vm2169, %v2161, %v2166
        %v2171 = vrsqrt.pop %v1927
        %v2172 = vmul.f32 %v2171, %v1927
        %v2173 = vmul.f32 %v2172, %v2171
        %v2174 = vmul.f32 0.5, %v2173
        %v2175 = vsub.f32 1.5, %v2174
        %v2176 = vmul.f32 %v2171, %v2175
        %vm2177 = vweird.f32 %v1927
        %vm2178 = vweird.f32 %v2171
        %vm2179 = vmor %vm2177, %vm2178
        %v2180 = vsel %vm2179, %v2171, %v2176
        %v2181 = vrsqrt.pop %v1928
        %v2182 = vmul.f32 %v2181, %v1928
        %v2183 = vmul.f32 %v2182, %v2181
        %v2184 = vmul.f32 0.5, %v2183
        %v2185 = vsub.f32 1.5, %v2184
        %v2186 = vmul.f32 %v2181, %v2185
        %vm2187 = vweird.f32 %v1928
        %vm2188 = vweird.f32 %v2181
        %vm2189 = vmor %vm2187, %vm2188
        %v2190 = vsel %vm2189, %v2181, %v2186
        %v2191 = vrsqrt.pop %v1929
        %v2192 = vmul.f32 %v2191, %v1929
        %v2193 = vmul.f32 %v2192, %v2191
        %v2194 = vmul.f32 0.5, %v2193
        %v2195 = vsub.f32 1.5, %v2194
        %v2196 = vmul.f32 %v2191, %v2195
        %vm2197 = vweird.f32 %v1929
        %vm2198 = vweird.f32 %v2191
        %vm2199 = vmor %vm2197, %vm2198
        %v2200 = vsel %vm2199, %v2191, %v2196
        %v2201 = vrsqrt.pop %v1930
        %v2202 = vmul.f32 %v2201, %v1930
        %v2203 = vmul.f32 %v2202, %v2201
        %v2204 = vmul.f32 0.5, %v2203
        %v2205 = vsub.f32 1.5, %v2204
        %v2206 = vmul.f32 %v2201, %v2205
        %vm2207 = vweird.f32 %v1930
        %vm2208 = vweird.f32 %v2201
        %vm2209 = vmor %vm2207, %vm2208
        %v2210 = vsel %vm2209, %v2201, %v2206
        %v2211 = vrsqrt.pop %v1931
        %v2212 = vmul.f32 %v2211, %v1931
        %v2213 = vmul.f32 %v2212, %v2211
        %v2214 = vmul.f32 0.5, %v2213
        %v2215 = vsub.f32 1.5, %v2214
        %v2216 = vmul.f32 %v2211, %v2215
        %vm2217 = vweird.f32 %v1931
        %vm2218 = vweird.f32 %v2211
        %vm2219 = vmor %vm2217, %vm2218
        %v2220 = vsel %vm2219, %v2211, %v2216
        %v2221 = vrsqrt.pop %v1932
        %v2222 = vmul.f32 %v2221, %v1932
        %v2223 = vmul.f32 %v2222, %v2221
        %v2224 = vmul.f32 0.5, %v2223
        %v2225 = vsub.f32 1.5, %v2224
        %v2226 = vmul.f32 %v2221, %v2225
        %vm2227 = vweird.f32 %v1932
        %vm2228 = vweird.f32 %v2221
        %vm2229 = vmor %vm2227, %vm2228
        %v2230 = vsel %vm2229, %v2221, %v2226
        %v2231 = vrsqrt.pop %v1933
        %v2232 = vmul.f32 %v2231, %v1933
        %v2233 = vmul.f32 %v2232, %v2231
        %v2234 = vmul.f32 0.5, %v2233
        %v2235 = vsub.f32 1.5, %v2234
        %v2236 = vmul.f32 %v2231, %v2235
        %vm2237 = vweird.f32 %v1933
        %vm2238 = vweird.f32 %v2231
        %vm2239 = vmor %vm2237, %vm2238
        %v2240 = vsel %vm2239, %v2231, %v2236
        %v2241 = vrsqrt.pop %v1934
        %v2242 = vmul.f32 %v2241, %v1934
        %v2243 = vmul.f32 %v2242, %v2241
        %v2244 = vmul.f32 0.5, %v2243
        %v2245 = vsub.f32 1.5, %v2244
        %v2246 = vmul.f32 %v2241, %v2245
        %vm2247 = vweird.f32 %v1934
        %vm2248 = vweird.f32 %v2241
        %vm2249 = vmor %vm2247, %vm2248
        %v2250 = vsel %vm2249, %v2241, %v2246
        %v2251 = vrsqrt.pop %v1935
        %v2252 = vmul.f32 %v2251, %v1935
        %v2253 = vmul.f32 %v2252, %v2251
        %v2254 = vmul.f32 0.5, %v2253
        %v2255 = vsub.f32 1.5, %v2254
        %v2256 = vmul.f32 %v2251, %v2255
        %vm2257 = vweird.f32 %v1935
        %vm2258 = vweird.f32 %v2251
        %vm2259 = vmor %vm2257, %vm2258
        %v2260 = vsel %vm2259, %v2251, %v2256
        %v2261 = vrsqrt.pop %v1936
        %v2262 = vmul.f32 %v2261, %v1936
        %v2263 = vmul.f32 %v2262, %v2261
        %v2264 = vmul.f32 0.5, %v2263
        %v2265 = vsub.f32 1.5, %v2264
        %v2266 = vmul.f32 %v2261, %v2265
        %vm2267 = vweird.f32 %v1936
        %vm2268 = vweird.f32 %v2261
        %vm2269 = vmor %vm2267, %vm2268
        %v2270 = vsel %vm2269, %v2261, %v2266
        %v2271 = vrsqrt.pop %v1937
        %v2272 = vmul.f32 %v2271, %v1937
        %v2273 = vmul.f32 %v2272, %v2271
        %v2274 = vmul.f32 0.5, %v2273
        %v2275 = vsub.f32 1.5, %v2274
        %v2276 = vmul.f32 %v2271, %v2275
        %vm2277 = vweird.f32 %v1937
        %vm2278 = vweird.f32 %v2271
        %vm2279 = vmor %vm2277, %vm2278
        %v2280 = vsel %vm2279, %v2271, %v2276
        %v2281 = vrsqrt.pop %v1938
        %v2282 = vmul.f32 %v2281, %v1938
        %v2283 = vmul.f32 %v2282, %v2281
        %v2284 = vmul.f32 0.5, %v2283
        %v2285 = vsub.f32 1.5, %v2284
        %v2286 = vmul.f32 %v2281, %v2285
        %vm2287 = vweird.f32 %v1938
        %vm2288 = vweird.f32 %v2281
        %vm2289 = vmor %vm2287, %vm2288
        %v2290 = vsel %vm2289, %v2281, %v2286
        %v2291 = vrsqrt.pop %v1939
        %v2292 = vmul.f32 %v2291, %v1939
        %v2293 = vmul.f32 %v2292, %v2291
        %v2294 = vmul.f32 0.5, %v2293
        %v2295 = vsub.f32 1.5, %v2294
        %v2296 = vmul.f32 %v2291, %v2295
        %vm2297 = vweird.f32 %v1939
        %vm2298 = vweird.f32 %v2291
        %vm2299 = vmor %vm2297, %vm2298
        %v2300 = vsel %vm2299, %v2291, %v2296
        %v2301 = vrsqrt.pop %v1940
        %v2302 = vmul.f32 %v2301, %v1940
        %v2303 = vmul.f32 %v2302, %v2301
        %v2304 = vmul.f32 0.5, %v2303
        %v2305 = vsub.f32 1.5, %v2304
        %v2306 = vmul.f32 %v2301, %v2305
        %vm2307 = vweird.f32 %v1940
        %vm2308 = vweird.f32 %v2301
        %vm2309 = vmor %vm2307, %vm2308
        %v2310 = vsel %vm2309, %v2301, %v2306
        %v2311 = vrsqrt.pop %v1941
        %v2312 = vmul.f32 %v2311, %v1941
        %v2313 = vmul.f32 %v2312, %v2311
        %v2314 = vmul.f32 0.5, %v2313
        %v2315 = vsub.f32 1.5, %v2314
        %v2316 = vmul.f32 %v2311, %v2315
        %vm2317 = vweird.f32 %v1941
        %vm2318 = vweird.f32 %v2311
        %vm2319 = vmor %vm2317, %vm2318
        %v2320 = vsel %vm2319, %v2311, %v2316
        %v2321 = vrsqrt.pop %v1942
        %v2322 = vmul.f32 %v2321, %v1942
        %v2323 = vmul.f32 %v2322, %v2321
        %v2324 = vmul.f32 0.5, %v2323
        %v2325 = vsub.f32 1.5, %v2324
        %v2326 = vmul.f32 %v2321, %v2325
        %vm2327 = vweird.f32 %v1942
        %vm2328 = vweird.f32 %v2321
        %vm2329 = vmor %vm2327, %vm2328
        %v2330 = vsel %vm2329, %v2321, %v2326
        %v2331 = vrsqrt.pop %v1943
        %v2332 = vmul.f32 %v2331, %v1943
        %v2333 = vmul.f32 %v2332, %v2331
        %v2334 = vmul.f32 0.5, %v2333
        %v2335 = vsub.f32 1.5, %v2334
        %v2336 = vmul.f32 %v2331, %v2335
        %vm2337 = vweird.f32 %v1943
        %vm2338 = vweird.f32 %v2331
        %vm2339 = vmor %vm2337, %vm2338
        %v2340 = vsel %vm2339, %v2331, %v2336
        %v2341 = vrsqrt.pop %v1944
        %v2342 = vmul.f32 %v2341, %v1944
        %v2343 = vmul.f32 %v2342, %v2341
        %v2344 = vmul.f32 0.5, %v2343
        %v2345 = vsub.f32 1.5, %v2344
        %v2346 = vmul.f32 %v2341, %v2345
        %vm2347 = vweird.f32 %v1944
        %vm2348 = vweird.f32 %v2341
        %vm2349 = vmor %vm2347, %vm2348
        %v2350 = vsel %vm2349, %v2341, %v2346
        %v2351 = vrsqrt.pop %v1945
        %v2352 = vmul.f32 %v2351, %v1945
        %v2353 = vmul.f32 %v2352, %v2351
        %v2354 = vmul.f32 0.5, %v2353
        %v2355 = vsub.f32 1.5, %v2354
        %v2356 = vmul.f32 %v2351, %v2355
        %vm2357 = vweird.f32 %v1945
        %vm2358 = vweird.f32 %v2351
        %vm2359 = vmor %vm2357, %vm2358
        %v2360 = vsel %vm2359, %v2351, %v2356
        %v2361 = vrsqrt.pop %v1946
        %v2362 = vmul.f32 %v2361, %v1946
        %v2363 = vmul.f32 %v2362, %v2361
        %v2364 = vmul.f32 0.5, %v2363
        %v2365 = vsub.f32 1.5, %v2364
        %v2366 = vmul.f32 %v2361, %v2365
        %vm2367 = vweird.f32 %v1946
        %vm2368 = vweird.f32 %v2361
        %vm2369 = vmor %vm2367, %vm2368
        %v2370 = vsel %vm2369, %v2361, %v2366
        %v2371 = vrsqrt.pop %v1947
        %v2372 = vmul.f32 %v2371, %v1947
        %v2373 = vmul.f32 %v2372, %v2371
        %v2374 = vmul.f32 0.5, %v2373
        %v2375 = vsub.f32 1.5, %v2374
        %v2376 = vmul.f32 %v2371, %v2375
        %vm2377 = vweird.f32 %v1947
        %vm2378 = vweird.f32 %v2371
        %vm2379 = vmor %vm2377, %vm2378
        %v2380 = vsel %vm2379, %v2371, %v2376
        %v2381 = vrsqrt.pop %v1948
        %v2382 = vmul.f32 %v2381, %v1948
        %v2383 = vmul.f32 %v2382, %v2381
        %v2384 = vmul.f32 0.5, %v2383
        %v2385 = vsub.f32 1.5, %v2384
        %v2386 = vmul.f32 %v2381, %v2385
        %vm2387 = vweird.f32 %v1948
        %vm2388 = vweird.f32 %v2381
        %vm2389 = vmor %vm2387, %vm2388
        %v2390 = vsel %vm2389, %v2381, %v2386
        %v2391 = vrsqrt.pop %v1949
        %v2392 = vmul.f32 %v2391, %v1949
        %v2393 = vmul.f32 %v2392, %v2391
        %v2394 = vmul.f32 0.5, %v2393
        %v2395 = vsub.f32 1.5, %v2394
        %v2396 = vmul.f32 %v2391, %v2395
        %vm2397 = vweird.f32 %v1949
        %vm2398 = vweird.f32 %v2391
        %vm2399 = vmor %vm2397, %vm2398
        %v2400 = vsel %vm2399, %v2391, %v2396
        %v2401 = vrsqrt.pop %v1950
        %v2402 = vmul.f32 %v2401, %v1950
        %v2403 = vmul.f32 %v2402, %v2401
        %v2404 = vmul.f32 0.5, %v2403
        %v2405 = vsub.f32 1.5, %v2404
        %v2406 = vmul.f32 %v2401, %v2405
        %vm2407 = vweird.f32 %v1950
        %vm2408 = vweird.f32 %v2401
        %vm2409 = vmor %vm2407, %vm2408
        %v2410 = vsel %vm2409, %v2401, %v2406
        %v2411 = vrsqrt.pop %v1951
        %v2412 = vmul.f32 %v2411, %v1951
        %v2413 = vmul.f32 %v2412, %v2411
        %v2414 = vmul.f32 0.5, %v2413
        %v2415 = vsub.f32 1.5, %v2414
        %v2416 = vmul.f32 %v2411, %v2415
        %vm2417 = vweird.f32 %v1951
        %vm2418 = vweird.f32 %v2411
        %vm2419 = vmor %vm2417, %vm2418
        %v2420 = vsel %vm2419, %v2411, %v2416
        %v2421 = vrsqrt.pop %v1952
        %v2422 = vmul.f32 %v2421, %v1952
        %v2423 = vmul.f32 %v2422, %v2421
        %v2424 = vmul.f32 0.5, %v2423
        %v2425 = vsub.f32 1.5, %v2424
        %v2426 = vmul.f32 %v2421, %v2425
        %vm2427 = vweird.f32 %v1952
        %vm2428 = vweird.f32 %v2421
        %vm2429 = vmor %vm2427, %vm2428
        %v2430 = vsel %vm2429, %v2421, %v2426
        %v2431 = vrsqrt.pop %v1953
        %v2432 = vmul.f32 %v2431, %v1953
        %v2433 = vmul.f32 %v2432, %v2431
        %v2434 = vmul.f32 0.5, %v2433
        %v2435 = vsub.f32 1.5, %v2434
        %v2436 = vmul.f32 %v2431, %v2435
        %vm2437 = vweird.f32 %v1953
        %vm2438 = vweird.f32 %v2431
        %vm2439 = vmor %vm2437, %vm2438
        %v2440 = vsel %vm2439, %v2431, %v2436
        %v2441 = vrsqrt.pop %v1954
        %v2442 = vmul.f32 %v2441, %v1954
        %v2443 = vmul.f32 %v2442, %v2441
        %v2444 = vmul.f32 0.5, %v2443
        %v2445 = vsub.f32 1.5, %v2444
        %v2446 = vmul.f32 %v2441, %v2445
        %vm2447 = vweird.f32 %v1954
        %vm2448 = vweird.f32 %v2441
        %vm2449 = vmor %vm2447, %vm2448
        %v2450 = vsel %vm2449, %v2441, %v2446
        %v2451 = vrsqrt.pop %v1955
        %v2452 = vmul.f32 %v2451, %v1955
        %v2453 = vmul.f32 %v2452, %v2451
        %v2454 = vmul.f32 0.5, %v2453
        %v2455 = vsub.f32 1.5, %v2454
        %v2456 = vmul.f32 %v2451, %v2455
        %vm2457 = vweird.f32 %v1955
        %vm2458 = vweird.f32 %v2451
        %vm2459 = vmor %vm2457, %vm2458
        %v2460 = vsel %vm2459, %v2451, %v2456
        %v2461 = vrsqrt.pop %v1956
        %v2462 = vmul.f32 %v2461, %v1956
        %v2463 = vmul.f32 %v2462, %v2461
        %v2464 = vmul.f32 0.5, %v2463
        %v2465 = vsub.f32 1.5, %v2464
        %v2466 = vmul.f32 %v2461, %v2465
        %vm2467 = vweird.f32 %v1956
        %vm2468 = vweird.f32 %v2461
        %vm2469 = vmor %vm2467, %vm2468
        %v2470 = vsel %vm2469, %v2461, %v2466
        %v2471 = vrsqrt.pop %v1957
        %v2472 = vmul.f32 %v2471, %v1957
        %v2473 = vmul.f32 %v2472, %v2471
        %v2474 = vmul.f32 0.5, %v2473
        %v2475 = vsub.f32 1.5, %v2474
        %v2476 = vmul.f32 %v2471, %v2475
        %vm2477 = vweird.f32 %v1957
        %vm2478 = vweird.f32 %v2471
        %vm2479 = vmor %vm2477, %vm2478
        %v2480 = vsel %vm2479, %v2471, %v2476
        %v2481 = vrsqrt.pop %v1958
        %v2482 = vmul.f32 %v2481, %v1958
        %v2483 = vmul.f32 %v2482, %v2481
        %v2484 = vmul.f32 0.5, %v2483
        %v2485 = vsub.f32 1.5, %v2484
        %v2486 = vmul.f32 %v2481, %v2485
        %vm2487 = vweird.f32 %v1958
        %vm2488 = vweird.f32 %v2481
        %vm2489 = vmor %vm2487, %vm2488
        %v2490 = vsel %vm2489, %v2481, %v2486
        %v2491 = vrsqrt.pop %v1959
        %v2492 = vmul.f32 %v2491, %v1959
        %v2493 = vmul.f32 %v2492, %v2491
        %v2494 = vmul.f32 0.5, %v2493
        %v2495 = vsub.f32 1.5, %v2494
        %v2496 = vmul.f32 %v2491, %v2495
        %vm2497 = vweird.f32 %v1959
        %vm2498 = vweird.f32 %v2491
        %vm2499 = vmor %vm2497, %vm2498
        %v2500 = vsel %vm2499, %v2491, %v2496
        %v2501 = vrsqrt.pop %v1960
        %v2502 = vmul.f32 %v2501, %v1960
        %v2503 = vmul.f32 %v2502, %v2501
        %v2504 = vmul.f32 0.5, %v2503
        %v2505 = vsub.f32 1.5, %v2504
        %v2506 = vmul.f32 %v2501, %v2505
        %vm2507 = vweird.f32 %v1960
        %vm2508 = vweird.f32 %v2501
        %vm2509 = vmor %vm2507, %vm2508
        %v2510 = vsel %vm2509, %v2501, %v2506
        %v2511 = vrsqrt.pop %v1961
        %v2512 = vmul.f32 %v2511, %v1961
        %v2513 = vmul.f32 %v2512, %v2511
        %v2514 = vmul.f32 0.5, %v2513
        %v2515 = vsub.f32 1.5, %v2514
        %v2516 = vmul.f32 %v2511, %v2515
        %vm2517 = vweird.f32 %v1961
        %vm2518 = vweird.f32 %v2511
        %vm2519 = vmor %vm2517, %vm2518
        %v2520 = vsel %vm2519, %v2511, %v2516
        %v2521 = vrsqrt.pop %v1962
        %v2522 = vmul.f32 %v2521, %v1962
        %v2523 = vmul.f32 %v2522, %v2521
        %v2524 = vmul.f32 0.5, %v2523
        %v2525 = vsub.f32 1.5, %v2524
        %v2526 = vmul.f32 %v2521, %v2525
        %vm2527 = vweird.f32 %v1962
        %vm2528 = vweird.f32 %v2521
        %vm2529 = vmor %vm2527, %vm2528
        %v2530 = vsel %vm2529, %v2521, %v2526
        %v2531 = vrsqrt.pop %v1963
        %v2532 = vmul.f32 %v2531, %v1963
        %v2533 = vmul.f32 %v2532, %v2531
        %v2534 = vmul.f32 0.5, %v2533
        %v2535 = vsub.f32 1.5, %v2534
        %v2536 = vmul.f32 %v2531, %v2535
        %vm2537 = vweird.f32 %v1963
        %vm2538 = vweird.f32 %v2531
        %vm2539 = vmor %vm2537, %vm2538
        %v2540 = vsel %vm2539, %v2531, %v2536
        %v2541 = vrsqrt.pop %v1964
        %v2542 = vmul.f32 %v2541, %v1964
        %v2543 = vmul.f32 %v2542, %v2541
        %v2544 = vmul.f32 0.5, %v2543
        %v2545 = vsub.f32 1.5, %v2544
        %v2546 = vmul.f32 %v2541, %v2545
        %vm2547 = vweird.f32 %v1964
        %vm2548 = vweird.f32 %v2541
        %vm2549 = vmor %vm2547, %vm2548
        %v2550 = vsel %vm2549, %v2541, %v2546
        %v2551 = vrsqrt.pop %v1965
        %v2552 = vmul.f32 %v2551, %v1965
        %v2553 = vmul.f32 %v2552, %v2551
        %v2554 = vmul.f32 0.5, %v2553
        %v2555 = vsub.f32 1.5, %v2554
        %v2556 = vmul.f32 %v2551, %v2555
        %vm2557 = vweird.f32 %v1965
        %vm2558 = vweird.f32 %v2551
        %vm2559 = vmor %vm2557, %vm2558
        %v2560 = vsel %vm2559, %v2551, %v2556
        %v2561 = vrsqrt.pop %v1966
        %v2562 = vmul.f32 %v2561, %v1966
        %v2563 = vmul.f32 %v2562, %v2561
        %v2564 = vmul.f32 0.5, %v2563
        %v2565 = vsub.f32 1.5, %v2564
        %v2566 = vmul.f32 %v2561, %v2565
        %vm2567 = vweird.f32 %v1966
        %vm2568 = vweird.f32 %v2561
        %vm2569 = vmor %vm2567, %vm2568
        %v2570 = vsel %vm2569, %v2561, %v2566
        %v2571 = vrsqrt.pop %v1967
        %v2572 = vmul.f32 %v2571, %v1967
        %v2573 = vmul.f32 %v2572, %v2571
        %v2574 = vmul.f32 0.5, %v2573
        %v2575 = vsub.f32 1.5, %v2574
        %v2576 = vmul.f32 %v2571, %v2575
        %vm2577 = vweird.f32 %v1967
        %vm2578 = vweird.f32 %v2571
        %vm2579 = vmor %vm2577, %vm2578
        %v2580 = vsel %vm2579, %v2571, %v2576
        %v2581 = vrsqrt.pop %v1968
        %v2582 = vmul.f32 %v2581, %v1968
        %v2583 = vmul.f32 %v2582, %v2581
        %v2584 = vmul.f32 0.5, %v2583
        %v2585 = vsub.f32 1.5, %v2584
        %v2586 = vmul.f32 %v2581, %v2585
        %vm2587 = vweird.f32 %v1968
        %vm2588 = vweird.f32 %v2581
        %vm2589 = vmor %vm2587, %vm2588
        %v2590 = vsel %vm2589, %v2581, %v2586
        %v2591 = vrsqrt.pop %v1969
        %v2592 = vmul.f32 %v2591, %v1969
        %v2593 = vmul.f32 %v2592, %v2591
        %v2594 = vmul.f32 0.5, %v2593
        %v2595 = vsub.f32 1.5, %v2594
        %v2596 = vmul.f32 %v2591, %v2595
        %vm2597 = vweird.f32 %v1969
        %vm2598 = vweird.f32 %v2591
        %vm2599 = vmor %vm2597, %vm2598
        %v2600 = vsel %vm2599, %v2591, %v2596
        %v2601 = vrsqrt.pop %v1970
        %v2602 = vmul.f32 %v2601, %v1970
        %v2603 = vmul.f32 %v2602, %v2601
        %v2604 = vmul.f32 0.5, %v2603
        %v2605 = vsub.f32 1.5, %v2604
        %v2606 = vmul.f32 %v2601, %v2605
        %vm2607 = vweird.f32 %v1970
        %vm2608 = vweird.f32 %v2601
        %vm2609 = vmor %vm2607, %vm2608
        %v2610 = vsel %vm2609, %v2601, %v2606
        %v2611 = vrsqrt.pop %v1971
        %v2612 = vmul.f32 %v2611, %v1971
        %v2613 = vmul.f32 %v2612, %v2611
        %v2614 = vmul.f32 0.5, %v2613
        %v2615 = vsub.f32 1.5, %v2614
        %v2616 = vmul.f32 %v2611, %v2615
        %vm2617 = vweird.f32 %v1971
        %vm2618 = vweird.f32 %v2611
        %vm2619 = vmor %vm2617, %vm2618
        %v2620 = vsel %vm2619, %v2611, %v2616
        %v2621 = vrsqrt.pop %v1972
        %v2622 = vmul.f32 %v2621, %v1972
        %v2623 = vmul.f32 %v2622, %v2621
        %v2624 = vmul.f32 0.5, %v2623
        %v2625 = vsub.f32 1.5, %v2624
        %v2626 = vmul.f32 %v2621, %v2625
        %vm2627 = vweird.f32 %v1972
        %vm2628 = vweird.f32 %v2621
        %vm2629 = vmor %vm2627, %vm2628
        %v2630 = vsel %vm2629, %v2621, %v2626
        %v2631 = vrsqrt.pop %v1973
        %v2632 = vmul.f32 %v2631, %v1973
        %v2633 = vmul.f32 %v2632, %v2631
        %v2634 = vmul.f32 0.5, %v2633
        %v2635 = vsub.f32 1.5, %v2634
        %v2636 = vmul.f32 %v2631, %v2635
        %vm2637 = vweird.f32 %v1973
        %vm2638 = vweird.f32 %v2631
        %vm2639 = vmor %vm2637, %vm2638
        %v2640 = vsel %vm2639, %v2631, %v2636
        %v2641 = vrsqrt.pop %v1974
        %v2642 = vmul.f32 %v2641, %v1974
        %v2643 = vmul.f32 %v2642, %v2641
        %v2644 = vmul.f32 0.5, %v2643
        %v2645 = vsub.f32 1.5, %v2644
        %v2646 = vmul.f32 %v2641, %v2645
        %vm2647 = vweird.f32 %v1974
        %vm2648 = vweird.f32 %v2641
        %vm2649 = vmor %vm2647, %vm2648
        %v2650 = vsel %vm2649, %v2641, %v2646
        %v2651 = vrsqrt.pop %v1975
        %v2652 = vmul.f32 %v2651, %v1975
        %v2653 = vmul.f32 %v2652, %v2651
        %v2654 = vmul.f32 0.5, %v2653
        %v2655 = vsub.f32 1.5, %v2654
        %v2656 = vmul.f32 %v2651, %v2655
        %vm2657 = vweird.f32 %v1975
        %vm2658 = vweird.f32 %v2651
        %vm2659 = vmor %vm2657, %vm2658
        %v2660 = vsel %vm2659, %v2651, %v2656
        %v2661 = vrsqrt.pop %v1976
        %v2662 = vmul.f32 %v2661, %v1976
        %v2663 = vmul.f32 %v2662, %v2661
        %v2664 = vmul.f32 0.5, %v2663
        %v2665 = vsub.f32 1.5, %v2664
        %v2666 = vmul.f32 %v2661, %v2665
        %vm2667 = vweird.f32 %v1976
        %vm2668 = vweird.f32 %v2661
        %vm2669 = vmor %vm2667, %vm2668
        %v2670 = vsel %vm2669, %v2661, %v2666
        %v2671 = vrsqrt.pop %v1977
        %v2672 = vmul.f32 %v2671, %v1977
        %v2673 = vmul.f32 %v2672, %v2671
        %v2674 = vmul.f32 0.5, %v2673
        %v2675 = vsub.f32 1.5, %v2674
        %v2676 = vmul.f32 %v2671, %v2675
        %vm2677 = vweird.f32 %v1977
        %vm2678 = vweird.f32 %v2671
        %vm2679 = vmor %vm2677, %vm2678
        %v2680 = vsel %vm2679, %v2671, %v2676
        %v2681 = vrsqrt.pop %v1978
        %v2682 = vmul.f32 %v2681, %v1978
        %v2683 = vmul.f32 %v2682, %v2681
        %v2684 = vmul.f32 0.5, %v2683
        %v2685 = vsub.f32 1.5, %v2684
        %v2686 = vmul.f32 %v2681, %v2685
        %vm2687 = vweird.f32 %v1978
        %vm2688 = vweird.f32 %v2681
        %vm2689 = vmor %vm2687, %vm2688
        %v2690 = vsel %vm2689, %v2681, %v2686
        %v2691 = vrsqrt.pop %v1979
        %v2692 = vmul.f32 %v2691, %v1979
        %v2693 = vmul.f32 %v2692, %v2691
        %v2694 = vmul.f32 0.5, %v2693
        %v2695 = vsub.f32 1.5, %v2694
        %v2696 = vmul.f32 %v2691, %v2695
        %vm2697 = vweird.f32 %v1979
        %vm2698 = vweird.f32 %v2691
        %vm2699 = vmor %vm2697, %vm2698
        %v2700 = vsel %vm2699, %v2691, %v2696
        %v2701 = vrsqrt.pop %v1980
        %v2702 = vmul.f32 %v2701, %v1980
        %v2703 = vmul.f32 %v2702, %v2701
        %v2704 = vmul.f32 0.5, %v2703
        %v2705 = vsub.f32 1.5, %v2704
        %v2706 = vmul.f32 %v2701, %v2705
        %vm2707 = vweird.f32 %v1980
        %vm2708 = vweird.f32 %v2701
        %vm2709 = vmor %vm2707, %vm2708
        %v2710 = vsel %vm2709, %v2701, %v2706
        %v2711 = vrsqrt.pop %v1981
        %v2712 = vmul.f32 %v2711, %v1981
        %v2713 = vmul.f32 %v2712, %v2711
        %v2714 = vmul.f32 0.5, %v2713
        %v2715 = vsub.f32 1.5, %v2714
        %v2716 = vmul.f32 %v2711, %v2715
        %vm2717 = vweird.f32 %v1981
        %vm2718 = vweird.f32 %v2711
        %vm2719 = vmor %vm2717, %vm2718
        %v2720 = vsel %vm2719, %v2711, %v2716
        %v2721 = vrsqrt.pop %v1982
        %v2722 = vmul.f32 %v2721, %v1982
        %v2723 = vmul.f32 %v2722, %v2721
        %v2724 = vmul.f32 0.5, %v2723
        %v2725 = vsub.f32 1.5, %v2724
        %v2726 = vmul.f32 %v2721, %v2725
        %vm2727 = vweird.f32 %v1982
        %vm2728 = vweird.f32 %v2721
        %vm2729 = vmor %vm2727, %vm2728
        %v2730 = vsel %vm2729, %v2721, %v2726
        %v2731 = vrsqrt.pop %v1983
        %v2732 = vmul.f32 %v2731, %v1983
        %v2733 = vmul.f32 %v2732, %v2731
        %v2734 = vmul.f32 0.5, %v2733
        %v2735 = vsub.f32 1.5, %v2734
        %v2736 = vmul.f32 %v2731, %v2735
        %vm2737 = vweird.f32 %v1983
        %vm2738 = vweird.f32 %v2731
        %vm2739 = vmor %vm2737, %vm2738
        %v2740 = vsel %vm2739, %v2731, %v2736
        %v2741 = vrsqrt.pop %v1984
        %v2742 = vmul.f32 %v2741, %v1984
        %v2743 = vmul.f32 %v2742, %v2741
        %v2744 = vmul.f32 0.5, %v2743
        %v2745 = vsub.f32 1.5, %v2744
        %v2746 = vmul.f32 %v2741, %v2745
        %vm2747 = vweird.f32 %v1984
        %vm2748 = vweird.f32 %v2741
        %vm2749 = vmor %vm2747, %vm2748
        %v2750 = vsel %vm2749, %v2741, %v2746
        %v2751 = vrsqrt.pop %v1985
        %v2752 = vmul.f32 %v2751, %v1985
        %v2753 = vmul.f32 %v2752, %v2751
        %v2754 = vmul.f32 0.5, %v2753
        %v2755 = vsub.f32 1.5, %v2754
        %v2756 = vmul.f32 %v2751, %v2755
        %vm2757 = vweird.f32 %v1985
        %vm2758 = vweird.f32 %v2751
        %vm2759 = vmor %vm2757, %vm2758
        %v2760 = vsel %vm2759, %v2751, %v2756
        %v2761 = vrsqrt.pop %v1986
        %v2762 = vmul.f32 %v2761, %v1986
        %v2763 = vmul.f32 %v2762, %v2761
        %v2764 = vmul.f32 0.5, %v2763
        %v2765 = vsub.f32 1.5, %v2764
        %v2766 = vmul.f32 %v2761, %v2765
        %vm2767 = vweird.f32 %v1986
        %vm2768 = vweird.f32 %v2761
        %vm2769 = vmor %vm2767, %vm2768
        %v2770 = vsel %vm2769, %v2761, %v2766
        %v2771 = vrsqrt.pop %v1987
        %v2772 = vmul.f32 %v2771, %v1987
        %v2773 = vmul.f32 %v2772, %v2771
        %v2774 = vmul.f32 0.5, %v2773
        %v2775 = vsub.f32 1.5, %v2774
        %v2776 = vmul.f32 %v2771, %v2775
        %vm2777 = vweird.f32 %v1987
        %vm2778 = vweird.f32 %v2771
        %vm2779 = vmor %vm2777, %vm2778
        %v2780 = vsel %vm2779, %v2771, %v2776
        %v2781 = vrsqrt.pop %v1988
        %v2782 = vmul.f32 %v2781, %v1988
        %v2783 = vmul.f32 %v2782, %v2781
        %v2784 = vmul.f32 0.5, %v2783
        %v2785 = vsub.f32 1.5, %v2784
        %v2786 = vmul.f32 %v2781, %v2785
        %vm2787 = vweird.f32 %v1988
        %vm2788 = vweird.f32 %v2781
        %vm2789 = vmor %vm2787, %vm2788
        %v2790 = vsel %vm2789, %v2781, %v2786
        %v2791 = vrsqrt.pop %v1989
        %v2792 = vmul.f32 %v2791, %v1989
        %v2793 = vmul.f32 %v2792, %v2791
        %v2794 = vmul.f32 0.5, %v2793
        %v2795 = vsub.f32 1.5, %v2794
        %v2796 = vmul.f32 %v2791, %v2795
        %vm2797 = vweird.f32 %v1989
        %vm2798 = vweird.f32 %v2791
        %vm2799 = vmor %vm2797, %vm2798
        %v2800 = vsel %vm2799, %v2791, %v2796
        %v2801 = vrsqrt.pop %v1990
        %v2802 = vmul.f32 %v2801, %v1990
        %v2803 = vmul.f32 %v2802, %v2801
        %v2804 = vmul.f32 0.5, %v2803
        %v2805 = vsub.f32 1.5, %v2804
        %v2806 = vmul.f32 %v2801, %v2805
        %vm2807 = vweird.f32 %v1990
        %vm2808 = vweird.f32 %v2801
        %vm2809 = vmor %vm2807, %vm2808
        %v2810 = vsel %vm2809, %v2801, %v2806
        %v2811 = vrsqrt.pop %v1991
        %v2812 = vmul.f32 %v2811, %v1991
        %v2813 = vmul.f32 %v2812, %v2811
        %v2814 = vmul.f32 0.5, %v2813
        %v2815 = vsub.f32 1.5, %v2814
        %v2816 = vmul.f32 %v2811, %v2815
        %vm2817 = vweird.f32 %v1991
        %vm2818 = vweird.f32 %v2811
        %vm2819 = vmor %vm2817, %vm2818
        %v2820 = vsel %vm2819, %v2811, %v2816
        %v2821 = vrsqrt.pop %v1992
        %v2822 = vmul.f32 %v2821, %v1992
        %v2823 = vmul.f32 %v2822, %v2821
        %v2824 = vmul.f32 0.5, %v2823
        %v2825 = vsub.f32 1.5, %v2824
        %v2826 = vmul.f32 %v2821, %v2825
        %vm2827 = vweird.f32 %v1992
        %vm2828 = vweird.f32 %v2821
        %vm2829 = vmor %vm2827, %vm2828
        %v2830 = vsel %vm2829, %v2821, %v2826
        %v2831 = vrsqrt.pop %v1993
        %v2832 = vmul.f32 %v2831, %v1993
        %v2833 = vmul.f32 %v2832, %v2831
        %v2834 = vmul.f32 0.5, %v2833
        %v2835 = vsub.f32 1.5, %v2834
        %v2836 = vmul.f32 %v2831, %v2835
        %vm2837 = vweird.f32 %v1993
        %vm2838 = vweird.f32 %v2831
        %vm2839 = vmor %vm2837, %vm2838
        %v2840 = vsel %vm2839, %v2831, %v2836
        %v2841 = vrsqrt.pop %v1994
        %v2842 = vmul.f32 %v2841, %v1994
        %v2843 = vmul.f32 %v2842, %v2841
        %v2844 = vmul.f32 0.5, %v2843
        %v2845 = vsub.f32 1.5, %v2844
        %v2846 = vmul.f32 %v2841, %v2845
        %vm2847 = vweird.f32 %v1994
        %vm2848 = vweird.f32 %v2841
        %vm2849 = vmor %vm2847, %vm2848
        %v2850 = vsel %vm2849, %v2841, %v2846
        %v2851 = vrsqrt.pop %v1995
        %v2852 = vmul.f32 %v2851, %v1995
        %v2853 = vmul.f32 %v2852, %v2851
        %v2854 = vmul.f32 0.5, %v2853
        %v2855 = vsub.f32 1.5, %v2854
        %v2856 = vmul.f32 %v2851, %v2855
        %vm2857 = vweird.f32 %v1995
        %vm2858 = vweird.f32 %v2851
        %vm2859 = vmor %vm2857, %vm2858
        %v2860 = vsel %vm2859, %v2851, %v2856
        %v2861 = vrsqrt.pop %v1996
        %v2862 = vmul.f32 %v2861, %v1996
        %v2863 = vmul.f32 %v2862, %v2861
        %v2864 = vmul.f32 0.5, %v2863
        %v2865 = vsub.f32 1.5, %v2864
        %v2866 = vmul.f32 %v2861, %v2865
        %vm2867 = vweird.f32 %v1996
        %vm2868 = vweird.f32 %v2861
        %vm2869 = vmor %vm2867, %vm2868
        %v2870 = vsel %vm2869, %v2861, %v2866
        %v2871 = vrsqrt.pop %v1997
        %v2872 = vmul.f32 %v2871, %v1997
        %v2873 = vmul.f32 %v2872, %v2871
        %v2874 = vmul.f32 0.5, %v2873
        %v2875 = vsub.f32 1.5, %v2874
        %v2876 = vmul.f32 %v2871, %v2875
        %vm2877 = vweird.f32 %v1997
        %vm2878 = vweird.f32 %v2871
        %vm2879 = vmor %vm2877, %vm2878
        %v2880 = vsel %vm2879, %v2871, %v2876
        %v2881 = vrsqrt.pop %v1998
        %v2882 = vmul.f32 %v2881, %v1998
        %v2883 = vmul.f32 %v2882, %v2881
        %v2884 = vmul.f32 0.5, %v2883
        %v2885 = vsub.f32 1.5, %v2884
        %v2886 = vmul.f32 %v2881, %v2885
        %vm2887 = vweird.f32 %v1998
        %vm2888 = vweird.f32 %v2881
        %vm2889 = vmor %vm2887, %vm2888
        %v2890 = vsel %vm2889, %v2881, %v2886
        %v2891 = vrsqrt.pop %v1999
        %v2892 = vmul.f32 %v2891, %v1999
        %v2893 = vmul.f32 %v2892, %v2891
        %v2894 = vmul.f32 0.5, %v2893
        %v2895 = vsub.f32 1.5, %v2894
        %v2896 = vmul.f32 %v2891, %v2895
        %vm2897 = vweird.f32 %v1999
        %vm2898 = vweird.f32 %v2891
        %vm2899 = vmor %vm2897, %vm2898
        %v2900 = vsel %vm2899, %v2891, %v2896
        %v2901 = vrsqrt.pop %v2000
        %v2902 = vmul.f32 %v2901, %v2000
        %v2903 = vmul.f32 %v2902, %v2901
        %v2904 = vmul.f32 0.5, %v2903
        %v2905 = vsub.f32 1.5, %v2904
        %v2906 = vmul.f32 %v2901, %v2905
        %vm2907 = vweird.f32 %v2000
        %vm2908 = vweird.f32 %v2901
        %vm2909 = vmor %vm2907, %vm2908
        %v2910 = vsel %vm2909, %v2901, %v2906
        %v2911 = vmul.f32 %v1819, %v2010
        %v2912 = vmul.f32 %v1820, %v2020
        %v2913 = vmul.f32 %v1821, %v2030
        %v2914 = vmul.f32 %v1822, %v2040
        %v2915 = vmul.f32 %v1823, %v2050
        %v2916 = vmul.f32 %v1824, %v2060
        %v2917 = vmul.f32 %v1825, %v2070
        %v2918 = vmul.f32 %v1826, %v2080
        %v2919 = vmul.f32 %v1827, %v2090
        %v2920 = vmul.f32 %v1828, %v2100
        %v2921 = vmul.f32 %v1829, %v2110
        %v2922 = vmul.f32 %v1830, %v2120
        %v2923 = vmul.f32 %v1831, %v2130
        %v2924 = vmul.f32 %v1832, %v2140
        %v2925 = vmul.f32 %v1833, %v2150
        %v2926 = vmul.f32 %v1834, %v2160
        %v2927 = vmul.f32 %v1835, %v2170
        %v2928 = vmul.f32 %v1836, %v2180
        %v2929 = vmul.f32 %v1837, %v2190
        %v2930 = vmul.f32 %v1838, %v2200
        %v2931 = vmul.f32 %v1839, %v2210
        %v2932 = vmul.f32 %v1840, %v2220
        %v2933 = vmul.f32 %v1841, %v2230
        %v2934 = vmul.f32 %v1842, %v2240
        %v2935 = vmul.f32 %v1843, %v2250
        %v2936 = vmul.f32 %v1844, %v2260
        %v2937 = vmul.f32 %v1845, %v2270
        %v2938 = vmul.f32 %v1846, %v2280
        %v2939 = vmul.f32 %v1847, %v2290
        %v2940 = vmul.f32 %v1848, %v2300
        %v2941 = vmul.f32 %v1849, %v2310
        %v2942 = vmul.f32 %v1850, %v2320
        %v2943 = vmul.f32 %v1851, %v2330
        %v2944 = vmul.f32 %v1852, %v2340
        %v2945 = vmul.f32 %v1853, %v2350
        %v2946 = vmul.f32 %v1854, %v2360
        %v2947 = vmul.f32 %v1855, %v2370
        %v2948 = vmul.f32 %v1856, %v2380
        %v2949 = vmul.f32 %v1857, %v2390
        %v2950 = vmul.f32 %v1858, %v2400
        %v2951 = vmul.f32 %v1859, %v2410
        %v2952 = vmul.f32 %v1860, %v2420
        %v2953 = vmul.f32 %v1861, %v2430
        %v2954 = vmul.f32 %v1862, %v2440
        %v2955 = vmul.f32 %v1863, %v2450
        %v2956 = vmul.f32 %v1864, %v2460
        %v2957 = vmul.f32 %v1865, %v2470
        %v2958 = vmul.f32 %v1866, %v2480
        %v2959 = vmul.f32 %v1867, %v2490
        %v2960 = vmul.f32 %v1868, %v2500
        %v2961 = vmul.f32 %v1869, %v2510
        %v2962 = vmul.f32 %v1870, %v2520
        %v2963 = vmul.f32 %v1871, %v2530
        %v2964 = vmul.f32 %v1872, %v2540
        %v2965 = vmul.f32 %v1873, %v2550
        %v2966 = vmul.f32 %v1874, %v2560
        %v2967 = vmul.f32 %v1875, %v2570
        %v2968 = vmul.f32 %v1876, %v2580
        %v2969 = vmul.f32 %v1877, %v2590
        %v2970 = vmul.f32 %v1878, %v2600
        %v2971 = vmul.f32 %v1879, %v2610
        %v2972 = vmul.f32 %v1880, %v2620
        %v2973 = vmul.f32 %v1881, %v2630
        %v2974 = vmul.f32 %v1882, %v2640
        %v2975 = vmul.f32 %v1883, %v2650
        %v2976 = vmul.f32 %v1884, %v2660
        %v2977 = vmul.f32 %v1885, %v2670
        %v2978 = vmul.f32 %v1886, %v2680
        %v2979 = vmul.f32 %v1887, %v2690
        %v2980 = vmul.f32 %v1888, %v2700
        %v2981 = vmul.f32 %v1889, %v2710
        %v2982 = vmul.f32 %v1890, %v2720
        %v2983 = vmul.f32 %v1891, %v2730
        %v2984 = vmul.f32 %v1892, %v2740
        %v2985 = vmul.f32 %v1893, %v2750
        %v2986 = vmul.f32 %v1894, %v2760
        %v2987 = vmul.f32 %v1895, %v2770
        %v2988 = vmul.f32 %v1896, %v2780
        %v2989 = vmul.f32 %v1897, %v2790
        %v2990 = vmul.f32 %v1898, %v2800
        %v2991 = vmul.f32 %v1899, %v2810
        %v2992 = vmul.f32 %v1900, %v2820
        %v2993 = vmul.f32 %v1901, %v2830
        %v2994 = vmul.f32 %v1902, %v2840
        %v2995 = vmul.f32 %v1903, %v2850
        %v2996 = vmul.f32 %v1904, %v2860
        %v2997 = vmul.f32 %v1905, %v2870
        %v2998 = vmul.f32 %v1906, %v2880
        %v2999 = vmul.f32 %v1907, %v2890
        %v3000 = vmul.f32 %v1908, %v2900
        %v3001 = vmul.f32 %v1909, %v2910
        %3003 = vset.pattern.permute.xlu0 0
        %3004 = vperm.xlu0 %3003, %v2911
        %v3005 = vpop.permute.xlu0 %3004
        %3008 = vset.pattern.permute.xlu0 0
        %3009 = vperm.xlu0 %3008, %v2912
        %v3010 = vpop.permute.xlu0 %3009
        %3013 = vset.pattern.permute.xlu0 0
        %3014 = vperm.xlu0 %3013, %v2913
        %v3015 = vpop.permute.xlu0 %3014
        %3018 = vset.pattern.permute.xlu0 0
        %3019 = vperm.xlu0 %3018, %v2914
        %v3020 = vpop.permute.xlu0 %3019
        %3023 = vset.pattern.permute.xlu0 0
        %3024 = vperm.xlu0 %3023, %v2915
        %v3025 = vpop.permute.xlu0 %3024
        %3028 = vset.pattern.permute.xlu0 0
        %3029 = vperm.xlu0 %3028, %v2916
        %v3030 = vpop.permute.xlu0 %3029
        %3033 = vset.pattern.permute.xlu0 0
        %3034 = vperm.xlu0 %3033, %v2917
        %v3035 = vpop.permute.xlu0 %3034
        %3038 = vset.pattern.permute.xlu0 0
        %3039 = vperm.xlu0 %3038, %v2918
        %v3040 = vpop.permute.xlu0 %3039
        %3043 = vset.pattern.permute.xlu0 0
        %3044 = vperm.xlu0 %3043, %v2919
        %v3045 = vpop.permute.xlu0 %3044
        %3048 = vset.pattern.permute.xlu0 0
        %3049 = vperm.xlu0 %3048, %v2920
        %v3050 = vpop.permute.xlu0 %3049
        %3053 = vset.pattern.permute.xlu0 0
        %3054 = vperm.xlu0 %3053, %v2921
        %v3055 = vpop.permute.xlu0 %3054
        %3058 = vset.pattern.permute.xlu0 0
        %3059 = vperm.xlu0 %3058, %v2922
        %v3060 = vpop.permute.xlu0 %3059
        %3063 = vset.pattern.permute.xlu0 0
        %3064 = vperm.xlu0 %3063, %v2923
        %v3065 = vpop.permute.xlu0 %3064
        %3068 = vset.pattern.permute.xlu0 0
        %3069 = vperm.xlu0 %3068, %v2924
        %v3070 = vpop.permute.xlu0 %3069
        %3073 = vset.pattern.permute.xlu0 0
        %3074 = vperm.xlu0 %3073, %v2925
        %v3075 = vpop.permute.xlu0 %3074
        %3078 = vset.pattern.permute.xlu0 0
        %3079 = vperm.xlu0 %3078, %v2926
        %v3080 = vpop.permute.xlu0 %3079
        %3083 = vset.pattern.permute.xlu0 0
        %3084 = vperm.xlu0 %3083, %v2927
        %v3085 = vpop.permute.xlu0 %3084
        %3088 = vset.pattern.permute.xlu0 0
        %3089 = vperm.xlu0 %3088, %v2928
        %v3090 = vpop.permute.xlu0 %3089
        %3093 = vset.pattern.permute.xlu0 0
        %3094 = vperm.xlu0 %3093, %v2929
        %v3095 = vpop.permute.xlu0 %3094
        %3098 = vset.pattern.permute.xlu0 0
        %3099 = vperm.xlu0 %3098, %v2930
        %v3100 = vpop.permute.xlu0 %3099
        %3103 = vset.pattern.permute.xlu0 0
        %3104 = vperm.xlu0 %3103, %v2931
        %v3105 = vpop.permute.xlu0 %3104
        %3108 = vset.pattern.permute.xlu0 0
        %3109 = vperm.xlu0 %3108, %v2932
        %v3110 = vpop.permute.xlu0 %3109
        %3113 = vset.pattern.permute.xlu0 0
        %3114 = vperm.xlu0 %3113, %v2933
        %v3115 = vpop.permute.xlu0 %3114
        %3118 = vset.pattern.permute.xlu0 0
        %3119 = vperm.xlu0 %3118, %v2934
        %v3120 = vpop.permute.xlu0 %3119
        %3123 = vset.pattern.permute.xlu0 0
        %3124 = vperm.xlu0 %3123, %v2935
        %v3125 = vpop.permute.xlu0 %3124
        %3128 = vset.pattern.permute.xlu0 0
        %3129 = vperm.xlu0 %3128, %v2936
        %v3130 = vpop.permute.xlu0 %3129
        %3133 = vset.pattern.permute.xlu0 0
        %3134 = vperm.xlu0 %3133, %v2937
        %v3135 = vpop.permute.xlu0 %3134
        %3138 = vset.pattern.permute.xlu0 0
        %3139 = vperm.xlu0 %3138, %v2938
        %v3140 = vpop.permute.xlu0 %3139
        %3143 = vset.pattern.permute.xlu0 0
        %3144 = vperm.xlu0 %3143, %v2939
        %v3145 = vpop.permute.xlu0 %3144
        %3148 = vset.pattern.permute.xlu0 0
        %3149 = vperm.xlu0 %3148, %v2940
        %v3150 = vpop.permute.xlu0 %3149
        %3153 = vset.pattern.permute.xlu0 0
        %3154 = vperm.xlu0 %3153, %v2941
        %v3155 = vpop.permute.xlu0 %3154
        %3158 = vset.pattern.permute.xlu0 0
        %3159 = vperm.xlu0 %3158, %v2942
        %v3160 = vpop.permute.xlu0 %3159
        %3163 = vset.pattern.permute.xlu0 0
        %3164 = vperm.xlu0 %3163, %v2943
        %v3165 = vpop.permute.xlu0 %3164
        %3168 = vset.pattern.permute.xlu0 0
        %3169 = vperm.xlu0 %3168, %v2944
        %v3170 = vpop.permute.xlu0 %3169
        %3173 = vset.pattern.permute.xlu0 0
        %3174 = vperm.xlu0 %3173, %v2945
        %v3175 = vpop.permute.xlu0 %3174
        %3178 = vset.pattern.permute.xlu0 0
        %3179 = vperm.xlu0 %3178, %v2946
        %v3180 = vpop.permute.xlu0 %3179
        %3183 = vset.pattern.permute.xlu0 0
        %3184 = vperm.xlu0 %3183, %v2947
        %v3185 = vpop.permute.xlu0 %3184
        %3188 = vset.pattern.permute.xlu0 0
        %3189 = vperm.xlu0 %3188, %v2948
        %v3190 = vpop.permute.xlu0 %3189
        %3193 = vset.pattern.permute.xlu0 0
        %3194 = vperm.xlu0 %3193, %v2949
        %v3195 = vpop.permute.xlu0 %3194
        %3198 = vset.pattern.permute.xlu0 0
        %3199 = vperm.xlu0 %3198, %v2950
        %v3200 = vpop.permute.xlu0 %3199
        %3203 = vset.pattern.permute.xlu0 0
        %3204 = vperm.xlu0 %3203, %v2951
        %v3205 = vpop.permute.xlu0 %3204
        %3208 = vset.pattern.permute.xlu0 0
        %3209 = vperm.xlu0 %3208, %v2952
        %v3210 = vpop.permute.xlu0 %3209
        %3213 = vset.pattern.permute.xlu0 0
        %3214 = vperm.xlu0 %3213, %v2953
        %v3215 = vpop.permute.xlu0 %3214
        %3218 = vset.pattern.permute.xlu0 0
        %3219 = vperm.xlu0 %3218, %v2954
        %v3220 = vpop.permute.xlu0 %3219
        %3223 = vset.pattern.permute.xlu0 0
        %3224 = vperm.xlu0 %3223, %v2955
        %v3225 = vpop.permute.xlu0 %3224
        %3228 = vset.pattern.permute.xlu0 0
        %3229 = vperm.xlu0 %3228, %v2956
        %v3230 = vpop.permute.xlu0 %3229
        %3233 = vset.pattern.permute.xlu0 0
        %3234 = vperm.xlu0 %3233, %v2957
        %v3235 = vpop.permute.xlu0 %3234
        %3238 = vset.pattern.permute.xlu0 0
        %3239 = vperm.xlu0 %3238, %v2958
        %v3240 = vpop.permute.xlu0 %3239
        %3243 = vset.pattern.permute.xlu0 0
        %3244 = vperm.xlu0 %3243, %v2959
        %v3245 = vpop.permute.xlu0 %3244
        %3248 = vset.pattern.permute.xlu0 0
        %3249 = vperm.xlu0 %3248, %v2960
        %v3250 = vpop.permute.xlu0 %3249
        %3253 = vset.pattern.permute.xlu0 0
        %3254 = vperm.xlu0 %3253, %v2961
        %v3255 = vpop.permute.xlu0 %3254
        %3258 = vset.pattern.permute.xlu0 0
        %3259 = vperm.xlu0 %3258, %v2962
        %v3260 = vpop.permute.xlu0 %3259
        %3263 = vset.pattern.permute.xlu0 0
        %3264 = vperm.xlu0 %3263, %v2963
        %v3265 = vpop.permute.xlu0 %3264
        %3268 = vset.pattern.permute.xlu0 0
        %3269 = vperm.xlu0 %3268, %v2964
        %v3270 = vpop.permute.xlu0 %3269
        %3273 = vset.pattern.permute.xlu0 0
        %3274 = vperm.xlu0 %3273, %v2965
        %v3275 = vpop.permute.xlu0 %3274
        %3278 = vset.pattern.permute.xlu0 0
        %3279 = vperm.xlu0 %3278, %v2966
        %v3280 = vpop.permute.xlu0 %3279
        %3283 = vset.pattern.permute.xlu0 0
        %3284 = vperm.xlu0 %3283, %v2967
        %v3285 = vpop.permute.xlu0 %3284
        %3288 = vset.pattern.permute.xlu0 0
        %3289 = vperm.xlu0 %3288, %v2968
        %v3290 = vpop.permute.xlu0 %3289
        %3293 = vset.pattern.permute.xlu0 0
        %3294 = vperm.xlu0 %3293, %v2969
        %v3295 = vpop.permute.xlu0 %3294
        %3298 = vset.pattern.permute.xlu0 0
        %3299 = vperm.xlu0 %3298, %v2970
        %v3300 = vpop.permute.xlu0 %3299
        %3303 = vset.pattern.permute.xlu0 0
        %3304 = vperm.xlu0 %3303, %v2971
        %v3305 = vpop.permute.xlu0 %3304
        %3308 = vset.pattern.permute.xlu0 0
        %3309 = vperm.xlu0 %3308, %v2972
        %v3310 = vpop.permute.xlu0 %3309
        %3313 = vset.pattern.permute.xlu0 0
        %3314 = vperm.xlu0 %3313, %v2973
        %v3315 = vpop.permute.xlu0 %3314
        %3318 = vset.pattern.permute.xlu0 0
        %3319 = vperm.xlu0 %3318, %v2974
        %v3320 = vpop.permute.xlu0 %3319
        %3323 = vset.pattern.permute.xlu0 0
        %3324 = vperm.xlu0 %3323, %v2975
        %v3325 = vpop.permute.xlu0 %3324
        %3328 = vset.pattern.permute.xlu0 0
        %3329 = vperm.xlu0 %3328, %v2976
        %v3330 = vpop.permute.xlu0 %3329
        %3333 = vset.pattern.permute.xlu0 0
        %3334 = vperm.xlu0 %3333, %v2977
        %v3335 = vpop.permute.xlu0 %3334
        %3338 = vset.pattern.permute.xlu0 0
        %3339 = vperm.xlu0 %3338, %v2978
        %v3340 = vpop.permute.xlu0 %3339
        %3343 = vset.pattern.permute.xlu0 0
        %3344 = vperm.xlu0 %3343, %v2979
        %v3345 = vpop.permute.xlu0 %3344
        %3348 = vset.pattern.permute.xlu0 0
        %3349 = vperm.xlu0 %3348, %v2980
        %v3350 = vpop.permute.xlu0 %3349
        %3353 = vset.pattern.permute.xlu0 0
        %3354 = vperm.xlu0 %3353, %v2981
        %v3355 = vpop.permute.xlu0 %3354
        %3358 = vset.pattern.permute.xlu0 0
        %3359 = vperm.xlu0 %3358, %v2982
        %v3360 = vpop.permute.xlu0 %3359
        %3363 = vset.pattern.permute.xlu0 0
        %3364 = vperm.xlu0 %3363, %v2983
        %v3365 = vpop.permute.xlu0 %3364
        %3368 = vset.pattern.permute.xlu0 0
        %3369 = vperm.xlu0 %3368, %v2984
        %v3370 = vpop.permute.xlu0 %3369
        %3373 = vset.pattern.permute.xlu0 0
        %3374 = vperm.xlu0 %3373, %v2985
        %v3375 = vpop.permute.xlu0 %3374
        %3378 = vset.pattern.permute.xlu0 0
        %3379 = vperm.xlu0 %3378, %v2986
        %v3380 = vpop.permute.xlu0 %3379
        %3383 = vset.pattern.permute.xlu0 0
        %3384 = vperm.xlu0 %3383, %v2987
        %v3385 = vpop.permute.xlu0 %3384
        %3388 = vset.pattern.permute.xlu0 0
        %3389 = vperm.xlu0 %3388, %v2988
        %v3390 = vpop.permute.xlu0 %3389
        %3393 = vset.pattern.permute.xlu0 0
        %3394 = vperm.xlu0 %3393, %v2989
        %v3395 = vpop.permute.xlu0 %3394
        %3398 = vset.pattern.permute.xlu0 0
        %3399 = vperm.xlu0 %3398, %v2990
        %v3400 = vpop.permute.xlu0 %3399
        %3403 = vset.pattern.permute.xlu0 0
        %3404 = vperm.xlu0 %3403, %v2991
        %v3405 = vpop.permute.xlu0 %3404
        %3408 = vset.pattern.permute.xlu0 0
        %3409 = vperm.xlu0 %3408, %v2992
        %v3410 = vpop.permute.xlu0 %3409
        %3413 = vset.pattern.permute.xlu0 0
        %3414 = vperm.xlu0 %3413, %v2993
        %v3415 = vpop.permute.xlu0 %3414
        %3418 = vset.pattern.permute.xlu0 0
        %3419 = vperm.xlu0 %3418, %v2994
        %v3420 = vpop.permute.xlu0 %3419
        %3423 = vset.pattern.permute.xlu0 0
        %3424 = vperm.xlu0 %3423, %v2995
        %v3425 = vpop.permute.xlu0 %3424
        %3428 = vset.pattern.permute.xlu0 0
        %3429 = vperm.xlu0 %3428, %v2996
        %v3430 = vpop.permute.xlu0 %3429
        %3433 = vset.pattern.permute.xlu0 0
        %3434 = vperm.xlu0 %3433, %v2997
        %v3435 = vpop.permute.xlu0 %3434
        %3438 = vset.pattern.permute.xlu0 0
        %3439 = vperm.xlu0 %3438, %v2998
        %v3440 = vpop.permute.xlu0 %3439
        %3443 = vset.pattern.permute.xlu0 0
        %3444 = vperm.xlu0 %3443, %v2999
        %v3445 = vpop.permute.xlu0 %3444
        %3448 = vset.pattern.permute.xlu0 0
        %3449 = vperm.xlu0 %3448, %v3000
        %v3450 = vpop.permute.xlu0 %3449
        %3453 = vset.pattern.permute.xlu0 0
        %3454 = vperm.xlu0 %3453, %v3001
        %v3455 = vpop.permute.xlu0 %3454
        %v3457 = vmul.f32 %v1000, %v3005
        %v3458 = vmul.f32 %v1001, %v3005
        %v3459 = vmul.f32 %v1002, %v3010
        %v3460 = vmul.f32 %v1003, %v3010
        %v3461 = vmul.f32 %v1004, %v3015
        %v3462 = vmul.f32 %v1005, %v3015
        %v3463 = vmul.f32 %v1006, %v3020
        %v3464 = vmul.f32 %v1007, %v3020
        %v3465 = vmul.f32 %v1008, %v3025
        %v3466 = vmul.f32 %v1009, %v3025
        %v3467 = vmul.f32 %v1010, %v3030
        %v3468 = vmul.f32 %v1011, %v3030
        %v3469 = vmul.f32 %v1012, %v3035
        %v3470 = vmul.f32 %v1013, %v3035
        %v3471 = vmul.f32 %v1014, %v3040
        %v3472 = vmul.f32 %v1015, %v3040
        %v3473 = vmul.f32 %v1016, %v3045
        %v3474 = vmul.f32 %v1017, %v3045
        %v3475 = vmul.f32 %v1018, %v3050
        %v3476 = vmul.f32 %v1019, %v3050
        %v3477 = vmul.f32 %v1020, %v3055
        %v3478 = vmul.f32 %v1021, %v3055
        %v3479 = vmul.f32 %v1022, %v3060
        %v3480 = vmul.f32 %v1023, %v3060
        %v3481 = vmul.f32 %v1024, %v3065
        %v3482 = vmul.f32 %v1025, %v3065
        %v3483 = vmul.f32 %v1026, %v3070
        %v3484 = vmul.f32 %v1027, %v3070
        %v3485 = vmul.f32 %v1028, %v3075
        %v3486 = vmul.f32 %v1029, %v3075
        %v3487 = vmul.f32 %v1030, %v3080
        %v3488 = vmul.f32 %v1031, %v3080
        %v3489 = vmul.f32 %v1032, %v3085
        %v3490 = vmul.f32 %v1033, %v3085
        %v3491 = vmul.f32 %v1034, %v3090
        %v3492 = vmul.f32 %v1035, %v3090
        %v3493 = vmul.f32 %v1036, %v3095
        %v3494 = vmul.f32 %v1037, %v3095
        %v3495 = vmul.f32 %v1038, %v3100
        %v3496 = vmul.f32 %v1039, %v3100
        %v3497 = vmul.f32 %v1040, %v3105
        %v3498 = vmul.f32 %v1041, %v3105
        %v3499 = vmul.f32 %v1042, %v3110
        %v3500 = vmul.f32 %v1043, %v3110
        %v3501 = vmul.f32 %v1044, %v3115
        %v3502 = vmul.f32 %v1045, %v3115
        %v3503 = vmul.f32 %v1046, %v3120
        %v3504 = vmul.f32 %v1047, %v3120
        %v3505 = vmul.f32 %v1048, %v3125
        %v3506 = vmul.f32 %v1049, %v3125
        %v3507 = vmul.f32 %v1050, %v3130
        %v3508 = vmul.f32 %v1051, %v3130
        %v3509 = vmul.f32 %v1052, %v3135
        %v3510 = vmul.f32 %v1053, %v3135
        %v3511 = vmul.f32 %v1054, %v3140
        %v3512 = vmul.f32 %v1055, %v3140
        %v3513 = vmul.f32 %v1056, %v3145
        %v3514 = vmul.f32 %v1057, %v3145
        %v3515 = vmul.f32 %v1058, %v3150
        %v3516 = vmul.f32 %v1059, %v3150
        %v3517 = vmul.f32 %v1060, %v3155
        %v3518 = vmul.f32 %v1061, %v3155
        %v3519 = vmul.f32 %v1062, %v3160
        %v3520 = vmul.f32 %v1063, %v3160
        %v3521 = vmul.f32 %v1064, %v3165
        %v3522 = vmul.f32 %v1065, %v3165
        %v3523 = vmul.f32 %v1066, %v3170
        %v3524 = vmul.f32 %v1067, %v3170
        %v3525 = vmul.f32 %v1068, %v3175
        %v3526 = vmul.f32 %v1069, %v3175
        %v3527 = vmul.f32 %v1070, %v3180
        %v3528 = vmul.f32 %v1071, %v3180
        %v3529 = vmul.f32 %v1072, %v3185
        %v3530 = vmul.f32 %v1073, %v3185
        %v3531 = vmul.f32 %v1074, %v3190
        %v3532 = vmul.f32 %v1075, %v3190
        %v3533 = vmul.f32 %v1076, %v3195
        %v3534 = vmul.f32 %v1077, %v3195
        %v3535 = vmul.f32 %v1078, %v3200
        %v3536 = vmul.f32 %v1079, %v3200
        %v3537 = vmul.f32 %v1080, %v3205
        %v3538 = vmul.f32 %v1081, %v3205
        %v3539 = vmul.f32 %v1082, %v3210
        %v3540 = vmul.f32 %v1083, %v3210
        %v3541 = vmul.f32 %v1084, %v3215
        %v3542 = vmul.f32 %v1085, %v3215
        %v3543 = vmul.f32 %v1086, %v3220
        %v3544 = vmul.f32 %v1087, %v3220
        %v3545 = vmul.f32 %v1088, %v3225
        %v3546 = vmul.f32 %v1089, %v3225
        %v3547 = vmul.f32 %v1090, %v3230
        %v3548 = vmul.f32 %v1091, %v3230
        %v3549 = vmul.f32 %v1092, %v3235
        %v3550 = vmul.f32 %v1093, %v3235
        %v3551 = vmul.f32 %v1094, %v3240
        %v3552 = vmul.f32 %v1095, %v3240
        %v3553 = vmul.f32 %v1096, %v3245
        %v3554 = vmul.f32 %v1097, %v3245
        %v3555 = vmul.f32 %v1098, %v3250
        %v3556 = vmul.f32 %v1099, %v3250
        %v3557 = vmul.f32 %v1100, %v3255
        %v3558 = vmul.f32 %v1101, %v3255
        %v3559 = vmul.f32 %v1102, %v3260
        %v3560 = vmul.f32 %v1103, %v3260
        %v3561 = vmul.f32 %v1104, %v3265
        %v3562 = vmul.f32 %v1105, %v3265
        %v3563 = vmul.f32 %v1106, %v3270
        %v3564 = vmul.f32 %v1107, %v3270
        %v3565 = vmul.f32 %v1108, %v3275
        %v3566 = vmul.f32 %v1109, %v3275
        %v3567 = vmul.f32 %v1110, %v3280
        %v3568 = vmul.f32 %v1111, %v3280
        %v3569 = vmul.f32 %v1112, %v3285
        %v3570 = vmul.f32 %v1113, %v3285
        %v3571 = vmul.f32 %v1114, %v3290
        %v3572 = vmul.f32 %v1115, %v3290
        %v3573 = vmul.f32 %v1116, %v3295
        %v3574 = vmul.f32 %v1117, %v3295
        %v3575 = vmul.f32 %v1118, %v3300
        %v3576 = vmul.f32 %v1119, %v3300
        %v3577 = vmul.f32 %v1120, %v3305
        %v3578 = vmul.f32 %v1121, %v3305
        %v3579 = vmul.f32 %v1122, %v3310
        %v3580 = vmul.f32 %v1123, %v3310
        %v3581 = vmul.f32 %v1124, %v3315
        %v3582 = vmul.f32 %v1125, %v3315
        %v3583 = vmul.f32 %v1126, %v3320
        %v3584 = vmul.f32 %v1127, %v3320
        %v3585 = vmul.f32 %v1128, %v3325
        %v3586 = vmul.f32 %v1129, %v3325
        %v3587 = vmul.f32 %v1130, %v3330
        %v3588 = vmul.f32 %v1131, %v3330
        %v3589 = vmul.f32 %v1132, %v3335
        %v3590 = vmul.f32 %v1133, %v3335
        %v3591 = vmul.f32 %v1134, %v3340
        %v3592 = vmul.f32 %v1135, %v3340
        %v3593 = vmul.f32 %v1136, %v3345
        %v3594 = vmul.f32 %v1137, %v3345
        %v3595 = vmul.f32 %v1138, %v3350
        %v3596 = vmul.f32 %v1139, %v3350
        %v3597 = vmul.f32 %v1140, %v3355
        %v3598 = vmul.f32 %v1141, %v3355
        %v3599 = vmul.f32 %v1142, %v3360
        %v3600 = vmul.f32 %v1143, %v3360
        %v3601 = vmul.f32 %v1144, %v3365
        %v3602 = vmul.f32 %v1145, %v3365
        %v3603 = vmul.f32 %v1146, %v3370
        %v3604 = vmul.f32 %v1147, %v3370
        %v3605 = vmul.f32 %v1148, %v3375
        %v3606 = vmul.f32 %v1149, %v3375
        %v3607 = vmul.f32 %v1150, %v3380
        %v3608 = vmul.f32 %v1151, %v3380
        %v3609 = vmul.f32 %v1152, %v3385
        %v3610 = vmul.f32 %v1153, %v3385
        %v3611 = vmul.f32 %v1154, %v3390
        %v3612 = vmul.f32 %v1155, %v3390
        %v3613 = vmul.f32 %v1156, %v3395
        %v3614 = vmul.f32 %v1157, %v3395
        %v3615 = vmul.f32 %v1158, %v3400
        %v3616 = vmul.f32 %v1159, %v3400
        %v3617 = vmul.f32 %v1160, %v3405
        %v3618 = vmul.f32 %v1161, %v3405
        %v3619 = vmul.f32 %v1162, %v3410
        %v3620 = vmul.f32 %v1163, %v3410
        %v3621 = vmul.f32 %v1164, %v3415
        %v3622 = vmul.f32 %v1165, %v3415
        %v3623 = vmul.f32 %v1166, %v3420
        %v3624 = vmul.f32 %v1167, %v3420
        %v3625 = vmul.f32 %v1168, %v3425
        %v3626 = vmul.f32 %v1169, %v3425
        %v3627 = vmul.f32 %v1170, %v3430
        %v3628 = vmul.f32 %v1171, %v3430
        %v3629 = vmul.f32 %v1172, %v3435
        %v3630 = vmul.f32 %v1173, %v3435
        %v3631 = vmul.f32 %v1174, %v3440
        %v3632 = vmul.f32 %v1175, %v3440
        %v3633 = vmul.f32 %v1176, %v3445
        %v3634 = vmul.f32 %v1177, %v3445
        %v3635 = vmul.f32 %v1178, %v3450
        %v3636 = vmul.f32 %v1179, %v3450
        %v3637 = vmul.f32 %v1180, %v3455
        %v3638 = vmul.f32 %v1181, %v3455
        %v3639 = vld [vmem:[%s340] sm:$0xff]
        %v3640 = vld [vmem:[%s340 + $0x8] sm:$0xff]
        %v3641 = vld [vmem:[%s340 + $0x10] sm:$0xff]
        %v3642 = vld [vmem:[%s340 + $0x18] sm:$0xff]
        %v3643 = vld [vmem:[%s340 + $0x20] sm:$0xff]
        %v3644 = vld [vmem:[%s340 + $0x28] sm:$0xff]
        %v3645 = vld [vmem:[%s340 + $0x30] sm:$0xff]
        %v3646 = vld [vmem:[%s340 + $0x38] sm:$0xff]
        %v3647 = vld [vmem:[%s340 + $0x40] sm:$0xff]
        %v3648 = vld [vmem:[%s340 + $0x48] sm:$0xff]
        %v3649 = vld [vmem:[%s340 + $0x50] sm:$0xff]
        %v3650 = vld [vmem:[%s340 + $0x58] sm:$0xff]
        %v3651 = vld [vmem:[%s340 + $0x60] sm:$0xff]
        %v3652 = vld [vmem:[%s340 + $0x68] sm:$0xff]
        %v3653 = vld [vmem:[%s340 + $0x70] sm:$0xff]
        %v3654 = vld [vmem:[%s340 + $0x78] sm:$0xff]
        %v3655 = vld [vmem:[%s340 + $0x80] sm:$0xff]
        %v3656 = vld [vmem:[%s340 + $0x88] sm:$0xff]
        %v3657 = vld [vmem:[%s340 + $0x90] sm:$0xff]
        %v3658 = vld [vmem:[%s340 + $0x98] sm:$0xff]
        %v3659 = vld [vmem:[%s340 + $0xa0] sm:$0xff]
        %v3660 = vld [vmem:[%s340 + $0xa8] sm:$0xff]
        %v3661 = vld [vmem:[%s340 + $0xb0] sm:$0xff]
        %v3662 = vld [vmem:[%s340 + $0xb8] sm:$0xff]
        %v3663 = vld [vmem:[%s340 + $0xc0] sm:$0xff]
        %v3664 = vld [vmem:[%s340 + $0xc8] sm:$0xff]
        %v3665 = vld [vmem:[%s340 + $0xd0] sm:$0xff]
        %v3666 = vld [vmem:[%s340 + $0xd8] sm:$0xff]
        %v3667 = vld [vmem:[%s340 + $0xe0] sm:$0xff]
        %v3668 = vld [vmem:[%s340 + $0xe8] sm:$0xff]
        %v3669 = vld [vmem:[%s340 + $0xf0] sm:$0xff]
        %v3670 = vld [vmem:[%s340 + $0xf8] sm:$0xff]
        %v3671 = vld [vmem:[%s340 + $0x100] sm:$0xff]
        %v3672 = vld [vmem:[%s340 + $0x108] sm:$0xff]
        %v3673 = vld [vmem:[%s340 + $0x110] sm:$0xff]
        %v3674 = vld [vmem:[%s340 + $0x118] sm:$0xff]
        %v3675 = vld [vmem:[%s340 + $0x120] sm:$0xff]
        %v3676 = vld [vmem:[%s340 + $0x128] sm:$0xff]
        %v3677 = vld [vmem:[%s340 + $0x130] sm:$0xff]
        %v3678 = vld [vmem:[%s340 + $0x138] sm:$0xff]
        %v3679 = vld [vmem:[%s340 + $0x140] sm:$0xff]
        %v3680 = vld [vmem:[%s340 + $0x148] sm:$0xff]
        %v3681 = vld [vmem:[%s340 + $0x150] sm:$0xff]
        %v3682 = vld [vmem:[%s340 + $0x158] sm:$0xff]
        %v3683 = vld [vmem:[%s340 + $0x160] sm:$0xff]
        %v3684 = vld [vmem:[%s340 + $0x168] sm:$0xff]
        %v3685 = vld [vmem:[%s340 + $0x170] sm:$0xff]
        %v3686 = vld [vmem:[%s340 + $0x178] sm:$0xff]
        %v3687 = vld [vmem:[%s340 + $0x180] sm:$0xff]
        %v3688 = vld [vmem:[%s340 + $0x188] sm:$0xff]
        %v3689 = vld [vmem:[%s340 + $0x190] sm:$0xff]
        %v3690 = vld [vmem:[%s340 + $0x198] sm:$0xff]
        %v3691 = vld [vmem:[%s340 + $0x1a0] sm:$0xff]
        %v3692 = vld [vmem:[%s340 + $0x1a8] sm:$0xff]
        %v3693 = vld [vmem:[%s340 + $0x1b0] sm:$0xff]
        %v3694 = vld [vmem:[%s340 + $0x1b8] sm:$0xff]
        %v3695 = vld [vmem:[%s340 + $0x1c0] sm:$0xff]
        %v3696 = vld [vmem:[%s340 + $0x1c8] sm:$0xff]
        %v3697 = vld [vmem:[%s340 + $0x1d0] sm:$0xff]
        %v3698 = vld [vmem:[%s340 + $0x1d8] sm:$0xff]
        %v3699 = vld [vmem:[%s340 + $0x1e0] sm:$0xff]
        %v3700 = vld [vmem:[%s340 + $0x1e8] sm:$0xff]
        %v3701 = vld [vmem:[%s340 + $0x1f0] sm:$0xff]
        %v3702 = vld [vmem:[%s340 + $0x1f8] sm:$0xff]
        %v3703 = vld [vmem:[%s340 + $0x200] sm:$0xff]
        %v3704 = vld [vmem:[%s340 + $0x208] sm:$0xff]
        %v3705 = vld [vmem:[%s340 + $0x210] sm:$0xff]
        %v3706 = vld [vmem:[%s340 + $0x218] sm:$0xff]
        %v3707 = vld [vmem:[%s340 + $0x220] sm:$0xff]
        %v3708 = vld [vmem:[%s340 + $0x228] sm:$0xff]
        %v3709 = vld [vmem:[%s340 + $0x230] sm:$0xff]
        %v3710 = vld [vmem:[%s340 + $0x238] sm:$0xff]
        %v3711 = vld [vmem:[%s340 + $0x240] sm:$0xff]
        %v3712 = vld [vmem:[%s340 + $0x248] sm:$0xff]
        %v3713 = vld [vmem:[%s340 + $0x250] sm:$0xff]
        %v3714 = vld [vmem:[%s340 + $0x258] sm:$0xff]
        %v3715 = vld [vmem:[%s340 + $0x260] sm:$0xff]
        %v3716 = vld [vmem:[%s340 + $0x268] sm:$0xff]
        %v3717 = vld [vmem:[%s340 + $0x270] sm:$0xff]
        %v3718 = vld [vmem:[%s340 + $0x278] sm:$0xff]
        %v3719 = vld [vmem:[%s340 + $0x280] sm:$0xff]
        %v3720 = vld [vmem:[%s340 + $0x288] sm:$0xff]
        %v3721 = vld [vmem:[%s340 + $0x290] sm:$0xff]
        %v3722 = vld [vmem:[%s340 + $0x298] sm:$0xff]
        %v3723 = vld [vmem:[%s340 + $0x2a0] sm:$0xff]
        %v3724 = vld [vmem:[%s340 + $0x2a8] sm:$0xff]
        %v3725 = vld [vmem:[%s340 + $0x2b0] sm:$0xff]
        %v3726 = vld [vmem:[%s340 + $0x2b8] sm:$0xff]
        %v3727 = vld [vmem:[%s340 + $0x2c0] sm:$0xff]
        %v3728 = vld [vmem:[%s340 + $0x2c8] sm:$0xff]
        %v3729 = vld [vmem:[%s340 + $0x2d0] sm:$0xff]
        %3731 = vset.pattern.permute.xlu0 0
        %3732 = vperm.xlu0 %3731, %v3639
        %v3733 = vpop.permute.xlu0 %3732
        %3736 = vset.pattern.permute.xlu0 0
        %3737 = vperm.xlu0 %3736, %v3640
        %v3738 = vpop.permute.xlu0 %3737
        %3741 = vset.pattern.permute.xlu0 0
        %3742 = vperm.xlu0 %3741, %v3641
        %v3743 = vpop.permute.xlu0 %3742
        %3746 = vset.pattern.permute.xlu0 0
        %3747 = vperm.xlu0 %3746, %v3642
        %v3748 = vpop.permute.xlu0 %3747
        %3751 = vset.pattern.permute.xlu0 0
        %3752 = vperm.xlu0 %3751, %v3643
        %v3753 = vpop.permute.xlu0 %3752
        %3756 = vset.pattern.permute.xlu0 0
        %3757 = vperm.xlu0 %3756, %v3644
        %v3758 = vpop.permute.xlu0 %3757
        %3761 = vset.pattern.permute.xlu0 0
        %3762 = vperm.xlu0 %3761, %v3645
        %v3763 = vpop.permute.xlu0 %3762
        %3766 = vset.pattern.permute.xlu0 0
        %3767 = vperm.xlu0 %3766, %v3646
        %v3768 = vpop.permute.xlu0 %3767
        %3771 = vset.pattern.permute.xlu0 0
        %3772 = vperm.xlu0 %3771, %v3647
        %v3773 = vpop.permute.xlu0 %3772
        %3776 = vset.pattern.permute.xlu0 0
        %3777 = vperm.xlu0 %3776, %v3648
        %v3778 = vpop.permute.xlu0 %3777
        %3781 = vset.pattern.permute.xlu0 0
        %3782 = vperm.xlu0 %3781, %v3649
        %v3783 = vpop.permute.xlu0 %3782
        %3786 = vset.pattern.permute.xlu0 0
        %3787 = vperm.xlu0 %3786, %v3650
        %v3788 = vpop.permute.xlu0 %3787
        %3791 = vset.pattern.permute.xlu0 0
        %3792 = vperm.xlu0 %3791, %v3651
        %v3793 = vpop.permute.xlu0 %3792
        %3796 = vset.pattern.permute.xlu0 0
        %3797 = vperm.xlu0 %3796, %v3652
        %v3798 = vpop.permute.xlu0 %3797
        %3801 = vset.pattern.permute.xlu0 0
        %3802 = vperm.xlu0 %3801, %v3653
        %v3803 = vpop.permute.xlu0 %3802
        %3806 = vset.pattern.permute.xlu0 0
        %3807 = vperm.xlu0 %3806, %v3654
        %v3808 = vpop.permute.xlu0 %3807
        %3811 = vset.pattern.permute.xlu0 0
        %3812 = vperm.xlu0 %3811, %v3655
        %v3813 = vpop.permute.xlu0 %3812
        %3816 = vset.pattern.permute.xlu0 0
        %3817 = vperm.xlu0 %3816, %v3656
        %v3818 = vpop.permute.xlu0 %3817
        %3821 = vset.pattern.permute.xlu0 0
        %3822 = vperm.xlu0 %3821, %v3657
        %v3823 = vpop.permute.xlu0 %3822
        %3826 = vset.pattern.permute.xlu0 0
        %3827 = vperm.xlu0 %3826, %v3658
        %v3828 = vpop.permute.xlu0 %3827
        %3831 = vset.pattern.permute.xlu0 0
        %3832 = vperm.xlu0 %3831, %v3659
        %v3833 = vpop.permute.xlu0 %3832
        %3836 = vset.pattern.permute.xlu0 0
        %3837 = vperm.xlu0 %3836, %v3660
        %v3838 = vpop.permute.xlu0 %3837
        %3841 = vset.pattern.permute.xlu0 0
        %3842 = vperm.xlu0 %3841, %v3661
        %v3843 = vpop.permute.xlu0 %3842
        %3846 = vset.pattern.permute.xlu0 0
        %3847 = vperm.xlu0 %3846, %v3662
        %v3848 = vpop.permute.xlu0 %3847
        %3851 = vset.pattern.permute.xlu0 0
        %3852 = vperm.xlu0 %3851, %v3663
        %v3853 = vpop.permute.xlu0 %3852
        %3856 = vset.pattern.permute.xlu0 0
        %3857 = vperm.xlu0 %3856, %v3664
        %v3858 = vpop.permute.xlu0 %3857
        %3861 = vset.pattern.permute.xlu0 0
        %3862 = vperm.xlu0 %3861, %v3665
        %v3863 = vpop.permute.xlu0 %3862
        %3866 = vset.pattern.permute.xlu0 0
        %3867 = vperm.xlu0 %3866, %v3666
        %v3868 = vpop.permute.xlu0 %3867
        %3871 = vset.pattern.permute.xlu0 0
        %3872 = vperm.xlu0 %3871, %v3667
        %v3873 = vpop.permute.xlu0 %3872
        %3876 = vset.pattern.permute.xlu0 0
        %3877 = vperm.xlu0 %3876, %v3668
        %v3878 = vpop.permute.xlu0 %3877
        %3881 = vset.pattern.permute.xlu0 0
        %3882 = vperm.xlu0 %3881, %v3669
        %v3883 = vpop.permute.xlu0 %3882
        %3886 = vset.pattern.permute.xlu0 0
        %3887 = vperm.xlu0 %3886, %v3670
        %v3888 = vpop.permute.xlu0 %3887
        %3891 = vset.pattern.permute.xlu0 0
        %3892 = vperm.xlu0 %3891, %v3671
        %v3893 = vpop.permute.xlu0 %3892
        %3896 = vset.pattern.permute.xlu0 0
        %3897 = vperm.xlu0 %3896, %v3672
        %v3898 = vpop.permute.xlu0 %3897
        %3901 = vset.pattern.permute.xlu0 0
        %3902 = vperm.xlu0 %3901, %v3673
        %v3903 = vpop.permute.xlu0 %3902
        %3906 = vset.pattern.permute.xlu0 0
        %3907 = vperm.xlu0 %3906, %v3674
        %v3908 = vpop.permute.xlu0 %3907
        %3911 = vset.pattern.permute.xlu0 0
        %3912 = vperm.xlu0 %3911, %v3675
        %v3913 = vpop.permute.xlu0 %3912
        %3916 = vset.pattern.permute.xlu0 0
        %3917 = vperm.xlu0 %3916, %v3676
        %v3918 = vpop.permute.xlu0 %3917
        %3921 = vset.pattern.permute.xlu0 0
        %3922 = vperm.xlu0 %3921, %v3677
        %v3923 = vpop.permute.xlu0 %3922
        %3926 = vset.pattern.permute.xlu0 0
        %3927 = vperm.xlu0 %3926, %v3678
        %v3928 = vpop.permute.xlu0 %3927
        %3931 = vset.pattern.permute.xlu0 0
        %3932 = vperm.xlu0 %3931, %v3679
        %v3933 = vpop.permute.xlu0 %3932
        %3936 = vset.pattern.permute.xlu0 0
        %3937 = vperm.xlu0 %3936, %v3680
        %v3938 = vpop.permute.xlu0 %3937
        %3941 = vset.pattern.permute.xlu0 0
        %3942 = vperm.xlu0 %3941, %v3681
        %v3943 = vpop.permute.xlu0 %3942
        %3946 = vset.pattern.permute.xlu0 0
        %3947 = vperm.xlu0 %3946, %v3682
        %v3948 = vpop.permute.xlu0 %3947
        %3951 = vset.pattern.permute.xlu0 0
        %3952 = vperm.xlu0 %3951, %v3683
        %v3953 = vpop.permute.xlu0 %3952
        %3956 = vset.pattern.permute.xlu0 0
        %3957 = vperm.xlu0 %3956, %v3684
        %v3958 = vpop.permute.xlu0 %3957
        %3961 = vset.pattern.permute.xlu0 0
        %3962 = vperm.xlu0 %3961, %v3685
        %v3963 = vpop.permute.xlu0 %3962
        %3966 = vset.pattern.permute.xlu0 0
        %3967 = vperm.xlu0 %3966, %v3686
        %v3968 = vpop.permute.xlu0 %3967
        %3971 = vset.pattern.permute.xlu0 0
        %3972 = vperm.xlu0 %3971, %v3687
        %v3973 = vpop.permute.xlu0 %3972
        %3976 = vset.pattern.permute.xlu0 0
        %3977 = vperm.xlu0 %3976, %v3688
        %v3978 = vpop.permute.xlu0 %3977
        %3981 = vset.pattern.permute.xlu0 0
        %3982 = vperm.xlu0 %3981, %v3689
        %v3983 = vpop.permute.xlu0 %3982
        %3986 = vset.pattern.permute.xlu0 0
        %3987 = vperm.xlu0 %3986, %v3690
        %v3988 = vpop.permute.xlu0 %3987
        %3991 = vset.pattern.permute.xlu0 0
        %3992 = vperm.xlu0 %3991, %v3691
        %v3993 = vpop.permute.xlu0 %3992
        %3996 = vset.pattern.permute.xlu0 0
        %3997 = vperm.xlu0 %3996, %v3692
        %v3998 = vpop.permute.xlu0 %3997
        %4001 = vset.pattern.permute.xlu0 0
        %4002 = vperm.xlu0 %4001, %v3693
        %v4003 = vpop.permute.xlu0 %4002
        %4006 = vset.pattern.permute.xlu0 0
        %4007 = vperm.xlu0 %4006, %v3694
        %v4008 = vpop.permute.xlu0 %4007
        %4011 = vset.pattern.permute.xlu0 0
        %4012 = vperm.xlu0 %4011, %v3695
        %v4013 = vpop.permute.xlu0 %4012
        %4016 = vset.pattern.permute.xlu0 0
        %4017 = vperm.xlu0 %4016, %v3696
        %v4018 = vpop.permute.xlu0 %4017
        %4021 = vset.pattern.permute.xlu0 0
        %4022 = vperm.xlu0 %4021, %v3697
        %v4023 = vpop.permute.xlu0 %4022
        %4026 = vset.pattern.permute.xlu0 0
        %4027 = vperm.xlu0 %4026, %v3698
        %v4028 = vpop.permute.xlu0 %4027
        %4031 = vset.pattern.permute.xlu0 0
        %4032 = vperm.xlu0 %4031, %v3699
        %v4033 = vpop.permute.xlu0 %4032
        %4036 = vset.pattern.permute.xlu0 0
        %4037 = vperm.xlu0 %4036, %v3700
        %v4038 = vpop.permute.xlu0 %4037
        %4041 = vset.pattern.permute.xlu0 0
        %4042 = vperm.xlu0 %4041, %v3701
        %v4043 = vpop.permute.xlu0 %4042
        %4046 = vset.pattern.permute.xlu0 0
        %4047 = vperm.xlu0 %4046, %v3702
        %v4048 = vpop.permute.xlu0 %4047
        %4051 = vset.pattern.permute.xlu0 0
        %4052 = vperm.xlu0 %4051, %v3703
        %v4053 = vpop.permute.xlu0 %4052
        %4056 = vset.pattern.permute.xlu0 0
        %4057 = vperm.xlu0 %4056, %v3704
        %v4058 = vpop.permute.xlu0 %4057
        %4061 = vset.pattern.permute.xlu0 0
        %4062 = vperm.xlu0 %4061, %v3705
        %v4063 = vpop.permute.xlu0 %4062
        %4066 = vset.pattern.permute.xlu0 0
        %4067 = vperm.xlu0 %4066, %v3706
        %v4068 = vpop.permute.xlu0 %4067
        %4071 = vset.pattern.permute.xlu0 0
        %4072 = vperm.xlu0 %4071, %v3707
        %v4073 = vpop.permute.xlu0 %4072
        %4076 = vset.pattern.permute.xlu0 0
        %4077 = vperm.xlu0 %4076, %v3708
        %v4078 = vpop.permute.xlu0 %4077
        %4081 = vset.pattern.permute.xlu0 0
        %4082 = vperm.xlu0 %4081, %v3709
        %v4083 = vpop.permute.xlu0 %4082
        %4086 = vset.pattern.permute.xlu0 0
        %4087 = vperm.xlu0 %4086, %v3710
        %v4088 = vpop.permute.xlu0 %4087
        %4091 = vset.pattern.permute.xlu0 0
        %4092 = vperm.xlu0 %4091, %v3711
        %v4093 = vpop.permute.xlu0 %4092
        %4096 = vset.pattern.permute.xlu0 0
        %4097 = vperm.xlu0 %4096, %v3712
        %v4098 = vpop.permute.xlu0 %4097
        %4101 = vset.pattern.permute.xlu0 0
        %4102 = vperm.xlu0 %4101, %v3713
        %v4103 = vpop.permute.xlu0 %4102
        %4106 = vset.pattern.permute.xlu0 0
        %4107 = vperm.xlu0 %4106, %v3714
        %v4108 = vpop.permute.xlu0 %4107
        %4111 = vset.pattern.permute.xlu0 0
        %4112 = vperm.xlu0 %4111, %v3715
        %v4113 = vpop.permute.xlu0 %4112
        %4116 = vset.pattern.permute.xlu0 0
        %4117 = vperm.xlu0 %4116, %v3716
        %v4118 = vpop.permute.xlu0 %4117
        %4121 = vset.pattern.permute.xlu0 0
        %4122 = vperm.xlu0 %4121, %v3717
        %v4123 = vpop.permute.xlu0 %4122
        %4126 = vset.pattern.permute.xlu0 0
        %4127 = vperm.xlu0 %4126, %v3718
        %v4128 = vpop.permute.xlu0 %4127
        %4131 = vset.pattern.permute.xlu0 0
        %4132 = vperm.xlu0 %4131, %v3719
        %v4133 = vpop.permute.xlu0 %4132
        %4136 = vset.pattern.permute.xlu0 0
        %4137 = vperm.xlu0 %4136, %v3720
        %v4138 = vpop.permute.xlu0 %4137
        %4141 = vset.pattern.permute.xlu0 0
        %4142 = vperm.xlu0 %4141, %v3721
        %v4143 = vpop.permute.xlu0 %4142
        %4146 = vset.pattern.permute.xlu0 0
        %4147 = vperm.xlu0 %4146, %v3722
        %v4148 = vpop.permute.xlu0 %4147
        %4151 = vset.pattern.permute.xlu0 0
        %4152 = vperm.xlu0 %4151, %v3723
        %v4153 = vpop.permute.xlu0 %4152
        %4156 = vset.pattern.permute.xlu0 0
        %4157 = vperm.xlu0 %4156, %v3724
        %v4158 = vpop.permute.xlu0 %4157
        %4161 = vset.pattern.permute.xlu0 0
        %4162 = vperm.xlu0 %4161, %v3725
        %v4163 = vpop.permute.xlu0 %4162
        %4166 = vset.pattern.permute.xlu0 0
        %4167 = vperm.xlu0 %4166, %v3726
        %v4168 = vpop.permute.xlu0 %4167
        %4171 = vset.pattern.permute.xlu0 0
        %4172 = vperm.xlu0 %4171, %v3727
        %v4173 = vpop.permute.xlu0 %4172
        %4176 = vset.pattern.permute.xlu0 0
        %4177 = vperm.xlu0 %4176, %v3728
        %v4178 = vpop.permute.xlu0 %4177
        %4181 = vset.pattern.permute.xlu0 0
        %4182 = vperm.xlu0 %4181, %v3729
        %v4183 = vpop.permute.xlu0 %4182
        %v4185 = vadd.f32 %v3457, %v3733
        %v4186 = vadd.f32 %v3458, %v3733
        %v4187 = vadd.f32 %v3459, %v3738
        %v4188 = vadd.f32 %v3460, %v3738
        %v4189 = vadd.f32 %v3461, %v3743
        %v4190 = vadd.f32 %v3462, %v3743
        %v4191 = vadd.f32 %v3463, %v3748
        %v4192 = vadd.f32 %v3464, %v3748
        %v4193 = vadd.f32 %v3465, %v3753
        %v4194 = vadd.f32 %v3466, %v3753
        %v4195 = vadd.f32 %v3467, %v3758
        %v4196 = vadd.f32 %v3468, %v3758
        %v4197 = vadd.f32 %v3469, %v3763
        %v4198 = vadd.f32 %v3470, %v3763
        %v4199 = vadd.f32 %v3471, %v3768
        %v4200 = vadd.f32 %v3472, %v3768
        %v4201 = vadd.f32 %v3473, %v3773
        %v4202 = vadd.f32 %v3474, %v3773
        %v4203 = vadd.f32 %v3475, %v3778
        %v4204 = vadd.f32 %v3476, %v3778
        %v4205 = vadd.f32 %v3477, %v3783
        %v4206 = vadd.f32 %v3478, %v3783
        %v4207 = vadd.f32 %v3479, %v3788
        %v4208 = vadd.f32 %v3480, %v3788
        %v4209 = vadd.f32 %v3481, %v3793
        %v4210 = vadd.f32 %v3482, %v3793
        %v4211 = vadd.f32 %v3483, %v3798
        %v4212 = vadd.f32 %v3484, %v3798
        %v4213 = vadd.f32 %v3485, %v3803
        %v4214 = vadd.f32 %v3486, %v3803
        %v4215 = vadd.f32 %v3487, %v3808
        %v4216 = vadd.f32 %v3488, %v3808
        %v4217 = vadd.f32 %v3489, %v3813
        %v4218 = vadd.f32 %v3490, %v3813
        %v4219 = vadd.f32 %v3491, %v3818
        %v4220 = vadd.f32 %v3492, %v3818
        %v4221 = vadd.f32 %v3493, %v3823
        %v4222 = vadd.f32 %v3494, %v3823
        %v4223 = vadd.f32 %v3495, %v3828
        %v4224 = vadd.f32 %v3496, %v3828
        %v4225 = vadd.f32 %v3497, %v3833
        %v4226 = vadd.f32 %v3498, %v3833
        %v4227 = vadd.f32 %v3499, %v3838
        %v4228 = vadd.f32 %v3500, %v3838
        %v4229 = vadd.f32 %v3501, %v3843
        %v4230 = vadd.f32 %v3502, %v3843
        %v4231 = vadd.f32 %v3503, %v3848
        %v4232 = vadd.f32 %v3504, %v3848
        %v4233 = vadd.f32 %v3505, %v3853
        %v4234 = vadd.f32 %v3506, %v3853
        %v4235 = vadd.f32 %v3507, %v3858
        %v4236 = vadd.f32 %v3508, %v3858
        %v4237 = vadd.f32 %v3509, %v3863
        %v4238 = vadd.f32 %v3510, %v3863
        %v4239 = vadd.f32 %v3511, %v3868
        %v4240 = vadd.f32 %v3512, %v3868
        %v4241 = vadd.f32 %v3513, %v3873
        %v4242 = vadd.f32 %v3514, %v3873
        %v4243 = vadd.f32 %v3515, %v3878
        %v4244 = vadd.f32 %v3516, %v3878
        %v4245 = vadd.f32 %v3517, %v3883
        %v4246 = vadd.f32 %v3518, %v3883
        %v4247 = vadd.f32 %v3519, %v3888
        %v4248 = vadd.f32 %v3520, %v3888
        %v4249 = vadd.f32 %v3521, %v3893
        %v4250 = vadd.f32 %v3522, %v3893
        %v4251 = vadd.f32 %v3523, %v3898
        %v4252 = vadd.f32 %v3524, %v3898
        %v4253 = vadd.f32 %v3525, %v3903
        %v4254 = vadd.f32 %v3526, %v3903
        %v4255 = vadd.f32 %v3527, %v3908
        %v4256 = vadd.f32 %v3528, %v3908
        %v4257 = vadd.f32 %v3529, %v3913
        %v4258 = vadd.f32 %v3530, %v3913
        %v4259 = vadd.f32 %v3531, %v3918
        %v4260 = vadd.f32 %v3532, %v3918
        %v4261 = vadd.f32 %v3533, %v3923
        %v4262 = vadd.f32 %v3534, %v3923
        %v4263 = vadd.f32 %v3535, %v3928
        %v4264 = vadd.f32 %v3536, %v3928
        %v4265 = vadd.f32 %v3537, %v3933
        %v4266 = vadd.f32 %v3538, %v3933
        %v4267 = vadd.f32 %v3539, %v3938
        %v4268 = vadd.f32 %v3540, %v3938
        %v4269 = vadd.f32 %v3541, %v3943
        %v4270 = vadd.f32 %v3542, %v3943
        %v4271 = vadd.f32 %v3543, %v3948
        %v4272 = vadd.f32 %v3544, %v3948
        %v4273 = vadd.f32 %v3545, %v3953
        %v4274 = vadd.f32 %v3546, %v3953
        %v4275 = vadd.f32 %v3547, %v3958
        %v4276 = vadd.f32 %v3548, %v3958
        %v4277 = vadd.f32 %v3549, %v3963
        %v4278 = vadd.f32 %v3550, %v3963
        %v4279 = vadd.f32 %v3551, %v3968
        %v4280 = vadd.f32 %v3552, %v3968
        %v4281 = vadd.f32 %v3553, %v3973
        %v4282 = vadd.f32 %v3554, %v3973
        %v4283 = vadd.f32 %v3555, %v3978
        %v4284 = vadd.f32 %v3556, %v3978
        %v4285 = vadd.f32 %v3557, %v3983
        %v4286 = vadd.f32 %v3558, %v3983
        %v4287 = vadd.f32 %v3559, %v3988
        %v4288 = vadd.f32 %v3560, %v3988
        %v4289 = vadd.f32 %v3561, %v3993
        %v4290 = vadd.f32 %v3562, %v3993
        %v4291 = vadd.f32 %v3563, %v3998
        %v4292 = vadd.f32 %v3564, %v3998
        %v4293 = vadd.f32 %v3565, %v4003
        %v4294 = vadd.f32 %v3566, %v4003
        %v4295 = vadd.f32 %v3567, %v4008
        %v4296 = vadd.f32 %v3568, %v4008
        %v4297 = vadd.f32 %v3569, %v4013
        %v4298 = vadd.f32 %v3570, %v4013
        %v4299 = vadd.f32 %v3571, %v4018
        %v4300 = vadd.f32 %v3572, %v4018
        %v4301 = vadd.f32 %v3573, %v4023
        %v4302 = vadd.f32 %v3574, %v4023
        %v4303 = vadd.f32 %v3575, %v4028
        %v4304 = vadd.f32 %v3576, %v4028
        %v4305 = vadd.f32 %v3577, %v4033
        %v4306 = vadd.f32 %v3578, %v4033
        %v4307 = vadd.f32 %v3579, %v4038
        %v4308 = vadd.f32 %v3580, %v4038
        %v4309 = vadd.f32 %v3581, %v4043
        %v4310 = vadd.f32 %v3582, %v4043
        %v4311 = vadd.f32 %v3583, %v4048
        %v4312 = vadd.f32 %v3584, %v4048
        %v4313 = vadd.f32 %v3585, %v4053
        %v4314 = vadd.f32 %v3586, %v4053
        %v4315 = vadd.f32 %v3587, %v4058
        %v4316 = vadd.f32 %v3588, %v4058
        %v4317 = vadd.f32 %v3589, %v4063
        %v4318 = vadd.f32 %v3590, %v4063
        %v4319 = vadd.f32 %v3591, %v4068
        %v4320 = vadd.f32 %v3592, %v4068
        %v4321 = vadd.f32 %v3593, %v4073
        %v4322 = vadd.f32 %v3594, %v4073
        %v4323 = vadd.f32 %v3595, %v4078
        %v4324 = vadd.f32 %v3596, %v4078
        %v4325 = vadd.f32 %v3597, %v4083
        %v4326 = vadd.f32 %v3598, %v4083
        %v4327 = vadd.f32 %v3599, %v4088
        %v4328 = vadd.f32 %v3600, %v4088
        %v4329 = vadd.f32 %v3601, %v4093
        %v4330 = vadd.f32 %v3602, %v4093
        %v4331 = vadd.f32 %v3603, %v4098
        %v4332 = vadd.f32 %v3604, %v4098
        %v4333 = vadd.f32 %v3605, %v4103
        %v4334 = vadd.f32 %v3606, %v4103
        %v4335 = vadd.f32 %v3607, %v4108
        %v4336 = vadd.f32 %v3608, %v4108
        %v4337 = vadd.f32 %v3609, %v4113
        %v4338 = vadd.f32 %v3610, %v4113
        %v4339 = vadd.f32 %v3611, %v4118
        %v4340 = vadd.f32 %v3612, %v4118
        %v4341 = vadd.f32 %v3613, %v4123
        %v4342 = vadd.f32 %v3614, %v4123
        %v4343 = vadd.f32 %v3615, %v4128
        %v4344 = vadd.f32 %v3616, %v4128
        %v4345 = vadd.f32 %v3617, %v4133
        %v4346 = vadd.f32 %v3618, %v4133
        %v4347 = vadd.f32 %v3619, %v4138
        %v4348 = vadd.f32 %v3620, %v4138
        %v4349 = vadd.f32 %v3621, %v4143
        %v4350 = vadd.f32 %v3622, %v4143
        %v4351 = vadd.f32 %v3623, %v4148
        %v4352 = vadd.f32 %v3624, %v4148
        %v4353 = vadd.f32 %v3625, %v4153
        %v4354 = vadd.f32 %v3626, %v4153
        %v4355 = vadd.f32 %v3627, %v4158
        %v4356 = vadd.f32 %v3628, %v4158
        %v4357 = vadd.f32 %v3629, %v4163
        %v4358 = vadd.f32 %v3630, %v4163
        %v4359 = vadd.f32 %v3631, %v4168
        %v4360 = vadd.f32 %v3632, %v4168
        %v4361 = vadd.f32 %v3633, %v4173
        %v4362 = vadd.f32 %v3634, %v4173
        %v4363 = vadd.f32 %v3635, %v4178
        %v4364 = vadd.f32 %v3636, %v4178
        %v4365 = vadd.f32 %v3637, %v4183
        %v4366 = vadd.f32 %v3638, %v4183
        %v4367 = vmax.f32 %v4185, 0.0
        %v4368 = vmax.f32 %v4186, 0.0
        %v4369 = vmax.f32 %v4187, 0.0
        %v4370 = vmax.f32 %v4188, 0.0
        %v4371 = vmax.f32 %v4189, 0.0
        %v4372 = vmax.f32 %v4190, 0.0
        %v4373 = vmax.f32 %v4191, 0.0
        %v4374 = vmax.f32 %v4192, 0.0
        %v4375 = vmax.f32 %v4193, 0.0
        %v4376 = vmax.f32 %v4194, 0.0
        %v4377 = vmax.f32 %v4195, 0.0
        %v4378 = vmax.f32 %v4196, 0.0
        %v4379 = vmax.f32 %v4197, 0.0
        %v4380 = vmax.f32 %v4198, 0.0
        %v4381 = vmax.f32 %v4199, 0.0
        %v4382 = vmax.f32 %v4200, 0.0
        %v4383 = vmax.f32 %v4201, 0.0
        %v4384 = vmax.f32 %v4202, 0.0
        %v4385 = vmax.f32 %v4203, 0.0
        %v4386 = vmax.f32 %v4204, 0.0
        %v4387 = vmax.f32 %v4205, 0.0
        %v4388 = vmax.f32 %v4206, 0.0
        %v4389 = vmax.f32 %v4207, 0.0
        %v4390 = vmax.f32 %v4208, 0.0
        %v4391 = vmax.f32 %v4209, 0.0
        %v4392 = vmax.f32 %v4210, 0.0
        %v4393 = vmax.f32 %v4211, 0.0
        %v4394 = vmax.f32 %v4212, 0.0
        %v4395 = vmax.f32 %v4213, 0.0
        %v4396 = vmax.f32 %v4214, 0.0
        %v4397 = vmax.f32 %v4215, 0.0
        %v4398 = vmax.f32 %v4216, 0.0
        %v4399 = vmax.f32 %v4217, 0.0
        %v4400 = vmax.f32 %v4218, 0.0
        %v4401 = vmax.f32 %v4219, 0.0
        %v4402 = vmax.f32 %v4220, 0.0
        %v4403 = vmax.f32 %v4221, 0.0
        %v4404 = vmax.f32 %v4222, 0.0
        %v4405 = vmax.f32 %v4223, 0.0
        %v4406 = vmax.f32 %v4224, 0.0
        %v4407 = vmax.f32 %v4225, 0.0
        %v4408 = vmax.f32 %v4226, 0.0
        %v4409 = vmax.f32 %v4227, 0.0
        %v4410 = vmax.f32 %v4228, 0.0
        %v4411 = vmax.f32 %v4229, 0.0
        %v4412 = vmax.f32 %v4230, 0.0
        %v4413 = vmax.f32 %v4231, 0.0
        %v4414 = vmax.f32 %v4232, 0.0
        %v4415 = vmax.f32 %v4233, 0.0
        %v4416 = vmax.f32 %v4234, 0.0
        %v4417 = vmax.f32 %v4235, 0.0
        %v4418 = vmax.f32 %v4236, 0.0
        %v4419 = vmax.f32 %v4237, 0.0
        %v4420 = vmax.f32 %v4238, 0.0
        %v4421 = vmax.f32 %v4239, 0.0
        %v4422 = vmax.f32 %v4240, 0.0
        %v4423 = vmax.f32 %v4241, 0.0
        %v4424 = vmax.f32 %v4242, 0.0
        %v4425 = vmax.f32 %v4243, 0.0
        %v4426 = vmax.f32 %v4244, 0.0
        %v4427 = vmax.f32 %v4245, 0.0
        %v4428 = vmax.f32 %v4246, 0.0
        %v4429 = vmax.f32 %v4247, 0.0
        %v4430 = vmax.f32 %v4248, 0.0
        %v4431 = vmax.f32 %v4249, 0.0
        %v4432 = vmax.f32 %v4250, 0.0
        %v4433 = vmax.f32 %v4251, 0.0
        %v4434 = vmax.f32 %v4252, 0.0
        %v4435 = vmax.f32 %v4253, 0.0
        %v4436 = vmax.f32 %v4254, 0.0
        %v4437 = vmax.f32 %v4255, 0.0
        %v4438 = vmax.f32 %v4256, 0.0
        %v4439 = vmax.f32 %v4257, 0.0
        %v4440 = vmax.f32 %v4258, 0.0
        %v4441 = vmax.f32 %v4259, 0.0
        %v4442 = vmax.f32 %v4260, 0.0
        %v4443 = vmax.f32 %v4261, 0.0
        %v4444 = vmax.f32 %v4262, 0.0
        %v4445 = vmax.f32 %v4263, 0.0
        %v4446 = vmax.f32 %v4264, 0.0
        %v4447 = vmax.f32 %v4265, 0.0
        %v4448 = vmax.f32 %v4266, 0.0
        %v4449 = vmax.f32 %v4267, 0.0
        %v4450 = vmax.f32 %v4268, 0.0
        %v4451 = vmax.f32 %v4269, 0.0
        %v4452 = vmax.f32 %v4270, 0.0
        %v4453 = vmax.f32 %v4271, 0.0
        %v4454 = vmax.f32 %v4272, 0.0
        %v4455 = vmax.f32 %v4273, 0.0
        %v4456 = vmax.f32 %v4274, 0.0
        %v4457 = vmax.f32 %v4275, 0.0
        %v4458 = vmax.f32 %v4276, 0.0
        %v4459 = vmax.f32 %v4277, 0.0
        %v4460 = vmax.f32 %v4278, 0.0
        %v4461 = vmax.f32 %v4279, 0.0
        %v4462 = vmax.f32 %v4280, 0.0
        %v4463 = vmax.f32 %v4281, 0.0
        %v4464 = vmax.f32 %v4282, 0.0
        %v4465 = vmax.f32 %v4283, 0.0
        %v4466 = vmax.f32 %v4284, 0.0
        %v4467 = vmax.f32 %v4285, 0.0
        %v4468 = vmax.f32 %v4286, 0.0
        %v4469 = vmax.f32 %v4287, 0.0
        %v4470 = vmax.f32 %v4288, 0.0
        %v4471 = vmax.f32 %v4289, 0.0
        %v4472 = vmax.f32 %v4290, 0.0
        %v4473 = vmax.f32 %v4291, 0.0
        %v4474 = vmax.f32 %v4292, 0.0
        %v4475 = vmax.f32 %v4293, 0.0
        %v4476 = vmax.f32 %v4294, 0.0
        %v4477 = vmax.f32 %v4295, 0.0
        %v4478 = vmax.f32 %v4296, 0.0
        %v4479 = vmax.f32 %v4297, 0.0
        %v4480 = vmax.f32 %v4298, 0.0
        %v4481 = vmax.f32 %v4299, 0.0
        %v4482 = vmax.f32 %v4300, 0.0
        %v4483 = vmax.f32 %v4301, 0.0
        %v4484 = vmax.f32 %v4302, 0.0
        %v4485 = vmax.f32 %v4303, 0.0
        %v4486 = vmax.f32 %v4304, 0.0
        %v4487 = vmax.f32 %v4305, 0.0
        %v4488 = vmax.f32 %v4306, 0.0
        %v4489 = vmax.f32 %v4307, 0.0
        %v4490 = vmax.f32 %v4308, 0.0
        %v4491 = vmax.f32 %v4309, 0.0
        %v4492 = vmax.f32 %v4310, 0.0
        %v4493 = vmax.f32 %v4311, 0.0
        %v4494 = vmax.f32 %v4312, 0.0
        %v4495 = vmax.f32 %v4313, 0.0
        %v4496 = vmax.f32 %v4314, 0.0
        %v4497 = vmax.f32 %v4315, 0.0
        %v4498 = vmax.f32 %v4316, 0.0
        %v4499 = vmax.f32 %v4317, 0.0
        %v4500 = vmax.f32 %v4318, 0.0
        %v4501 = vmax.f32 %v4319, 0.0
        %v4502 = vmax.f32 %v4320, 0.0
        %v4503 = vmax.f32 %v4321, 0.0
        %v4504 = vmax.f32 %v4322, 0.0
        %v4505 = vmax.f32 %v4323, 0.0
        %v4506 = vmax.f32 %v4324, 0.0
        %v4507 = vmax.f32 %v4325, 0.0
        %v4508 = vmax.f32 %v4326, 0.0
        %v4509 = vmax.f32 %v4327, 0.0
        %v4510 = vmax.f32 %v4328, 0.0
        %v4511 = vmax.f32 %v4329, 0.0
        %v4512 = vmax.f32 %v4330, 0.0
        %v4513 = vmax.f32 %v4331, 0.0
        %v4514 = vmax.f32 %v4332, 0.0
        %v4515 = vmax.f32 %v4333, 0.0
        %v4516 = vmax.f32 %v4334, 0.0
        %v4517 = vmax.f32 %v4335, 0.0
        %v4518 = vmax.f32 %v4336, 0.0
        %v4519 = vmax.f32 %v4337, 0.0
        %v4520 = vmax.f32 %v4338, 0.0
        %v4521 = vmax.f32 %v4339, 0.0
        %v4522 = vmax.f32 %v4340, 0.0
        %v4523 = vmax.f32 %v4341, 0.0
        %v4524 = vmax.f32 %v4342, 0.0
        %v4525 = vmax.f32 %v4343, 0.0
        %v4526 = vmax.f32 %v4344, 0.0
        %v4527 = vmax.f32 %v4345, 0.0
        %v4528 = vmax.f32 %v4346, 0.0
        %v4529 = vmax.f32 %v4347, 0.0
        %v4530 = vmax.f32 %v4348, 0.0
        %v4531 = vmax.f32 %v4349, 0.0
        %v4532 = vmax.f32 %v4350, 0.0
        %v4533 = vmax.f32 %v4351, 0.0
        %v4534 = vmax.f32 %v4352, 0.0
        %v4535 = vmax.f32 %v4353, 0.0
        %v4536 = vmax.f32 %v4354, 0.0
        %v4537 = vmax.f32 %v4355, 0.0
        %v4538 = vmax.f32 %v4356, 0.0
        %v4539 = vmax.f32 %v4357, 0.0
        %v4540 = vmax.f32 %v4358, 0.0
        %v4541 = vmax.f32 %v4359, 0.0
        %v4542 = vmax.f32 %v4360, 0.0
        %v4543 = vmax.f32 %v4361, 0.0
        %v4544 = vmax.f32 %v4362, 0.0
        %v4545 = vmax.f32 %v4363, 0.0
        %v4546 = vmax.f32 %v4364, 0.0
        %v4547 = vmax.f32 %v4365, 0.0
        %v4548 = vmax.f32 %v4366, 0.0
        %4549 = vst [vmem:[%s288] sm:$0xff] %v4367
        %4550 = vst.msk [vmem:[%s288 + $0x8] sm:$0xff] %vm544, %v4368
        %4551 = vst [vmem:[%s288 + $0x10] sm:$0xff] %v4369
        %4552 = vst.msk [vmem:[%s288 + $0x18] sm:$0xff] %vm544, %v4370
        %4553 = vst [vmem:[%s288 + $0x20] sm:$0xff] %v4371
        %4554 = vst.msk [vmem:[%s288 + $0x28] sm:$0xff] %vm544, %v4372
        %4555 = vst [vmem:[%s288 + $0x30] sm:$0xff] %v4373
        %4556 = vst.msk [vmem:[%s288 + $0x38] sm:$0xff] %vm544, %v4374
        %4557 = vst [vmem:[%s288 + $0x40] sm:$0xff] %v4375
        %4558 = vst.msk [vmem:[%s288 + $0x48] sm:$0xff] %vm544, %v4376
        %4559 = vst [vmem:[%s288 + $0x50] sm:$0xff] %v4377
        %4560 = vst.msk [vmem:[%s288 + $0x58] sm:$0xff] %vm544, %v4378
        %4561 = vst [vmem:[%s288 + $0x60] sm:$0xff] %v4379
        %4562 = vst.msk [vmem:[%s288 + $0x68] sm:$0xff] %vm544, %v4380
        %4563 = vst [vmem:[%s288 + $0x70] sm:$0xff] %v4381
        %4564 = vst.msk [vmem:[%s288 + $0x78] sm:$0xff] %vm544, %v4382
        %4565 = vst [vmem:[%s288 + $0x80] sm:$0xff] %v4383
        %4566 = vst.msk [vmem:[%s288 + $0x88] sm:$0xff] %vm544, %v4384
        %4567 = vst [vmem:[%s288 + $0x90] sm:$0xff] %v4385
        %4568 = vst.msk [vmem:[%s288 + $0x98] sm:$0xff] %vm544, %v4386
        %4569 = vst [vmem:[%s288 + $0xa0] sm:$0xff] %v4387
        %4570 = vst.msk [vmem:[%s288 + $0xa8] sm:$0xff] %vm544, %v4388
        %4571 = vst [vmem:[%s288 + $0xb0] sm:$0xff] %v4389
        %4572 = vst.msk [vmem:[%s288 + $0xb8] sm:$0xff] %vm544, %v4390
        %4573 = vst [vmem:[%s288 + $0xc0] sm:$0xff] %v4391
        %4574 = vst.msk [vmem:[%s288 + $0xc8] sm:$0xff] %vm544, %v4392
        %4575 = vst [vmem:[%s288 + $0xd0] sm:$0xff] %v4393
        %4576 = vst.msk [vmem:[%s288 + $0xd8] sm:$0xff] %vm544, %v4394
        %4577 = vst [vmem:[%s288 + $0xe0] sm:$0xff] %v4395
        %4578 = vst.msk [vmem:[%s288 + $0xe8] sm:$0xff] %vm544, %v4396
        %4579 = vst [vmem:[%s288 + $0xf0] sm:$0xff] %v4397
        %4580 = vst.msk [vmem:[%s288 + $0xf8] sm:$0xff] %vm544, %v4398
        %4581 = vst [vmem:[%s288 + $0x100] sm:$0xff] %v4399
        %4582 = vst.msk [vmem:[%s288 + $0x108] sm:$0xff] %vm544, %v4400
        %4583 = vst [vmem:[%s288 + $0x110] sm:$0xff] %v4401
        %4584 = vst.msk [vmem:[%s288 + $0x118] sm:$0xff] %vm544, %v4402
        %4585 = vst [vmem:[%s288 + $0x120] sm:$0xff] %v4403
        %4586 = vst.msk [vmem:[%s288 + $0x128] sm:$0xff] %vm544, %v4404
        %4587 = vst [vmem:[%s288 + $0x130] sm:$0xff] %v4405
        %4588 = vst.msk [vmem:[%s288 + $0x138] sm:$0xff] %vm544, %v4406
        %4589 = vst [vmem:[%s288 + $0x140] sm:$0xff] %v4407
        %4590 = vst.msk [vmem:[%s288 + $0x148] sm:$0xff] %vm544, %v4408
        %4591 = vst [vmem:[%s288 + $0x150] sm:$0xff] %v4409
        %4592 = vst.msk [vmem:[%s288 + $0x158] sm:$0xff] %vm544, %v4410
        %4593 = vst [vmem:[%s288 + $0x160] sm:$0xff] %v4411
        %4594 = vst.msk [vmem:[%s288 + $0x168] sm:$0xff] %vm544, %v4412
        %4595 = vst [vmem:[%s288 + $0x170] sm:$0xff] %v4413
        %4596 = vst.msk [vmem:[%s288 + $0x178] sm:$0xff] %vm544, %v4414
        %4597 = vst [vmem:[%s288 + $0x180] sm:$0xff] %v4415
        %4598 = vst.msk [vmem:[%s288 + $0x188] sm:$0xff] %vm544, %v4416
        %4599 = vst [vmem:[%s288 + $0x190] sm:$0xff] %v4417
        %4600 = vst.msk [vmem:[%s288 + $0x198] sm:$0xff] %vm544, %v4418
        %4601 = vst [vmem:[%s288 + $0x1a0] sm:$0xff] %v4419
        %4602 = vst.msk [vmem:[%s288 + $0x1a8] sm:$0xff] %vm544, %v4420
        %4603 = vst [vmem:[%s288 + $0x1b0] sm:$0xff] %v4421
        %4604 = vst.msk [vmem:[%s288 + $0x1b8] sm:$0xff] %vm544, %v4422
        %4605 = vst [vmem:[%s288 + $0x1c0] sm:$0xff] %v4423
        %4606 = vst.msk [vmem:[%s288 + $0x1c8] sm:$0xff] %vm544, %v4424
        %4607 = vst [vmem:[%s288 + $0x1d0] sm:$0xff] %v4425
        %4608 = vst.msk [vmem:[%s288 + $0x1d8] sm:$0xff] %vm544, %v4426
        %4609 = vst [vmem:[%s288 + $0x1e0] sm:$0xff] %v4427
        %4610 = vst.msk [vmem:[%s288 + $0x1e8] sm:$0xff] %vm544, %v4428
        %4611 = vst [vmem:[%s288 + $0x1f0] sm:$0xff] %v4429
        %4612 = vst.msk [vmem:[%s288 + $0x1f8] sm:$0xff] %vm544, %v4430
        %4613 = vst [vmem:[%s288 + $0x200] sm:$0xff] %v4431
        %4614 = vst.msk [vmem:[%s288 + $0x208] sm:$0xff] %vm544, %v4432
        %4615 = vst [vmem:[%s288 + $0x210] sm:$0xff] %v4433
        %4616 = vst.msk [vmem:[%s288 + $0x218] sm:$0xff] %vm544, %v4434
        %4617 = vst [vmem:[%s288 + $0x220] sm:$0xff] %v4435
        %4618 = vst.msk [vmem:[%s288 + $0x228] sm:$0xff] %vm544, %v4436
        %4619 = vst [vmem:[%s288 + $0x230] sm:$0xff] %v4437
        %4620 = vst.msk [vmem:[%s288 + $0x238] sm:$0xff] %vm544, %v4438
        %4621 = vst [vmem:[%s288 + $0x240] sm:$0xff] %v4439
        %4622 = vst.msk [vmem:[%s288 + $0x248] sm:$0xff] %vm544, %v4440
        %4623 = vst [vmem:[%s288 + $0x250] sm:$0xff] %v4441
        %4624 = vst.msk [vmem:[%s288 + $0x258] sm:$0xff] %vm544, %v4442
        %4625 = vst [vmem:[%s288 + $0x260] sm:$0xff] %v4443
        %4626 = vst.msk [vmem:[%s288 + $0x268] sm:$0xff] %vm544, %v4444
        %4627 = vst [vmem:[%s288 + $0x270] sm:$0xff] %v4445
        %4628 = vst.msk [vmem:[%s288 + $0x278] sm:$0xff] %vm544, %v4446
        %4629 = vst [vmem:[%s288 + $0x280] sm:$0xff] %v4447
        %4630 = vst.msk [vmem:[%s288 + $0x288] sm:$0xff] %vm544, %v4448
        %4631 = vst [vmem:[%s288 + $0x290] sm:$0xff] %v4449
        %4632 = vst.msk [vmem:[%s288 + $0x298] sm:$0xff] %vm544, %v4450
        %4633 = vst [vmem:[%s288 + $0x2a0] sm:$0xff] %v4451
        %4634 = vst.msk [vmem:[%s288 + $0x2a8] sm:$0xff] %vm544, %v4452
        %4635 = vst [vmem:[%s288 + $0x2b0] sm:$0xff] %v4453
        %4636 = vst.msk [vmem:[%s288 + $0x2b8] sm:$0xff] %vm544, %v4454
        %4637 = vst [vmem:[%s288 + $0x2c0] sm:$0xff] %v4455
        %4638 = vst.msk [vmem:[%s288 + $0x2c8] sm:$0xff] %vm544, %v4456
        %4639 = vst [vmem:[%s288 + $0x2d0] sm:$0xff] %v4457
        %4640 = vst.msk [vmem:[%s288 + $0x2d8] sm:$0xff] %vm544, %v4458
        %4641 = vst [vmem:[%s288 + $0x2e0] sm:$0xff] %v4459
        %4642 = vst.msk [vmem:[%s288 + $0x2e8] sm:$0xff] %vm544, %v4460
        %4643 = vst [vmem:[%s288 + $0x2f0] sm:$0xff] %v4461
        %4644 = vst.msk [vmem:[%s288 + $0x2f8] sm:$0xff] %vm544, %v4462
        %4645 = vst [vmem:[%s288 + $0x300] sm:$0xff] %v4463
        %4646 = vst.msk [vmem:[%s288 + $0x308] sm:$0xff] %vm544, %v4464
        %4647 = vst [vmem:[%s288 + $0x310] sm:$0xff] %v4465
        %4648 = vst.msk [vmem:[%s288 + $0x318] sm:$0xff] %vm544, %v4466
        %4649 = vst [vmem:[%s288 + $0x320] sm:$0xff] %v4467
        %4650 = vst.msk [vmem:[%s288 + $0x328] sm:$0xff] %vm544, %v4468
        %4651 = vst [vmem:[%s288 + $0x330] sm:$0xff] %v4469
        %4652 = vst.msk [vmem:[%s288 + $0x338] sm:$0xff] %vm544, %v4470
        %4653 = vst [vmem:[%s288 + $0x340] sm:$0xff] %v4471
        %4654 = vst.msk [vmem:[%s288 + $0x348] sm:$0xff] %vm544, %v4472
        %4655 = vst [vmem:[%s288 + $0x350] sm:$0xff] %v4473
        %4656 = vst.msk [vmem:[%s288 + $0x358] sm:$0xff] %vm544, %v4474
        %4657 = vst [vmem:[%s288 + $0x360] sm:$0xff] %v4475
        %4658 = vst.msk [vmem:[%s288 + $0x368] sm:$0xff] %vm544, %v4476
        %4659 = vst [vmem:[%s288 + $0x370] sm:$0xff] %v4477
        %4660 = vst.msk [vmem:[%s288 + $0x378] sm:$0xff] %vm544, %v4478
        %4661 = vst [vmem:[%s288 + $0x380] sm:$0xff] %v4479
        %4662 = vst.msk [vmem:[%s288 + $0x388] sm:$0xff] %vm544, %v4480
        %4663 = vst [vmem:[%s288 + $0x390] sm:$0xff] %v4481
        %4664 = vst.msk [vmem:[%s288 + $0x398] sm:$0xff] %vm544, %v4482
        %4665 = vst [vmem:[%s288 + $0x3a0] sm:$0xff] %v4483
        %4666 = vst.msk [vmem:[%s288 + $0x3a8] sm:$0xff] %vm544, %v4484
        %4667 = vst [vmem:[%s288 + $0x3b0] sm:$0xff] %v4485
        %4668 = vst.msk [vmem:[%s288 + $0x3b8] sm:$0xff] %vm544, %v4486
        %4669 = vst [vmem:[%s288 + $0x3c0] sm:$0xff] %v4487
        %4670 = vst.msk [vmem:[%s288 + $0x3c8] sm:$0xff] %vm544, %v4488
        %4671 = vst [vmem:[%s288 + $0x3d0] sm:$0xff] %v4489
        %4672 = vst.msk [vmem:[%s288 + $0x3d8] sm:$0xff] %vm544, %v4490
        %4673 = vst [vmem:[%s288 + $0x3e0] sm:$0xff] %v4491
        %4674 = vst.msk [vmem:[%s288 + $0x3e8] sm:$0xff] %vm544, %v4492
        %4675 = vst [vmem:[%s288 + $0x3f0] sm:$0xff] %v4493
        %4676 = vst.msk [vmem:[%s288 + $0x3f8] sm:$0xff] %vm544, %v4494
        %4677 = vst [vmem:[%s288 + $0x400] sm:$0xff] %v4495
        %4678 = vst.msk [vmem:[%s288 + $0x408] sm:$0xff] %vm544, %v4496
        %4679 = vst [vmem:[%s288 + $0x410] sm:$0xff] %v4497
        %4680 = vst.msk [vmem:[%s288 + $0x418] sm:$0xff] %vm544, %v4498
        %4681 = vst [vmem:[%s288 + $0x420] sm:$0xff] %v4499
        %4682 = vst.msk [vmem:[%s288 + $0x428] sm:$0xff] %vm544, %v4500
        %4683 = vst [vmem:[%s288 + $0x430] sm:$0xff] %v4501
        %4684 = vst.msk [vmem:[%s288 + $0x438] sm:$0xff] %vm544, %v4502
        %4685 = vst [vmem:[%s288 + $0x440] sm:$0xff] %v4503
        %4686 = vst.msk [vmem:[%s288 + $0x448] sm:$0xff] %vm544, %v4504
        %4687 = vst [vmem:[%s288 + $0x450] sm:$0xff] %v4505
        %4688 = vst.msk [vmem:[%s288 + $0x458] sm:$0xff] %vm544, %v4506
        %4689 = vst [vmem:[%s288 + $0x460] sm:$0xff] %v4507
        %4690 = vst.msk [vmem:[%s288 + $0x468] sm:$0xff] %vm544, %v4508
        %4691 = vst [vmem:[%s288 + $0x470] sm:$0xff] %v4509
        %4692 = vst.msk [vmem:[%s288 + $0x478] sm:$0xff] %vm544, %v4510
        %4693 = vst [vmem:[%s288 + $0x480] sm:$0xff] %v4511
        %4694 = vst.msk [vmem:[%s288 + $0x488] sm:$0xff] %vm544, %v4512
        %4695 = vst [vmem:[%s288 + $0x490] sm:$0xff] %v4513
        %4696 = vst.msk [vmem:[%s288 + $0x498] sm:$0xff] %vm544, %v4514
        %4697 = vst [vmem:[%s288 + $0x4a0] sm:$0xff] %v4515
        %4698 = vst.msk [vmem:[%s288 + $0x4a8] sm:$0xff] %vm544, %v4516
        %4699 = vst [vmem:[%s288 + $0x4b0] sm:$0xff] %v4517
        %4700 = vst.msk [vmem:[%s288 + $0x4b8] sm:$0xff] %vm544, %v4518
        %4701 = vst [vmem:[%s288 + $0x4c0] sm:$0xff] %v4519
        %4702 = vst.msk [vmem:[%s288 + $0x4c8] sm:$0xff] %vm544, %v4520
        %4703 = vst [vmem:[%s288 + $0x4d0] sm:$0xff] %v4521
        %4704 = vst.msk [vmem:[%s288 + $0x4d8] sm:$0xff] %vm544, %v4522
        %4705 = vst [vmem:[%s288 + $0x4e0] sm:$0xff] %v4523
        %4706 = vst.msk [vmem:[%s288 + $0x4e8] sm:$0xff] %vm544, %v4524
        %4707 = vst [vmem:[%s288 + $0x4f0] sm:$0xff] %v4525
        %4708 = vst.msk [vmem:[%s288 + $0x4f8] sm:$0xff] %vm544, %v4526
        %4709 = vst [vmem:[%s288 + $0x500] sm:$0xff] %v4527
        %4710 = vst.msk [vmem:[%s288 + $0x508] sm:$0xff] %vm544, %v4528
        %4711 = vst [vmem:[%s288 + $0x510] sm:$0xff] %v4529
        %4712 = vst.msk [vmem:[%s288 + $0x518] sm:$0xff] %vm544, %v4530
        %4713 = vst [vmem:[%s288 + $0x520] sm:$0xff] %v4531
        %4714 = vst.msk [vmem:[%s288 + $0x528] sm:$0xff] %vm544, %v4532
        %4715 = vst [vmem:[%s288 + $0x530] sm:$0xff] %v4533
        %4716 = vst.msk [vmem:[%s288 + $0x538] sm:$0xff] %vm544, %v4534
        %4717 = vst [vmem:[%s288 + $0x540] sm:$0xff] %v4535
        %4718 = vst.msk [vmem:[%s288 + $0x548] sm:$0xff] %vm544, %v4536
        %4719 = vst [vmem:[%s288 + $0x550] sm:$0xff] %v4537
        %4720 = vst.msk [vmem:[%s288 + $0x558] sm:$0xff] %vm544, %v4538
        %4721 = vst [vmem:[%s288 + $0x560] sm:$0xff] %v4539
        %4722 = vst.msk [vmem:[%s288 + $0x568] sm:$0xff] %vm544, %v4540
        %4723 = vst [vmem:[%s288 + $0x570] sm:$0xff] %v4541
        %4724 = vst.msk [vmem:[%s288 + $0x578] sm:$0xff] %vm544, %v4542
        %4725 = vst [vmem:[%s288 + $0x580] sm:$0xff] %v4543
        %4726 = vst.msk [vmem:[%s288 + $0x588] sm:$0xff] %vm544, %v4544
        %4727 = vst [vmem:[%s288 + $0x590] sm:$0xff] %v4545
        %4728 = vst.msk [vmem:[%s288 + $0x598] sm:$0xff] %vm544, %v4546
        %4729 = vst [vmem:[%s288 + $0x5a0] sm:$0xff] %v4547
        %4730 = vst.msk [vmem:[%s288 + $0x5a8] sm:$0xff] %vm544, %v4548
        %vm4731 = vcmask 7168
        %4732 = vst.msk [vmem:[%s294] sm:$0xff] %vm4731, %v909
        %4733 = vst.msk [vmem:[%s294 + $0x8] sm:$0xff] %vm4731, %v910
        %4734 = vst.msk [vmem:[%s294 + $0x10] sm:$0xff] %vm4731, %v911
        %4735 = vst.msk [vmem:[%s294 + $0x18] sm:$0xff] %vm4731, %v912
        %4736 = vst.msk [vmem:[%s294 + $0x20] sm:$0xff] %vm4731, %v913
        %4737 = vst.msk [vmem:[%s294 + $0x28] sm:$0xff] %vm4731, %v914
        %4738 = vst.msk [vmem:[%s294 + $0x30] sm:$0xff] %vm4731, %v915
        %4739 = vst.msk [vmem:[%s294 + $0x38] sm:$0xff] %vm4731, %v916
        %4740 = vst.msk [vmem:[%s294 + $0x40] sm:$0xff] %vm4731, %v917
        %4741 = vst.msk [vmem:[%s294 + $0x48] sm:$0xff] %vm4731, %v918
        %4742 = vst.msk [vmem:[%s294 + $0x50] sm:$0xff] %vm4731, %v919
        %4743 = vst.msk [vmem:[%s294 + $0x58] sm:$0xff] %vm4731, %v920
        %4744 = vst.msk [vmem:[%s294 + $0x60] sm:$0xff] %vm4731, %v921
        %4745 = vst.msk [vmem:[%s294 + $0x68] sm:$0xff] %vm4731, %v922
        %4746 = vst.msk [vmem:[%s294 + $0x70] sm:$0xff] %vm4731, %v923
        %4747 = vst.msk [vmem:[%s294 + $0x78] sm:$0xff] %vm4731, %v924
        %4748 = vst.msk [vmem:[%s294 + $0x80] sm:$0xff] %vm4731, %v925
        %4749 = vst.msk [vmem:[%s294 + $0x88] sm:$0xff] %vm4731, %v926
        %4750 = vst.msk [vmem:[%s294 + $0x90] sm:$0xff] %vm4731, %v927
        %4751 = vst.msk [vmem:[%s294 + $0x98] sm:$0xff] %vm4731, %v928
        %4752 = vst.msk [vmem:[%s294 + $0xa0] sm:$0xff] %vm4731, %v929
        %4753 = vst.msk [vmem:[%s294 + $0xa8] sm:$0xff] %vm4731, %v930
        %4754 = vst.msk [vmem:[%s294 + $0xb0] sm:$0xff] %vm4731, %v931
        %4755 = vst.msk [vmem:[%s294 + $0xb8] sm:$0xff] %vm4731, %v932
        %4756 = vst.msk [vmem:[%s294 + $0xc0] sm:$0xff] %vm4731, %v933
        %4757 = vst.msk [vmem:[%s294 + $0xc8] sm:$0xff] %vm4731, %v934
        %4758 = vst.msk [vmem:[%s294 + $0xd0] sm:$0xff] %vm4731, %v935
        %4759 = vst.msk [vmem:[%s294 + $0xd8] sm:$0xff] %vm4731, %v936
        %4760 = vst.msk [vmem:[%s294 + $0xe0] sm:$0xff] %vm4731, %v937
        %4761 = vst.msk [vmem:[%s294 + $0xe8] sm:$0xff] %vm4731, %v938
        %4762 = vst.msk [vmem:[%s294 + $0xf0] sm:$0xff] %vm4731, %v939
        %4763 = vst.msk [vmem:[%s294 + $0xf8] sm:$0xff] %vm4731, %v940
        %4764 = vst.msk [vmem:[%s294 + $0x100] sm:$0xff] %vm4731, %v941
        %4765 = vst.msk [vmem:[%s294 + $0x108] sm:$0xff] %vm4731, %v942
        %4766 = vst.msk [vmem:[%s294 + $0x110] sm:$0xff] %vm4731, %v943
        %4767 = vst.msk [vmem:[%s294 + $0x118] sm:$0xff] %vm4731, %v944
        %4768 = vst.msk [vmem:[%s294 + $0x120] sm:$0xff] %vm4731, %v945
        %4769 = vst.msk [vmem:[%s294 + $0x128] sm:$0xff] %vm4731, %v946
        %4770 = vst.msk [vmem:[%s294 + $0x130] sm:$0xff] %vm4731, %v947
        %4771 = vst.msk [vmem:[%s294 + $0x138] sm:$0xff] %vm4731, %v948
        %4772 = vst.msk [vmem:[%s294 + $0x140] sm:$0xff] %vm4731, %v949
        %4773 = vst.msk [vmem:[%s294 + $0x148] sm:$0xff] %vm4731, %v950
        %4774 = vst.msk [vmem:[%s294 + $0x150] sm:$0xff] %vm4731, %v951
        %4775 = vst.msk [vmem:[%s294 + $0x158] sm:$0xff] %vm4731, %v952
        %4776 = vst.msk [vmem:[%s294 + $0x160] sm:$0xff] %vm4731, %v953
        %4777 = vst.msk [vmem:[%s294 + $0x168] sm:$0xff] %vm4731, %v954
        %4778 = vst.msk [vmem:[%s294 + $0x170] sm:$0xff] %vm4731, %v955
        %4779 = vst.msk [vmem:[%s294 + $0x178] sm:$0xff] %vm4731, %v956
        %4780 = vst.msk [vmem:[%s294 + $0x180] sm:$0xff] %vm4731, %v957
        %4781 = vst.msk [vmem:[%s294 + $0x188] sm:$0xff] %vm4731, %v958
        %4782 = vst.msk [vmem:[%s294 + $0x190] sm:$0xff] %vm4731, %v959
        %4783 = vst.msk [vmem:[%s294 + $0x198] sm:$0xff] %vm4731, %v960
        %4784 = vst.msk [vmem:[%s294 + $0x1a0] sm:$0xff] %vm4731, %v961
        %4785 = vst.msk [vmem:[%s294 + $0x1a8] sm:$0xff] %vm4731, %v962
        %4786 = vst.msk [vmem:[%s294 + $0x1b0] sm:$0xff] %vm4731, %v963
        %4787 = vst.msk [vmem:[%s294 + $0x1b8] sm:$0xff] %vm4731, %v964
        %4788 = vst.msk [vmem:[%s294 + $0x1c0] sm:$0xff] %vm4731, %v965
        %4789 = vst.msk [vmem:[%s294 + $0x1c8] sm:$0xff] %vm4731, %v966
        %4790 = vst.msk [vmem:[%s294 + $0x1d0] sm:$0xff] %vm4731, %v967
        %4791 = vst.msk [vmem:[%s294 + $0x1d8] sm:$0xff] %vm4731, %v968
        %4792 = vst.msk [vmem:[%s294 + $0x1e0] sm:$0xff] %vm4731, %v969
        %4793 = vst.msk [vmem:[%s294 + $0x1e8] sm:$0xff] %vm4731, %v970
        %4794 = vst.msk [vmem:[%s294 + $0x1f0] sm:$0xff] %vm4731, %v971
        %4795 = vst.msk [vmem:[%s294 + $0x1f8] sm:$0xff] %vm4731, %v972
        %4796 = vst.msk [vmem:[%s294 + $0x200] sm:$0xff] %vm4731, %v973
        %4797 = vst.msk [vmem:[%s294 + $0x208] sm:$0xff] %vm4731, %v974
        %4798 = vst.msk [vmem:[%s294 + $0x210] sm:$0xff] %vm4731, %v975
        %4799 = vst.msk [vmem:[%s294 + $0x218] sm:$0xff] %vm4731, %v976
        %4800 = vst.msk [vmem:[%s294 + $0x220] sm:$0xff] %vm4731, %v977
        %4801 = vst.msk [vmem:[%s294 + $0x228] sm:$0xff] %vm4731, %v978
        %4802 = vst.msk [vmem:[%s294 + $0x230] sm:$0xff] %vm4731, %v979
        %4803 = vst.msk [vmem:[%s294 + $0x238] sm:$0xff] %vm4731, %v980
        %4804 = vst.msk [vmem:[%s294 + $0x240] sm:$0xff] %vm4731, %v981
        %4805 = vst.msk [vmem:[%s294 + $0x248] sm:$0xff] %vm4731, %v982
        %4806 = vst.msk [vmem:[%s294 + $0x250] sm:$0xff] %vm4731, %v983
        %4807 = vst.msk [vmem:[%s294 + $0x258] sm:$0xff] %vm4731, %v984
        %4808 = vst.msk [vmem:[%s294 + $0x260] sm:$0xff] %vm4731, %v985
        %4809 = vst.msk [vmem:[%s294 + $0x268] sm:$0xff] %vm4731, %v986
        %4810 = vst.msk [vmem:[%s294 + $0x270] sm:$0xff] %vm4731, %v987
        %4811 = vst.msk [vmem:[%s294 + $0x278] sm:$0xff] %vm4731, %v988
        %4812 = vst.msk [vmem:[%s294 + $0x280] sm:$0xff] %vm4731, %v989
        %4813 = vst.msk [vmem:[%s294 + $0x288] sm:$0xff] %vm4731, %v990
        %4814 = vst.msk [vmem:[%s294 + $0x290] sm:$0xff] %vm4731, %v991
        %4815 = vst.msk [vmem:[%s294 + $0x298] sm:$0xff] %vm4731, %v992
        %4816 = vst.msk [vmem:[%s294 + $0x2a0] sm:$0xff] %vm4731, %v993
        %4817 = vst.msk [vmem:[%s294 + $0x2a8] sm:$0xff] %vm4731, %v994
        %4818 = vst.msk [vmem:[%s294 + $0x2b0] sm:$0xff] %vm4731, %v995
        %4819 = vst.msk [vmem:[%s294 + $0x2b8] sm:$0xff] %vm4731, %v996
        %4820 = vst.msk [vmem:[%s294 + $0x2c0] sm:$0xff] %vm4731, %v997
        %4821 = vst.msk [vmem:[%s294 + $0x2c8] sm:$0xff] %vm4731, %v998
        %4822 = vst.msk [vmem:[%s294 + $0x2d0] sm:$0xff] %vm4731, %v999
        %v4823 = vmul.f32 %v1728, 1.0051283
        %v4824 = vmul.f32 %v1729, 1.0051283
        %v4825 = vmul.f32 %v1730, 1.0051283
        %v4826 = vmul.f32 %v1731, 1.0051283
        %v4827 = vmul.f32 %v1732, 1.0051283
        %v4828 = vmul.f32 %v1733, 1.0051283
        %v4829 = vmul.f32 %v1734, 1.0051283
        %v4830 = vmul.f32 %v1735, 1.0051283
        %v4831 = vmul.f32 %v1736, 1.0051283
        %v4832 = vmul.f32 %v1737, 1.0051283
        %v4833 = vmul.f32 %v1738, 1.0051283
        %v4834 = vmul.f32 %v1739, 1.0051283
        %v4835 = vmul.f32 %v1740, 1.0051283
        %v4836 = vmul.f32 %v1741, 1.0051283
        %v4837 = vmul.f32 %v1742, 1.0051283
        %v4838 = vmul.f32 %v1743, 1.0051283
        %v4839 = vmul.f32 %v1744, 1.0051283
        %v4840 = vmul.f32 %v1745, 1.0051283
        %v4841 = vmul.f32 %v1746, 1.0051283
        %v4842 = vmul.f32 %v1747, 1.0051283
        %v4843 = vmul.f32 %v1748, 1.0051283
        %v4844 = vmul.f32 %v1749, 1.0051283
        %v4845 = vmul.f32 %v1750, 1.0051283
        %v4846 = vmul.f32 %v1751, 1.0051283
        %v4847 = vmul.f32 %v1752, 1.0051283
        %v4848 = vmul.f32 %v1753, 1.0051283
        %v4849 = vmul.f32 %v1754, 1.0051283
        %v4850 = vmul.f32 %v1755, 1.0051283
        %v4851 = vmul.f32 %v1756, 1.0051283
        %v4852 = vmul.f32 %v1757, 1.0051283
        %v4853 = vmul.f32 %v1758, 1.0051283
        %v4854 = vmul.f32 %v1759, 1.0051283
        %v4855 = vmul.f32 %v1760, 1.0051283
        %v4856 = vmul.f32 %v1761, 1.0051283
        %v4857 = vmul.f32 %v1762, 1.0051283
        %v4858 = vmul.f32 %v1763, 1.0051283
        %v4859 = vmul.f32 %v1764, 1.0051283
        %v4860 = vmul.f32 %v1765, 1.0051283
        %v4861 = vmul.f32 %v1766, 1.0051283
        %v4862 = vmul.f32 %v1767, 1.0051283
        %v4863 = vmul.f32 %v1768, 1.0051283
        %v4864 = vmul.f32 %v1769, 1.0051283
        %v4865 = vmul.f32 %v1770, 1.0051283
        %v4866 = vmul.f32 %v1771, 1.0051283
        %v4867 = vmul.f32 %v1772, 1.0051283
        %v4868 = vmul.f32 %v1773, 1.0051283
        %v4869 = vmul.f32 %v1774, 1.0051283
        %v4870 = vmul.f32 %v1775, 1.0051283
        %v4871 = vmul.f32 %v1776, 1.0051283
        %v4872 = vmul.f32 %v1777, 1.0051283
        %v4873 = vmul.f32 %v1778, 1.0051283
        %v4874 = vmul.f32 %v1779, 1.0051283
        %v4875 = vmul.f32 %v1780, 1.0051283
        %v4876 = vmul.f32 %v1781, 1.0051283
        %v4877 = vmul.f32 %v1782, 1.0051283
        %v4878 = vmul.f32 %v1783, 1.0051283
        %v4879 = vmul.f32 %v1784, 1.0051283
        %v4880 = vmul.f32 %v1785, 1.0051283
        %v4881 = vmul.f32 %v1786, 1.0051283
        %v4882 = vmul.f32 %v1787, 1.0051283
        %v4883 = vmul.f32 %v1788, 1.0051283
        %v4884 = vmul.f32 %v1789, 1.0051283
        %v4885 = vmul.f32 %v1790, 1.0051283
        %v4886 = vmul.f32 %v1791, 1.0051283
        %v4887 = vmul.f32 %v1792, 1.0051283
        %v4888 = vmul.f32 %v1793, 1.0051283
        %v4889 = vmul.f32 %v1794, 1.0051283
        %v4890 = vmul.f32 %v1795, 1.0051283
        %v4891 = vmul.f32 %v1796, 1.0051283
        %v4892 = vmul.f32 %v1797, 1.0051283
        %v4893 = vmul.f32 %v1798, 1.0051283
        %v4894 = vmul.f32 %v1799, 1.0051283
        %v4895 = vmul.f32 %v1800, 1.0051283
        %v4896 = vmul.f32 %v1801, 1.0051283
        %v4897 = vmul.f32 %v1802, 1.0051283
        %v4898 = vmul.f32 %v1803, 1.0051283
        %v4899 = vmul.f32 %v1804, 1.0051283
        %v4900 = vmul.f32 %v1805, 1.0051283
        %v4901 = vmul.f32 %v1806, 1.0051283
        %v4902 = vmul.f32 %v1807, 1.0051283
        %v4903 = vmul.f32 %v1808, 1.0051283
        %v4904 = vmul.f32 %v1809, 1.0051283
        %v4905 = vmul.f32 %v1810, 1.0051283
        %v4906 = vmul.f32 %v1811, 1.0051283
        %v4907 = vmul.f32 %v1812, 1.0051283
        %v4908 = vmul.f32 %v1813, 1.0051283
        %v4909 = vmul.f32 %v1814, 1.0051283
        %v4910 = vmul.f32 %v1815, 1.0051283
        %v4911 = vmul.f32 %v1816, 1.0051283
        %v4912 = vmul.f32 %v1817, 1.0051283
        %v4913 = vmul.f32 %v1818, 1.0051283
        %4914 = vst.msk [vmem:[%s300] sm:$0xff] %vm4731, %v4823
        %4915 = vst.msk [vmem:[%s300 + $0x8] sm:$0xff] %vm4731, %v4824
        %4916 = vst.msk [vmem:[%s300 + $0x10] sm:$0xff] %vm4731, %v4825
        %4917 = vst.msk [vmem:[%s300 + $0x18] sm:$0xff] %vm4731, %v4826
        %4918 = vst.msk [vmem:[%s300 + $0x20] sm:$0xff] %vm4731, %v4827
        %4919 = vst.msk [vmem:[%s300 + $0x28] sm:$0xff] %vm4731, %v4828
        %4920 = vst.msk [vmem:[%s300 + $0x30] sm:$0xff] %vm4731, %v4829
        %4921 = vst.msk [vmem:[%s300 + $0x38] sm:$0xff] %vm4731, %v4830
        %4922 = vst.msk [vmem:[%s300 + $0x40] sm:$0xff] %vm4731, %v4831
        %4923 = vst.msk [vmem:[%s300 + $0x48] sm:$0xff] %vm4731, %v4832
        %4924 = vst.msk [vmem:[%s300 + $0x50] sm:$0xff] %vm4731, %v4833
        %4925 = vst.msk [vmem:[%s300 + $0x58] sm:$0xff] %vm4731, %v4834
        %4926 = vst.msk [vmem:[%s300 + $0x60] sm:$0xff] %vm4731, %v4835
        %4927 = vst.msk [vmem:[%s300 + $0x68] sm:$0xff] %vm4731, %v4836
        %4928 = vst.msk [vmem:[%s300 + $0x70] sm:$0xff] %vm4731, %v4837
        %4929 = vst.msk [vmem:[%s300 + $0x78] sm:$0xff] %vm4731, %v4838
        %4930 = vst.msk [vmem:[%s300 + $0x80] sm:$0xff] %vm4731, %v4839
        %4931 = vst.msk [vmem:[%s300 + $0x88] sm:$0xff] %vm4731, %v4840
        %4932 = vst.msk [vmem:[%s300 + $0x90] sm:$0xff] %vm4731, %v4841
        %4933 = vst.msk [vmem:[%s300 + $0x98] sm:$0xff] %vm4731, %v4842
        %4934 = vst.msk [vmem:[%s300 + $0xa0] sm:$0xff] %vm4731, %v4843
        %4935 = vst.msk [vmem:[%s300 + $0xa8] sm:$0xff] %vm4731, %v4844
        %4936 = vst.msk [vmem:[%s300 + $0xb0] sm:$0xff] %vm4731, %v4845
        %4937 = vst.msk [vmem:[%s300 + $0xb8] sm:$0xff] %vm4731, %v4846
        %4938 = vst.msk [vmem:[%s300 + $0xc0] sm:$0xff] %vm4731, %v4847
        %4939 = vst.msk [vmem:[%s300 + $0xc8] sm:$0xff] %vm4731, %v4848
        %4940 = vst.msk [vmem:[%s300 + $0xd0] sm:$0xff] %vm4731, %v4849
        %4941 = vst.msk [vmem:[%s300 + $0xd8] sm:$0xff] %vm4731, %v4850
        %4942 = vst.msk [vmem:[%s300 + $0xe0] sm:$0xff] %vm4731, %v4851
        %4943 = vst.msk [vmem:[%s300 + $0xe8] sm:$0xff] %vm4731, %v4852
        %4944 = vst.msk [vmem:[%s300 + $0xf0] sm:$0xff] %vm4731, %v4853
        %4945 = vst.msk [vmem:[%s300 + $0xf8] sm:$0xff] %vm4731, %v4854
        %4946 = vst.msk [vmem:[%s300 + $0x100] sm:$0xff] %vm4731, %v4855
        %4947 = vst.msk [vmem:[%s300 + $0x108] sm:$0xff] %vm4731, %v4856
        %4948 = vst.msk [vmem:[%s300 + $0x110] sm:$0xff] %vm4731, %v4857
        %4949 = vst.msk [vmem:[%s300 + $0x118] sm:$0xff] %vm4731, %v4858
        %4950 = vst.msk [vmem:[%s300 + $0x120] sm:$0xff] %vm4731, %v4859
        %4951 = vst.msk [vmem:[%s300 + $0x128] sm:$0xff] %vm4731, %v4860
        %4952 = vst.msk [vmem:[%s300 + $0x130] sm:$0xff] %vm4731, %v4861
        %4953 = vst.msk [vmem:[%s300 + $0x138] sm:$0xff] %vm4731, %v4862
        %4954 = vst.msk [vmem:[%s300 + $0x140] sm:$0xff] %vm4731, %v4863
        %4955 = vst.msk [vmem:[%s300 + $0x148] sm:$0xff] %vm4731, %v4864
        %4956 = vst.msk [vmem:[%s300 + $0x150] sm:$0xff] %vm4731, %v4865
        %4957 = vst.msk [vmem:[%s300 + $0x158] sm:$0xff] %vm4731, %v4866
        %4958 = vst.msk [vmem:[%s300 + $0x160] sm:$0xff] %vm4731, %v4867
        %4959 = vst.msk [vmem:[%s300 + $0x168] sm:$0xff] %vm4731, %v4868
        %4960 = vst.msk [vmem:[%s300 + $0x170] sm:$0xff] %vm4731, %v4869
        %4961 = vst.msk [vmem:[%s300 + $0x178] sm:$0xff] %vm4731, %v4870
        %4962 = vst.msk [vmem:[%s300 + $0x180] sm:$0xff] %vm4731, %v4871
        %4963 = vst.msk [vmem:[%s300 + $0x188] sm:$0xff] %vm4731, %v4872
        %4964 = vst.msk [vmem:[%s300 + $0x190] sm:$0xff] %vm4731, %v4873
        %4965 = vst.msk [vmem:[%s300 + $0x198] sm:$0xff] %vm4731, %v4874
        %4966 = vst.msk [vmem:[%s300 + $0x1a0] sm:$0xff] %vm4731, %v4875
        %4967 = vst.msk [vmem:[%s300 + $0x1a8] sm:$0xff] %vm4731, %v4876
        %4968 = vst.msk [vmem:[%s300 + $0x1b0] sm:$0xff] %vm4731, %v4877
        %4969 = vst.msk [vmem:[%s300 + $0x1b8] sm:$0xff] %vm4731, %v4878
        %4970 = vst.msk [vmem:[%s300 + $0x1c0] sm:$0xff] %vm4731, %v4879
        %4971 = vst.msk [vmem:[%s300 + $0x1c8] sm:$0xff] %vm4731, %v4880
        %4972 = vst.msk [vmem:[%s300 + $0x1d0] sm:$0xff] %vm4731, %v4881
        %4973 = vst.msk [vmem:[%s300 + $0x1d8] sm:$0xff] %vm4731, %v4882
        %4974 = vst.msk [vmem:[%s300 + $0x1e0] sm:$0xff] %vm4731, %v4883
        %4975 = vst.msk [vmem:[%s300 + $0x1e8] sm:$0xff] %vm4731, %v4884
        %4976 = vst.msk [vmem:[%s300 + $0x1f0] sm:$0xff] %vm4731, %v4885
        %4977 = vst.msk [vmem:[%s300 + $0x1f8] sm:$0xff] %vm4731, %v4886
        %4978 = vst.msk [vmem:[%s300 + $0x200] sm:$0xff] %vm4731, %v4887
        %4979 = vst.msk [vmem:[%s300 + $0x208] sm:$0xff] %vm4731, %v4888
        %4980 = vst.msk [vmem:[%s300 + $0x210] sm:$0xff] %vm4731, %v4889
        %4981 = vst.msk [vmem:[%s300 + $0x218] sm:$0xff] %vm4731, %v4890
        %4982 = vst.msk [vmem:[%s300 + $0x220] sm:$0xff] %vm4731, %v4891
        %4983 = vst.msk [vmem:[%s300 + $0x228] sm:$0xff] %vm4731, %v4892
        %4984 = vst.msk [vmem:[%s300 + $0x230] sm:$0xff] %vm4731, %v4893
        %4985 = vst.msk [vmem:[%s300 + $0x238] sm:$0xff] %vm4731, %v4894
        %4986 = vst.msk [vmem:[%s300 + $0x240] sm:$0xff] %vm4731, %v4895
        %4987 = vst.msk [vmem:[%s300 + $0x248] sm:$0xff] %vm4731, %v4896
        %4988 = vst.msk [vmem:[%s300 + $0x250] sm:$0xff] %vm4731, %v4897
        %4989 = vst.msk [vmem:[%s300 + $0x258] sm:$0xff] %vm4731, %v4898
        %4990 = vst.msk [vmem:[%s300 + $0x260] sm:$0xff] %vm4731, %v4899
        %4991 = vst.msk [vmem:[%s300 + $0x268] sm:$0xff] %vm4731, %v4900
        %4992 = vst.msk [vmem:[%s300 + $0x270] sm:$0xff] %vm4731, %v4901
        %4993 = vst.msk [vmem:[%s300 + $0x278] sm:$0xff] %vm4731, %v4902
        %4994 = vst.msk [vmem:[%s300 + $0x280] sm:$0xff] %vm4731, %v4903
        %4995 = vst.msk [vmem:[%s300 + $0x288] sm:$0xff] %vm4731, %v4904
        %4996 = vst.msk [vmem:[%s300 + $0x290] sm:$0xff] %vm4731, %v4905
        %4997 = vst.msk [vmem:[%s300 + $0x298] sm:$0xff] %vm4731, %v4906
        %4998 = vst.msk [vmem:[%s300 + $0x2a0] sm:$0xff] %vm4731, %v4907
        %4999 = vst.msk [vmem:[%s300 + $0x2a8] sm:$0xff] %vm4731, %v4908
        %5000 = vst.msk [vmem:[%s300 + $0x2b0] sm:$0xff] %vm4731, %v4909
        %5001 = vst.msk [vmem:[%s300 + $0x2b8] sm:$0xff] %vm4731, %v4910
        %5002 = vst.msk [vmem:[%s300 + $0x2c0] sm:$0xff] %vm4731, %v4911
        %5003 = vst.msk [vmem:[%s300 + $0x2c8] sm:$0xff] %vm4731, %v4912
        %5004 = vst.msk [vmem:[%s300 + $0x2d0] sm:$0xff] %vm4731, %v4913
        %s5005 = sand.u32 %s103, 1
        %s5006 = sand.u32 %s103, 1
        %s5007 = smul.addr %s5006, 1456
        %s5008 = scalar_lea.vmem [#allocation2], %s5007
        %s5009 = sand.u32 %s129, 1
        %s5010 = sand.u32 %s129, 1
        %s5011 = smul.addr %s5010, 728
        %s5012 = scalar_lea.vmem [#allocation3], %s5011
        %s5013 = sand.u32 %s155, 1
        %s5014 = sand.u32 %s155, 1
        %s5015 = smul.addr %s5014, 728
        %s5016 = scalar_lea.vmem [#allocation4], %s5015
        // Predicated region
        $region33: #{tpu_custom_call.1} parent=31 // pred_check
          %p5017 = pneg %p113
        $region34: #{tpu_custom_call.1} parent=31 // pred_check_branch
          %5019 = sbr.rel (%p5017) target = $region36
        $region35: #{tpu_custom_call.1} parent=31 // pred_region
          %s5020 = smul.u32 91, %s17
          %s5021 = ssub.s32 363, %s5020
          %p5022 = scmp.lt.s32.totalorder %s5021, 91
          %s5023 = scalar_select %p5022, %s5021, 91
          %s5024 = smul.u32 8, %s5023
          %s5025 = smul.u32 %s5024, 2
          %p5026 = scmp.ne.s32.totalorder 0, %s5025
          %s5027 = smul.addr %s5020, 2
          %s5028 = smul.addr %s5027, 8
          %s5029 = scalar_lea.vmem %s3, %s5028
          // Predicated region
          $region37: #{tpu_custom_call.1} parent=35 // pred_check
            %p5030 = pneg %p5026
          $region38: #{tpu_custom_call.1} parent=35 // pred_check_branch
            %5032 = sbr.rel (%p5030) target = $region40
          $region39: #{tpu_custom_call.1} parent=35 // pred_region
            // Predicated region
            $region41: #{tpu_custom_call.1} parent=39 // pred_check
              _
            $region42: #{tpu_custom_call.1} parent=39 // pred_check_branch
              %5034 = sbr.rel (0) target = $region44
            $region43: #{tpu_custom_call.1} parent=39 // pred_region
              %s5035 = sshrl.u32 %s5023, 4
              // While loop
              $region45: #{tpu_custom_call.1} parent=43 // loop_pre_header
                _
              $region46: #{tpu_custom_call.1} parent=43 // loop_header
                %s5037 = sphi 0, %s5039
                %p5038 = scmp.ge.s32.totalorder %s5037, %s5035
                %s5042 = sphi 0, %s5111
                %s5043 = sphi %s5008, %s5114
                %s5044 = sphi %s5029, %s5115
              $region47: #{tpu_custom_call.1} parent=43 // loop_header_branch
                %5041 = sbr.rel (%p5038) target = $region51
              $region48: #{tpu_custom_call.1} parent=43 // loop_body
                %v5045 = vld [vmem:[%s5043] sm:$0xff]
                %5046 = vst [vmem:[%s5044] sm:$0xff] %v5045
                %v5047 = vld [vmem:[%s5043 + $0x10] sm:$0xff]
                %5048 = vst [vmem:[%s5044 + $0x10] sm:$0xff] %v5047
                %v5049 = vld [vmem:[%s5043 + $0x20] sm:$0xff]
                %5050 = vst [vmem:[%s5044 + $0x20] sm:$0xff] %v5049
                %v5051 = vld [vmem:[%s5043 + $0x30] sm:$0xff]
                %5052 = vst [vmem:[%s5044 + $0x30] sm:$0xff] %v5051
                %v5053 = vld [vmem:[%s5043 + $0x40] sm:$0xff]
                %5054 = vst [vmem:[%s5044 + $0x40] sm:$0xff] %v5053
                %v5055 = vld [vmem:[%s5043 + $0x50] sm:$0xff]
                %5056 = vst [vmem:[%s5044 + $0x50] sm:$0xff] %v5055
                %v5057 = vld [vmem:[%s5043 + $0x60] sm:$0xff]
                %5058 = vst [vmem:[%s5044 + $0x60] sm:$0xff] %v5057
                %v5059 = vld [vmem:[%s5043 + $0x70] sm:$0xff]
                %5060 = vst [vmem:[%s5044 + $0x70] sm:$0xff] %v5059
                %v5061 = vld [vmem:[%s5043 + $0x80] sm:$0xff]
                %5062 = vst [vmem:[%s5044 + $0x80] sm:$0xff] %v5061
                %v5063 = vld [vmem:[%s5043 + $0x90] sm:$0xff]
                %5064 = vst [vmem:[%s5044 + $0x90] sm:$0xff] %v5063
                %v5065 = vld [vmem:[%s5043 + $0xa0] sm:$0xff]
                %5066 = vst [vmem:[%s5044 + $0xa0] sm:$0xff] %v5065
                %v5067 = vld [vmem:[%s5043 + $0xb0] sm:$0xff]
                %5068 = vst [vmem:[%s5044 + $0xb0] sm:$0xff] %v5067
                %v5069 = vld [vmem:[%s5043 + $0xc0] sm:$0xff]
                %5070 = vst [vmem:[%s5044 + $0xc0] sm:$0xff] %v5069
                %v5071 = vld [vmem:[%s5043 + $0xd0] sm:$0xff]
                %5072 = vst [vmem:[%s5044 + $0xd0] sm:$0xff] %v5071
                %v5073 = vld [vmem:[%s5043 + $0xe0] sm:$0xff]
                %5074 = vst [vmem:[%s5044 + $0xe0] sm:$0xff] %v5073
                %v5075 = vld [vmem:[%s5043 + $0xf0] sm:$0xff]
                %5076 = vst [vmem:[%s5044 + $0xf0] sm:$0xff] %v5075
                %v5077 = vld [vmem:[%s5043 + $0x8] sm:$0xff]
                %5078 = vst [vmem:[%s5044 + $0x8] sm:$0xff] %v5077
                %v5079 = vld [vmem:[%s5043 + $0x18] sm:$0xff]
                %5080 = vst [vmem:[%s5044 + $0x18] sm:$0xff] %v5079
                %v5081 = vld [vmem:[%s5043 + $0x28] sm:$0xff]
                %5082 = vst [vmem:[%s5044 + $0x28] sm:$0xff] %v5081
                %v5083 = vld [vmem:[%s5043 + $0x38] sm:$0xff]
                %5084 = vst [vmem:[%s5044 + $0x38] sm:$0xff] %v5083
                %v5085 = vld [vmem:[%s5043 + $0x48] sm:$0xff]
                %5086 = vst [vmem:[%s5044 + $0x48] sm:$0xff] %v5085
                %v5087 = vld [vmem:[%s5043 + $0x58] sm:$0xff]
                %5088 = vst [vmem:[%s5044 + $0x58] sm:$0xff] %v5087
                %v5089 = vld [vmem:[%s5043 + $0x68] sm:$0xff]
                %5090 = vst [vmem:[%s5044 + $0x68] sm:$0xff] %v5089
                %v5091 = vld [vmem:[%s5043 + $0x78] sm:$0xff]
                %5092 = vst [vmem:[%s5044 + $0x78] sm:$0xff] %v5091
                %v5093 = vld [vmem:[%s5043 + $0x88] sm:$0xff]
                %5094 = vst [vmem:[%s5044 + $0x88] sm:$0xff] %v5093
                %v5095 = vld [vmem:[%s5043 + $0x98] sm:$0xff]
                %5096 = vst [vmem:[%s5044 + $0x98] sm:$0xff] %v5095
                %v5097 = vld [vmem:[%s5043 + $0xa8] sm:$0xff]
                %5098 = vst [vmem:[%s5044 + $0xa8] sm:$0xff] %v5097
                %v5099 = vld [vmem:[%s5043 + $0xb8] sm:$0xff]
                %5100 = vst [vmem:[%s5044 + $0xb8] sm:$0xff] %v5099
                %v5101 = vld [vmem:[%s5043 + $0xc8] sm:$0xff]
                %5102 = vst [vmem:[%s5044 + $0xc8] sm:$0xff] %v5101
                %v5103 = vld [vmem:[%s5043 + $0xd8] sm:$0xff]
                %5104 = vst [vmem:[%s5044 + $0xd8] sm:$0xff] %v5103
                %v5105 = vld [vmem:[%s5043 + $0xe8] sm:$0xff]
                %5106 = vst [vmem:[%s5044 + $0xe8] sm:$0xff] %v5105
                %v5107 = vld [vmem:[%s5043 + $0xf8] sm:$0xff]
                %5108 = vst [vmem:[%s5044 + $0xf8] sm:$0xff] %v5107
                %s5109 = sadd.s32 1, %s5042
                %p5110 = scmp.ge.s32.totalorder %s5109, %s5035
                %s5111 = scalar_select %p5110, 0, %s5109
                %s5112 = smul.u32 %s5111, 256
                %s5113 = smul.u32 %s5111, 256
                %s5114 = scalar_lea.vmem %s5008, %s5112 [#allocation2]
                %s5115 = scalar_lea.vmem %s5029, %s5113
              $region49: #{tpu_custom_call.1} parent=43 // loop_footer
                %s5039 = sadd.s32 %s5037, 1
              $region50: #{tpu_custom_call.1} parent=43 // loop_footer_branch
                %5036 = sbr.rel target = $region46
              $region51: #{tpu_custom_call.1} parent=43 // loop_exit
                _
              %s5116 = sshrl.u32 %s5023, 4
              %s5117 = sand.u32 %s5023, 15
              %s5118 = smul.u32 %s5116, 16
              %s5119 = smul.u32 16, %s5118
              %s5120 = scalar_lea.vmem %s5008, %s5119 [#allocation2]
              %s5121 = smul.u32 16, %s5118
              %s5122 = scalar_lea.vmem %s5029, %s5121
              // While loop
              $region52: #{tpu_custom_call.1} parent=43 // loop_pre_header
                _
              $region53: #{tpu_custom_call.1} parent=43 // loop_header
                %s5124 = sphi 0, %s5126
                %p5125 = scmp.ge.s32.totalorder %s5124, %s5117
                %s5129 = sphi 0, %s5138
                %s5130 = sphi %s5120, %s5141
                %s5131 = sphi %s5122, %s5142
              $region54: #{tpu_custom_call.1} parent=43 // loop_header_branch
                %5128 = sbr.rel (%p5125) target = $region58
              $region55: #{tpu_custom_call.1} parent=43 // loop_body
                %v5132 = vld [vmem:[%s5130] sm:$0xff]
                %5133 = vst [vmem:[%s5131] sm:$0xff] %v5132
                %v5134 = vld [vmem:[%s5130 + $0x8] sm:$0xff]
                %5135 = vst [vmem:[%s5131 + $0x8] sm:$0xff] %v5134
                %s5136 = sadd.s32 1, %s5129
                %p5137 = scmp.ge.s32.totalorder %s5136, %s5117
                %s5138 = scalar_select %p5137, 0, %s5136
                %s5139 = smul.u32 %s5138, 16
                %s5140 = smul.u32 %s5138, 16
                %s5141 = scalar_lea.vmem %s5120, %s5139 [#allocation2]
                %s5142 = scalar_lea.vmem %s5122, %s5140
              $region56: #{tpu_custom_call.1} parent=43 // loop_footer
                %s5126 = sadd.s32 %s5124, 1
              $region57: #{tpu_custom_call.1} parent=43 // loop_footer_branch
                %5123 = sbr.rel target = $region53
              $region58: #{tpu_custom_call.1} parent=43 // loop_exit
                _
            $region44: #{tpu_custom_call.1} parent=39 // pred_fallthru
              _
            // Predicated region
            $region59: #{tpu_custom_call.1} parent=39 // pred_check
              _
            $region60: #{tpu_custom_call.1} parent=39 // pred_check_branch
              %5144 = sbr.rel target = $region62
            $region61: #{tpu_custom_call.1} parent=39 // pred_region
              _
            $region62: #{tpu_custom_call.1} parent=39 // pred_fallthru
              _
          $region40: #{tpu_custom_call.1} parent=35 // pred_fallthru
            _
          %5145 = vnop
        $region36: #{tpu_custom_call.1} parent=31 // pred_fallthru
          _
        // Predicated region
        $region63: #{tpu_custom_call.1} parent=31 // pred_check
          %p5146 = pneg %p139
        $region64: #{tpu_custom_call.1} parent=31 // pred_check_branch
          %5148 = sbr.rel (%p5146) target = $region66
        $region65: #{tpu_custom_call.1} parent=31 // pred_region
          %s5149 = smul.u32 91, %s17
          %s5150 = ssub.s32 363, %s5149
          %p5151 = scmp.lt.s32.totalorder %s5150, 91
          %s5152 = scalar_select %p5151, %s5150, 91
          %s5153 = smul.u32 8, %s5152
          %p5154 = scmp.ne.s32.totalorder 0, %s5153
          %s5155 = smul.addr %s5149, 8
          %s5156 = scalar_lea.vmem %s4, %s5155
          // Predicated region
          $region67: #{tpu_custom_call.1} parent=65 // pred_check
            %p5157 = pneg %p5154
          $region68: #{tpu_custom_call.1} parent=65 // pred_check_branch
            %5159 = sbr.rel (%p5157) target = $region70
          $region69: #{tpu_custom_call.1} parent=65 // pred_region
            // Predicated region
            $region71: #{tpu_custom_call.1} parent=69 // pred_check
              _
            $region72: #{tpu_custom_call.1} parent=69 // pred_check_branch
              %5161 = sbr.rel (0) target = $region74
            $region73: #{tpu_custom_call.1} parent=69 // pred_region
              // Predicated region
              $region93: #{tpu_custom_call.1} parent=73 // pred_check
                _
              $region94: #{tpu_custom_call.1} parent=73 // pred_check_branch
                %5273 = sbr.rel (0) target = $region96
              $region95: #{tpu_custom_call.1} parent=73 // pred_region
                %s5274 = sshrl.u32 %s5152, 5
                // While loop
                $region97: #{tpu_custom_call.1} parent=95 // loop_pre_header
                  _
                $region98: #{tpu_custom_call.1} parent=95 // loop_header
                  %s5276 = sphi 0, %s5278
                  %p5277 = scmp.ge.s32.totalorder %s5276, %s5274
                  %s5281 = sphi 0, %s5350
                  %s5282 = sphi %s5012, %s5353
                  %s5283 = sphi %s5156, %s5354
                $region99: #{tpu_custom_call.1} parent=95 // loop_header_branch
                  %5280 = sbr.rel (%p5277) target = $region103
                $region100: #{tpu_custom_call.1} parent=95 // loop_body
                  %v5284 = vld [vmem:[%s5282] sm:$0xff]
                  %5285 = vst [vmem:[%s5283] sm:$0xff] %v5284
                  %v5286 = vld [vmem:[%s5282 + $0x8] sm:$0xff]
                  %5287 = vst [vmem:[%s5283 + $0x8] sm:$0xff] %v5286
                  %v5288 = vld [vmem:[%s5282 + $0x10] sm:$0xff]
                  %5289 = vst [vmem:[%s5283 + $0x10] sm:$0xff] %v5288
                  %v5290 = vld [vmem:[%s5282 + $0x18] sm:$0xff]
                  %5291 = vst [vmem:[%s5283 + $0x18] sm:$0xff] %v5290
                  %v5292 = vld [vmem:[%s5282 + $0x20] sm:$0xff]
                  %5293 = vst [vmem:[%s5283 + $0x20] sm:$0xff] %v5292
                  %v5294 = vld [vmem:[%s5282 + $0x28] sm:$0xff]
                  %5295 = vst [vmem:[%s5283 + $0x28] sm:$0xff] %v5294
                  %v5296 = vld [vmem:[%s5282 + $0x30] sm:$0xff]
                  %5297 = vst [vmem:[%s5283 + $0x30] sm:$0xff] %v5296
                  %v5298 = vld [vmem:[%s5282 + $0x38] sm:$0xff]
                  %5299 = vst [vmem:[%s5283 + $0x38] sm:$0xff] %v5298
                  %v5300 = vld [vmem:[%s5282 + $0x40] sm:$0xff]
                  %5301 = vst [vmem:[%s5283 + $0x40] sm:$0xff] %v5300
                  %v5302 = vld [vmem:[%s5282 + $0x48] sm:$0xff]
                  %5303 = vst [vmem:[%s5283 + $0x48] sm:$0xff] %v5302
                  %v5304 = vld [vmem:[%s5282 + $0x50] sm:$0xff]
                  %5305 = vst [vmem:[%s5283 + $0x50] sm:$0xff] %v5304
                  %v5306 = vld [vmem:[%s5282 + $0x58] sm:$0xff]
                  %5307 = vst [vmem:[%s5283 + $0x58] sm:$0xff] %v5306
                  %v5308 = vld [vmem:[%s5282 + $0x60] sm:$0xff]
                  %5309 = vst [vmem:[%s5283 + $0x60] sm:$0xff] %v5308
                  %v5310 = vld [vmem:[%s5282 + $0x68] sm:$0xff]
                  %5311 = vst [vmem:[%s5283 + $0x68] sm:$0xff] %v5310
                  %v5312 = vld [vmem:[%s5282 + $0x70] sm:$0xff]
                  %5313 = vst [vmem:[%s5283 + $0x70] sm:$0xff] %v5312
                  %v5314 = vld [vmem:[%s5282 + $0x78] sm:$0xff]
                  %5315 = vst [vmem:[%s5283 + $0x78] sm:$0xff] %v5314
                  %v5316 = vld [vmem:[%s5282 + $0x80] sm:$0xff]
                  %5317 = vst [vmem:[%s5283 + $0x80] sm:$0xff] %v5316
                  %v5318 = vld [vmem:[%s5282 + $0x88] sm:$0xff]
                  %5319 = vst [vmem:[%s5283 + $0x88] sm:$0xff] %v5318
                  %v5320 = vld [vmem:[%s5282 + $0x90] sm:$0xff]
                  %5321 = vst [vmem:[%s5283 + $0x90] sm:$0xff] %v5320
                  %v5322 = vld [vmem:[%s5282 + $0x98] sm:$0xff]
                  %5323 = vst [vmem:[%s5283 + $0x98] sm:$0xff] %v5322
                  %v5324 = vld [vmem:[%s5282 + $0xa0] sm:$0xff]
                  %5325 = vst [vmem:[%s5283 + $0xa0] sm:$0xff] %v5324
                  %v5326 = vld [vmem:[%s5282 + $0xa8] sm:$0xff]
                  %5327 = vst [vmem:[%s5283 + $0xa8] sm:$0xff] %v5326
                  %v5328 = vld [vmem:[%s5282 + $0xb0] sm:$0xff]
                  %5329 = vst [vmem:[%s5283 + $0xb0] sm:$0xff] %v5328
                  %v5330 = vld [vmem:[%s5282 + $0xb8] sm:$0xff]
                  %5331 = vst [vmem:[%s5283 + $0xb8] sm:$0xff] %v5330
                  %v5332 = vld [vmem:[%s5282 + $0xc0] sm:$0xff]
                  %5333 = vst [vmem:[%s5283 + $0xc0] sm:$0xff] %v5332
                  %v5334 = vld [vmem:[%s5282 + $0xc8] sm:$0xff]
                  %5335 = vst [vmem:[%s5283 + $0xc8] sm:$0xff] %v5334
                  %v5336 = vld [vmem:[%s5282 + $0xd0] sm:$0xff]
                  %5337 = vst [vmem:[%s5283 + $0xd0] sm:$0xff] %v5336
                  %v5338 = vld [vmem:[%s5282 + $0xd8] sm:$0xff]
                  %5339 = vst [vmem:[%s5283 + $0xd8] sm:$0xff] %v5338
                  %v5340 = vld [vmem:[%s5282 + $0xe0] sm:$0xff]
                  %5341 = vst [vmem:[%s5283 + $0xe0] sm:$0xff] %v5340
                  %v5342 = vld [vmem:[%s5282 + $0xe8] sm:$0xff]
                  %5343 = vst [vmem:[%s5283 + $0xe8] sm:$0xff] %v5342
                  %v5344 = vld [vmem:[%s5282 + $0xf0] sm:$0xff]
                  %5345 = vst [vmem:[%s5283 + $0xf0] sm:$0xff] %v5344
                  %v5346 = vld [vmem:[%s5282 + $0xf8] sm:$0xff]
                  %5347 = vst [vmem:[%s5283 + $0xf8] sm:$0xff] %v5346
                  %s5348 = sadd.s32 1, %s5281
                  %p5349 = scmp.ge.s32.totalorder %s5348, %s5274
                  %s5350 = scalar_select %p5349, 0, %s5348
                  %s5351 = smul.u32 %s5350, 256
                  %s5352 = smul.u32 %s5350, 256
                  %s5353 = scalar_lea.vmem %s5012, %s5351 [#allocation3]
                  %s5354 = scalar_lea.vmem %s5156, %s5352
                $region101: #{tpu_custom_call.1} parent=95 // loop_footer
                  %s5278 = sadd.s32 %s5276, 1
                $region102: #{tpu_custom_call.1} parent=95 // loop_footer_branch
                  %5275 = sbr.rel target = $region98
                $region103: #{tpu_custom_call.1} parent=95 // loop_exit
                  _
                %s5355 = sshrl.u32 %s5152, 5
                %s5356 = sand.u32 %s5152, 31
                %s5357 = smul.u32 %s5355, 32
                %s5358 = smul.u32 8, %s5357
                %s5359 = scalar_lea.vmem %s5012, %s5358 [#allocation3]
                %s5360 = smul.u32 8, %s5357
                %s5361 = scalar_lea.vmem %s5156, %s5360
                // While loop
                $region104: #{tpu_custom_call.1} parent=95 // loop_pre_header
                  _
                $region105: #{tpu_custom_call.1} parent=95 // loop_header
                  %s5363 = sphi 0, %s5365
                  %p5364 = scmp.ge.s32.totalorder %s5363, %s5356
                  %s5368 = sphi 0, %s5375
                  %s5369 = sphi %s5359, %s5378
                  %s5370 = sphi %s5361, %s5379
                $region106: #{tpu_custom_call.1} parent=95 // loop_header_branch
                  %5367 = sbr.rel (%p5364) target = $region110
                $region107: #{tpu_custom_call.1} parent=95 // loop_body
                  %v5371 = vld [vmem:[%s5369] sm:$0xff]
                  %5372 = vst [vmem:[%s5370] sm:$0xff] %v5371
                  %s5373 = sadd.s32 1, %s5368
                  %p5374 = scmp.ge.s32.totalorder %s5373, %s5356
                  %s5375 = scalar_select %p5374, 0, %s5373
                  %s5376 = smul.u32 %s5375, 8
                  %s5377 = smul.u32 %s5375, 8
                  %s5378 = scalar_lea.vmem %s5359, %s5376 [#allocation3]
                  %s5379 = scalar_lea.vmem %s5361, %s5377
                $region108: #{tpu_custom_call.1} parent=95 // loop_footer
                  %s5365 = sadd.s32 %s5363, 1
                $region109: #{tpu_custom_call.1} parent=95 // loop_footer_branch
                  %5362 = sbr.rel target = $region105
                $region110: #{tpu_custom_call.1} parent=95 // loop_exit
                  _
              $region96: #{tpu_custom_call.1} parent=73 // pred_fallthru
                _
              // Predicated region
              $region111: #{tpu_custom_call.1} parent=73 // pred_check
                _
              $region112: #{tpu_custom_call.1} parent=73 // pred_check_branch
                %5381 = sbr.rel target = $region114
              $region113: #{tpu_custom_call.1} parent=73 // pred_region
                _
              $region114: #{tpu_custom_call.1} parent=73 // pred_fallthru
                _
            $region74: #{tpu_custom_call.1} parent=69 // pred_fallthru
              _
            // Predicated region
            $region75: #{tpu_custom_call.1} parent=69 // pred_check
              _
            $region76: #{tpu_custom_call.1} parent=69 // pred_check_branch
              %5163 = sbr.rel target = $region78
            $region77: #{tpu_custom_call.1} parent=69 // pred_region
              %s5165 = ssub.s32 256, 1
              %s5166 = sshrl.u32 %s5152, 5
              // While loop
              $region79: #{tpu_custom_call.1} parent=77 // loop_pre_header
                _
              $region80: #{tpu_custom_call.1} parent=77 // loop_header
                %s5168 = sphi 0, %s5170
                %p5169 = scmp.ge.s32.totalorder %s5168, %s5166
                %s5173 = sphi 0, %s5242
                %s5174 = sphi %s5012, %s5245
                %s5175 = sphi %s5156, %s5246
              $region81: #{tpu_custom_call.1} parent=77 // loop_header_branch
                %5172 = sbr.rel (%p5169) target = $region85
              $region82: #{tpu_custom_call.1} parent=77 // loop_body
                %v5176 = vld [vmem:[%s5174] sm:%s5165]
                %5177 = vst [vmem:[%s5175] sm:%s5165] %v5176
                %v5178 = vld [vmem:[%s5174 + $0x8] sm:%s5165]
                %5179 = vst [vmem:[%s5175 + $0x8] sm:%s5165] %v5178
                %v5180 = vld [vmem:[%s5174 + $0x10] sm:%s5165]
                %5181 = vst [vmem:[%s5175 + $0x10] sm:%s5165] %v5180
                %v5182 = vld [vmem:[%s5174 + $0x18] sm:%s5165]
                %5183 = vst [vmem:[%s5175 + $0x18] sm:%s5165] %v5182
                %v5184 = vld [vmem:[%s5174 + $0x20] sm:%s5165]
                %5185 = vst [vmem:[%s5175 + $0x20] sm:%s5165] %v5184
                %v5186 = vld [vmem:[%s5174 + $0x28] sm:%s5165]
                %5187 = vst [vmem:[%s5175 + $0x28] sm:%s5165] %v5186
                %v5188 = vld [vmem:[%s5174 + $0x30] sm:%s5165]
                %5189 = vst [vmem:[%s5175 + $0x30] sm:%s5165] %v5188
                %v5190 = vld [vmem:[%s5174 + $0x38] sm:%s5165]
                %5191 = vst [vmem:[%s5175 + $0x38] sm:%s5165] %v5190
                %v5192 = vld [vmem:[%s5174 + $0x40] sm:%s5165]
                %5193 = vst [vmem:[%s5175 + $0x40] sm:%s5165] %v5192
                %v5194 = vld [vmem:[%s5174 + $0x48] sm:%s5165]
                %5195 = vst [vmem:[%s5175 + $0x48] sm:%s5165] %v5194
                %v5196 = vld [vmem:[%s5174 + $0x50] sm:%s5165]
                %5197 = vst [vmem:[%s5175 + $0x50] sm:%s5165] %v5196
                %v5198 = vld [vmem:[%s5174 + $0x58] sm:%s5165]
                %5199 = vst [vmem:[%s5175 + $0x58] sm:%s5165] %v5198
                %v5200 = vld [vmem:[%s5174 + $0x60] sm:%s5165]
                %5201 = vst [vmem:[%s5175 + $0x60] sm:%s5165] %v5200
                %v5202 = vld [vmem:[%s5174 + $0x68] sm:%s5165]
                %5203 = vst [vmem:[%s5175 + $0x68] sm:%s5165] %v5202
                %v5204 = vld [vmem:[%s5174 + $0x70] sm:%s5165]
                %5205 = vst [vmem:[%s5175 + $0x70] sm:%s5165] %v5204
                %v5206 = vld [vmem:[%s5174 + $0x78] sm:%s5165]
                %5207 = vst [vmem:[%s5175 + $0x78] sm:%s5165] %v5206
                %v5208 = vld [vmem:[%s5174 + $0x80] sm:%s5165]
                %5209 = vst [vmem:[%s5175 + $0x80] sm:%s5165] %v5208
                %v5210 = vld [vmem:[%s5174 + $0x88] sm:%s5165]
                %5211 = vst [vmem:[%s5175 + $0x88] sm:%s5165] %v5210
                %v5212 = vld [vmem:[%s5174 + $0x90] sm:%s5165]
                %5213 = vst [vmem:[%s5175 + $0x90] sm:%s5165] %v5212
                %v5214 = vld [vmem:[%s5174 + $0x98] sm:%s5165]
                %5215 = vst [vmem:[%s5175 + $0x98] sm:%s5165] %v5214
                %v5216 = vld [vmem:[%s5174 + $0xa0] sm:%s5165]
                %5217 = vst [vmem:[%s5175 + $0xa0] sm:%s5165] %v5216
                %v5218 = vld [vmem:[%s5174 + $0xa8] sm:%s5165]
                %5219 = vst [vmem:[%s5175 + $0xa8] sm:%s5165] %v5218
                %v5220 = vld [vmem:[%s5174 + $0xb0] sm:%s5165]
                %5221 = vst [vmem:[%s5175 + $0xb0] sm:%s5165] %v5220
                %v5222 = vld [vmem:[%s5174 + $0xb8] sm:%s5165]
                %5223 = vst [vmem:[%s5175 + $0xb8] sm:%s5165] %v5222
                %v5224 = vld [vmem:[%s5174 + $0xc0] sm:%s5165]
                %5225 = vst [vmem:[%s5175 + $0xc0] sm:%s5165] %v5224
                %v5226 = vld [vmem:[%s5174 + $0xc8] sm:%s5165]
                %5227 = vst [vmem:[%s5175 + $0xc8] sm:%s5165] %v5226
                %v5228 = vld [vmem:[%s5174 + $0xd0] sm:%s5165]
                %5229 = vst [vmem:[%s5175 + $0xd0] sm:%s5165] %v5228
                %v5230 = vld [vmem:[%s5174 + $0xd8] sm:%s5165]
                %5231 = vst [vmem:[%s5175 + $0xd8] sm:%s5165] %v5230
                %v5232 = vld [vmem:[%s5174 + $0xe0] sm:%s5165]
                %5233 = vst [vmem:[%s5175 + $0xe0] sm:%s5165] %v5232
                %v5234 = vld [vmem:[%s5174 + $0xe8] sm:%s5165]
                %5235 = vst [vmem:[%s5175 + $0xe8] sm:%s5165] %v5234
                %v5236 = vld [vmem:[%s5174 + $0xf0] sm:%s5165]
                %5237 = vst [vmem:[%s5175 + $0xf0] sm:%s5165] %v5236
                %v5238 = vld [vmem:[%s5174 + $0xf8] sm:%s5165]
                %5239 = vst [vmem:[%s5175 + $0xf8] sm:%s5165] %v5238
                %s5240 = sadd.s32 1, %s5173
                %p5241 = scmp.ge.s32.totalorder %s5240, %s5166
                %s5242 = scalar_select %p5241, 0, %s5240
                %s5243 = smul.u32 %s5242, 256
                %s5244 = smul.u32 %s5242, 256
                %s5245 = scalar_lea.vmem %s5012, %s5243 [#allocation3]
                %s5246 = scalar_lea.vmem %s5156, %s5244
              $region83: #{tpu_custom_call.1} parent=77 // loop_footer
                %s5170 = sadd.s32 %s5168, 1
              $region84: #{tpu_custom_call.1} parent=77 // loop_footer_branch
                %5167 = sbr.rel target = $region80
              $region85: #{tpu_custom_call.1} parent=77 // loop_exit
                _
              %s5247 = sshrl.u32 %s5152, 5
              %s5248 = sand.u32 %s5152, 31
              %s5249 = smul.u32 %s5247, 32
              %s5250 = smul.u32 8, %s5249
              %s5251 = scalar_lea.vmem %s5012, %s5250 [#allocation3]
              %s5252 = smul.u32 8, %s5249
              %s5253 = scalar_lea.vmem %s5156, %s5252
              // While loop
              $region86: #{tpu_custom_call.1} parent=77 // loop_pre_header
                _
              $region87: #{tpu_custom_call.1} parent=77 // loop_header
                %s5255 = sphi 0, %s5257
                %p5256 = scmp.ge.s32.totalorder %s5255, %s5248
                %s5260 = sphi 0, %s5267
                %s5261 = sphi %s5251, %s5270
                %s5262 = sphi %s5253, %s5271
              $region88: #{tpu_custom_call.1} parent=77 // loop_header_branch
                %5259 = sbr.rel (%p5256) target = $region92
              $region89: #{tpu_custom_call.1} parent=77 // loop_body
                %v5263 = vld [vmem:[%s5261] sm:%s5165]
                %5264 = vst [vmem:[%s5262] sm:%s5165] %v5263
                %s5265 = sadd.s32 1, %s5260
                %p5266 = scmp.ge.s32.totalorder %s5265, %s5248
                %s5267 = scalar_select %p5266, 0, %s5265
                %s5268 = smul.u32 %s5267, 8
                %s5269 = smul.u32 %s5267, 8
                %s5270 = scalar_lea.vmem %s5251, %s5268 [#allocation3]
                %s5271 = scalar_lea.vmem %s5253, %s5269
              $region90: #{tpu_custom_call.1} parent=77 // loop_footer
                %s5257 = sadd.s32 %s5255, 1
              $region91: #{tpu_custom_call.1} parent=77 // loop_footer_branch
                %5254 = sbr.rel target = $region87
              $region92: #{tpu_custom_call.1} parent=77 // loop_exit
                _
            $region78: #{tpu_custom_call.1} parent=69 // pred_fallthru
              _
          $region70: #{tpu_custom_call.1} parent=65 // pred_fallthru
            _
          %5382 = vnop
        $region66: #{tpu_custom_call.1} parent=31 // pred_fallthru
          _
        // Predicated region
        $region115: #{tpu_custom_call.1} parent=31 // pred_check
          %p5383 = pneg %p165
        $region116: #{tpu_custom_call.1} parent=31 // pred_check_branch
          %5385 = sbr.rel (%p5383) target = $region118
        $region117: #{tpu_custom_call.1} parent=31 // pred_region
          %s5386 = smul.u32 91, %s17
          %s5387 = ssub.s32 363, %s5386
          %p5388 = scmp.lt.s32.totalorder %s5387, 91
          %s5389 = scalar_select %p5388, %s5387, 91
          %s5390 = smul.u32 8, %s5389
          %p5391 = scmp.ne.s32.totalorder 0, %s5390
          %s5392 = smul.addr %s5386, 8
          %s5393 = scalar_lea.vmem %s5, %s5392
          // Predicated region
          $region119: #{tpu_custom_call.1} parent=117 // pred_check
            %p5394 = pneg %p5391
          $region120: #{tpu_custom_call.1} parent=117 // pred_check_branch
            %5396 = sbr.rel (%p5394) target = $region122
          $region121: #{tpu_custom_call.1} parent=117 // pred_region
            // Predicated region
            $region123: #{tpu_custom_call.1} parent=121 // pred_check
              _
            $region124: #{tpu_custom_call.1} parent=121 // pred_check_branch
              %5398 = sbr.rel (0) target = $region126
            $region125: #{tpu_custom_call.1} parent=121 // pred_region
              // Predicated region
              $region145: #{tpu_custom_call.1} parent=125 // pred_check
                _
              $region146: #{tpu_custom_call.1} parent=125 // pred_check_branch
                %5510 = sbr.rel (0) target = $region148
              $region147: #{tpu_custom_call.1} parent=125 // pred_region
                %s5511 = sshrl.u32 %s5389, 5
                // While loop
                $region149: #{tpu_custom_call.1} parent=147 // loop_pre_header
                  _
                $region150: #{tpu_custom_call.1} parent=147 // loop_header
                  %s5513 = sphi 0, %s5515
                  %p5514 = scmp.ge.s32.totalorder %s5513, %s5511
                  %s5518 = sphi 0, %s5587
                  %s5519 = sphi %s5016, %s5590
                  %s5520 = sphi %s5393, %s5591
                $region151: #{tpu_custom_call.1} parent=147 // loop_header_branch
                  %5517 = sbr.rel (%p5514) target = $region155
                $region152: #{tpu_custom_call.1} parent=147 // loop_body
                  %v5521 = vld [vmem:[%s5519] sm:$0xff]
                  %5522 = vst [vmem:[%s5520] sm:$0xff] %v5521
                  %v5523 = vld [vmem:[%s5519 + $0x8] sm:$0xff]
                  %5524 = vst [vmem:[%s5520 + $0x8] sm:$0xff] %v5523
                  %v5525 = vld [vmem:[%s5519 + $0x10] sm:$0xff]
                  %5526 = vst [vmem:[%s5520 + $0x10] sm:$0xff] %v5525
                  %v5527 = vld [vmem:[%s5519 + $0x18] sm:$0xff]
                  %5528 = vst [vmem:[%s5520 + $0x18] sm:$0xff] %v5527
                  %v5529 = vld [vmem:[%s5519 + $0x20] sm:$0xff]
                  %5530 = vst [vmem:[%s5520 + $0x20] sm:$0xff] %v5529
                  %v5531 = vld [vmem:[%s5519 + $0x28] sm:$0xff]
                  %5532 = vst [vmem:[%s5520 + $0x28] sm:$0xff] %v5531
                  %v5533 = vld [vmem:[%s5519 + $0x30] sm:$0xff]
                  %5534 = vst [vmem:[%s5520 + $0x30] sm:$0xff] %v5533
                  %v5535 = vld [vmem:[%s5519 + $0x38] sm:$0xff]
                  %5536 = vst [vmem:[%s5520 + $0x38] sm:$0xff] %v5535
                  %v5537 = vld [vmem:[%s5519 + $0x40] sm:$0xff]
                  %5538 = vst [vmem:[%s5520 + $0x40] sm:$0xff] %v5537
                  %v5539 = vld [vmem:[%s5519 + $0x48] sm:$0xff]
                  %5540 = vst [vmem:[%s5520 + $0x48] sm:$0xff] %v5539
                  %v5541 = vld [vmem:[%s5519 + $0x50] sm:$0xff]
                  %5542 = vst [vmem:[%s5520 + $0x50] sm:$0xff] %v5541
                  %v5543 = vld [vmem:[%s5519 + $0x58] sm:$0xff]
                  %5544 = vst [vmem:[%s5520 + $0x58] sm:$0xff] %v5543
                  %v5545 = vld [vmem:[%s5519 + $0x60] sm:$0xff]
                  %5546 = vst [vmem:[%s5520 + $0x60] sm:$0xff] %v5545
                  %v5547 = vld [vmem:[%s5519 + $0x68] sm:$0xff]
                  %5548 = vst [vmem:[%s5520 + $0x68] sm:$0xff] %v5547
                  %v5549 = vld [vmem:[%s5519 + $0x70] sm:$0xff]
                  %5550 = vst [vmem:[%s5520 + $0x70] sm:$0xff] %v5549
                  %v5551 = vld [vmem:[%s5519 + $0x78] sm:$0xff]
                  %5552 = vst [vmem:[%s5520 + $0x78] sm:$0xff] %v5551
                  %v5553 = vld [vmem:[%s5519 + $0x80] sm:$0xff]
                  %5554 = vst [vmem:[%s5520 + $0x80] sm:$0xff] %v5553
                  %v5555 = vld [vmem:[%s5519 + $0x88] sm:$0xff]
                  %5556 = vst [vmem:[%s5520 + $0x88] sm:$0xff] %v5555
                  %v5557 = vld [vmem:[%s5519 + $0x90] sm:$0xff]
                  %5558 = vst [vmem:[%s5520 + $0x90] sm:$0xff] %v5557
                  %v5559 = vld [vmem:[%s5519 + $0x98] sm:$0xff]
                  %5560 = vst [vmem:[%s5520 + $0x98] sm:$0xff] %v5559
                  %v5561 = vld [vmem:[%s5519 + $0xa0] sm:$0xff]
                  %5562 = vst [vmem:[%s5520 + $0xa0] sm:$0xff] %v5561
                  %v5563 = vld [vmem:[%s5519 + $0xa8] sm:$0xff]
                  %5564 = vst [vmem:[%s5520 + $0xa8] sm:$0xff] %v5563
                  %v5565 = vld [vmem:[%s5519 + $0xb0] sm:$0xff]
                  %5566 = vst [vmem:[%s5520 + $0xb0] sm:$0xff] %v5565
                  %v5567 = vld [vmem:[%s5519 + $0xb8] sm:$0xff]
                  %5568 = vst [vmem:[%s5520 + $0xb8] sm:$0xff] %v5567
                  %v5569 = vld [vmem:[%s5519 + $0xc0] sm:$0xff]
                  %5570 = vst [vmem:[%s5520 + $0xc0] sm:$0xff] %v5569
                  %v5571 = vld [vmem:[%s5519 + $0xc8] sm:$0xff]
                  %5572 = vst [vmem:[%s5520 + $0xc8] sm:$0xff] %v5571
                  %v5573 = vld [vmem:[%s5519 + $0xd0] sm:$0xff]
                  %5574 = vst [vmem:[%s5520 + $0xd0] sm:$0xff] %v5573
                  %v5575 = vld [vmem:[%s5519 + $0xd8] sm:$0xff]
                  %5576 = vst [vmem:[%s5520 + $0xd8] sm:$0xff] %v5575
                  %v5577 = vld [vmem:[%s5519 + $0xe0] sm:$0xff]
                  %5578 = vst [vmem:[%s5520 + $0xe0] sm:$0xff] %v5577
                  %v5579 = vld [vmem:[%s5519 + $0xe8] sm:$0xff]
                  %5580 = vst [vmem:[%s5520 + $0xe8] sm:$0xff] %v5579
                  %v5581 = vld [vmem:[%s5519 + $0xf0] sm:$0xff]
                  %5582 = vst [vmem:[%s5520 + $0xf0] sm:$0xff] %v5581
                  %v5583 = vld [vmem:[%s5519 + $0xf8] sm:$0xff]
                  %5584 = vst [vmem:[%s5520 + $0xf8] sm:$0xff] %v5583
                  %s5585 = sadd.s32 1, %s5518
                  %p5586 = scmp.ge.s32.totalorder %s5585, %s5511
                  %s5587 = scalar_select %p5586, 0, %s5585
                  %s5588 = smul.u32 %s5587, 256
                  %s5589 = smul.u32 %s5587, 256
                  %s5590 = scalar_lea.vmem %s5016, %s5588 [#allocation4]
                  %s5591 = scalar_lea.vmem %s5393, %s5589
                $region153: #{tpu_custom_call.1} parent=147 // loop_footer
                  %s5515 = sadd.s32 %s5513, 1
                $region154: #{tpu_custom_call.1} parent=147 // loop_footer_branch
                  %5512 = sbr.rel target = $region150
                $region155: #{tpu_custom_call.1} parent=147 // loop_exit
                  _
                %s5592 = sshrl.u32 %s5389, 5
                %s5593 = sand.u32 %s5389, 31
                %s5594 = smul.u32 %s5592, 32
                %s5595 = smul.u32 8, %s5594
                %s5596 = scalar_lea.vmem %s5016, %s5595 [#allocation4]
                %s5597 = smul.u32 8, %s5594
                %s5598 = scalar_lea.vmem %s5393, %s5597
                // While loop
                $region156: #{tpu_custom_call.1} parent=147 // loop_pre_header
                  _
                $region157: #{tpu_custom_call.1} parent=147 // loop_header
                  %s5600 = sphi 0, %s5602
                  %p5601 = scmp.ge.s32.totalorder %s5600, %s5593
                  %s5605 = sphi 0, %s5612
                  %s5606 = sphi %s5596, %s5615
                  %s5607 = sphi %s5598, %s5616
                $region158: #{tpu_custom_call.1} parent=147 // loop_header_branch
                  %5604 = sbr.rel (%p5601) target = $region162
                $region159: #{tpu_custom_call.1} parent=147 // loop_body
                  %v5608 = vld [vmem:[%s5606] sm:$0xff]
                  %5609 = vst [vmem:[%s5607] sm:$0xff] %v5608
                  %s5610 = sadd.s32 1, %s5605
                  %p5611 = scmp.ge.s32.totalorder %s5610, %s5593
                  %s5612 = scalar_select %p5611, 0, %s5610
                  %s5613 = smul.u32 %s5612, 8
                  %s5614 = smul.u32 %s5612, 8
                  %s5615 = scalar_lea.vmem %s5596, %s5613 [#allocation4]
                  %s5616 = scalar_lea.vmem %s5598, %s5614
                $region160: #{tpu_custom_call.1} parent=147 // loop_footer
                  %s5602 = sadd.s32 %s5600, 1
                $region161: #{tpu_custom_call.1} parent=147 // loop_footer_branch
                  %5599 = sbr.rel target = $region157
                $region162: #{tpu_custom_call.1} parent=147 // loop_exit
                  _
              $region148: #{tpu_custom_call.1} parent=125 // pred_fallthru
                _
              // Predicated region
              $region163: #{tpu_custom_call.1} parent=125 // pred_check
                _
              $region164: #{tpu_custom_call.1} parent=125 // pred_check_branch
                %5618 = sbr.rel target = $region166
              $region165: #{tpu_custom_call.1} parent=125 // pred_region
                _
              $region166: #{tpu_custom_call.1} parent=125 // pred_fallthru
                _
            $region126: #{tpu_custom_call.1} parent=121 // pred_fallthru
              _
            // Predicated region
            $region127: #{tpu_custom_call.1} parent=121 // pred_check
              _
            $region128: #{tpu_custom_call.1} parent=121 // pred_check_branch
              %5400 = sbr.rel target = $region130
            $region129: #{tpu_custom_call.1} parent=121 // pred_region
              %s5402 = ssub.s32 256, 1
              %s5403 = sshrl.u32 %s5389, 5
              // While loop
              $region131: #{tpu_custom_call.1} parent=129 // loop_pre_header
                _
              $region132: #{tpu_custom_call.1} parent=129 // loop_header
                %s5405 = sphi 0, %s5407
                %p5406 = scmp.ge.s32.totalorder %s5405, %s5403
                %s5410 = sphi 0, %s5479
                %s5411 = sphi %s5016, %s5482
                %s5412 = sphi %s5393, %s5483
              $region133: #{tpu_custom_call.1} parent=129 // loop_header_branch
                %5409 = sbr.rel (%p5406) target = $region137
              $region134: #{tpu_custom_call.1} parent=129 // loop_body
                %v5413 = vld [vmem:[%s5411] sm:%s5402]
                %5414 = vst [vmem:[%s5412] sm:%s5402] %v5413
                %v5415 = vld [vmem:[%s5411 + $0x8] sm:%s5402]
                %5416 = vst [vmem:[%s5412 + $0x8] sm:%s5402] %v5415
                %v5417 = vld [vmem:[%s5411 + $0x10] sm:%s5402]
                %5418 = vst [vmem:[%s5412 + $0x10] sm:%s5402] %v5417
                %v5419 = vld [vmem:[%s5411 + $0x18] sm:%s5402]
                %5420 = vst [vmem:[%s5412 + $0x18] sm:%s5402] %v5419
                %v5421 = vld [vmem:[%s5411 + $0x20] sm:%s5402]
                %5422 = vst [vmem:[%s5412 + $0x20] sm:%s5402] %v5421
                %v5423 = vld [vmem:[%s5411 + $0x28] sm:%s5402]
                %5424 = vst [vmem:[%s5412 + $0x28] sm:%s5402] %v5423
                %v5425 = vld [vmem:[%s5411 + $0x30] sm:%s5402]
                %5426 = vst [vmem:[%s5412 + $0x30] sm:%s5402] %v5425
                %v5427 = vld [vmem:[%s5411 + $0x38] sm:%s5402]
                %5428 = vst [vmem:[%s5412 + $0x38] sm:%s5402] %v5427
                %v5429 = vld [vmem:[%s5411 + $0x40] sm:%s5402]
                %5430 = vst [vmem:[%s5412 + $0x40] sm:%s5402] %v5429
                %v5431 = vld [vmem:[%s5411 + $0x48] sm:%s5402]
                %5432 = vst [vmem:[%s5412 + $0x48] sm:%s5402] %v5431
                %v5433 = vld [vmem:[%s5411 + $0x50] sm:%s5402]
                %5434 = vst [vmem:[%s5412 + $0x50] sm:%s5402] %v5433
                %v5435 = vld [vmem:[%s5411 + $0x58] sm:%s5402]
                %5436 = vst [vmem:[%s5412 + $0x58] sm:%s5402] %v5435
                %v5437 = vld [vmem:[%s5411 + $0x60] sm:%s5402]
                %5438 = vst [vmem:[%s5412 + $0x60] sm:%s5402] %v5437
                %v5439 = vld [vmem:[%s5411 + $0x68] sm:%s5402]
                %5440 = vst [vmem:[%s5412 + $0x68] sm:%s5402] %v5439
                %v5441 = vld [vmem:[%s5411 + $0x70] sm:%s5402]
                %5442 = vst [vmem:[%s5412 + $0x70] sm:%s5402] %v5441
                %v5443 = vld [vmem:[%s5411 + $0x78] sm:%s5402]
                %5444 = vst [vmem:[%s5412 + $0x78] sm:%s5402] %v5443
                %v5445 = vld [vmem:[%s5411 + $0x80] sm:%s5402]
                %5446 = vst [vmem:[%s5412 + $0x80] sm:%s5402] %v5445
                %v5447 = vld [vmem:[%s5411 + $0x88] sm:%s5402]
                %5448 = vst [vmem:[%s5412 + $0x88] sm:%s5402] %v5447
                %v5449 = vld [vmem:[%s5411 + $0x90] sm:%s5402]
                %5450 = vst [vmem:[%s5412 + $0x90] sm:%s5402] %v5449
                %v5451 = vld [vmem:[%s5411 + $0x98] sm:%s5402]
                %5452 = vst [vmem:[%s5412 + $0x98] sm:%s5402] %v5451
                %v5453 = vld [vmem:[%s5411 + $0xa0] sm:%s5402]
                %5454 = vst [vmem:[%s5412 + $0xa0] sm:%s5402] %v5453
                %v5455 = vld [vmem:[%s5411 + $0xa8] sm:%s5402]
                %5456 = vst [vmem:[%s5412 + $0xa8] sm:%s5402] %v5455
                %v5457 = vld [vmem:[%s5411 + $0xb0] sm:%s5402]
                %5458 = vst [vmem:[%s5412 + $0xb0] sm:%s5402] %v5457
                %v5459 = vld [vmem:[%s5411 + $0xb8] sm:%s5402]
                %5460 = vst [vmem:[%s5412 + $0xb8] sm:%s5402] %v5459
                %v5461 = vld [vmem:[%s5411 + $0xc0] sm:%s5402]
                %5462 = vst [vmem:[%s5412 + $0xc0] sm:%s5402] %v5461
                %v5463 = vld [vmem:[%s5411 + $0xc8] sm:%s5402]
                %5464 = vst [vmem:[%s5412 + $0xc8] sm:%s5402] %v5463
                %v5465 = vld [vmem:[%s5411 + $0xd0] sm:%s5402]
                %5466 = vst [vmem:[%s5412 + $0xd0] sm:%s5402] %v5465
                %v5467 = vld [vmem:[%s5411 + $0xd8] sm:%s5402]
                %5468 = vst [vmem:[%s5412 + $0xd8] sm:%s5402] %v5467
                %v5469 = vld [vmem:[%s5411 + $0xe0] sm:%s5402]
                %5470 = vst [vmem:[%s5412 + $0xe0] sm:%s5402] %v5469
                %v5471 = vld [vmem:[%s5411 + $0xe8] sm:%s5402]
                %5472 = vst [vmem:[%s5412 + $0xe8] sm:%s5402] %v5471
                %v5473 = vld [vmem:[%s5411 + $0xf0] sm:%s5402]
                %5474 = vst [vmem:[%s5412 + $0xf0] sm:%s5402] %v5473
                %v5475 = vld [vmem:[%s5411 + $0xf8] sm:%s5402]
                %5476 = vst [vmem:[%s5412 + $0xf8] sm:%s5402] %v5475
                %s5477 = sadd.s32 1, %s5410
                %p5478 = scmp.ge.s32.totalorder %s5477, %s5403
                %s5479 = scalar_select %p5478, 0, %s5477
                %s5480 = smul.u32 %s5479, 256
                %s5481 = smul.u32 %s5479, 256
                %s5482 = scalar_lea.vmem %s5016, %s5480 [#allocation4]
                %s5483 = scalar_lea.vmem %s5393, %s5481
              $region135: #{tpu_custom_call.1} parent=129 // loop_footer
                %s5407 = sadd.s32 %s5405, 1
              $region136: #{tpu_custom_call.1} parent=129 // loop_footer_branch
                %5404 = sbr.rel target = $region132
              $region137: #{tpu_custom_call.1} parent=129 // loop_exit
                _
              %s5484 = sshrl.u32 %s5389, 5
              %s5485 = sand.u32 %s5389, 31
              %s5486 = smul.u32 %s5484, 32
              %s5487 = smul.u32 8, %s5486
              %s5488 = scalar_lea.vmem %s5016, %s5487 [#allocation4]
              %s5489 = smul.u32 8, %s5486
              %s5490 = scalar_lea.vmem %s5393, %s5489
              // While loop
              $region138: #{tpu_custom_call.1} parent=129 // loop_pre_header
                _
              $region139: #{tpu_custom_call.1} parent=129 // loop_header
                %s5492 = sphi 0, %s5494
                %p5493 = scmp.ge.s32.totalorder %s5492, %s5485
                %s5497 = sphi 0, %s5504
                %s5498 = sphi %s5488, %s5507
                %s5499 = sphi %s5490, %s5508
              $region140: #{tpu_custom_call.1} parent=129 // loop_header_branch
                %5496 = sbr.rel (%p5493) target = $region144
              $region141: #{tpu_custom_call.1} parent=129 // loop_body
                %v5500 = vld [vmem:[%s5498] sm:%s5402]
                %5501 = vst [vmem:[%s5499] sm:%s5402] %v5500
                %s5502 = sadd.s32 1, %s5497
                %p5503 = scmp.ge.s32.totalorder %s5502, %s5485
                %s5504 = scalar_select %p5503, 0, %s5502
                %s5505 = smul.u32 %s5504, 8
                %s5506 = smul.u32 %s5504, 8
                %s5507 = scalar_lea.vmem %s5488, %s5505 [#allocation4]
                %s5508 = scalar_lea.vmem %s5490, %s5506
              $region142: #{tpu_custom_call.1} parent=129 // loop_footer
                %s5494 = sadd.s32 %s5492, 1
              $region143: #{tpu_custom_call.1} parent=129 // loop_footer_branch
                %5491 = sbr.rel target = $region139
              $region144: #{tpu_custom_call.1} parent=129 // loop_exit
                _
            $region130: #{tpu_custom_call.1} parent=121 // pred_fallthru
              _
          $region122: #{tpu_custom_call.1} parent=117 // pred_fallthru
            _
          %5619 = vnop
        $region118: #{tpu_custom_call.1} parent=31 // pred_fallthru
          _
      $region32: #{tpu_custom_call.1} parent=5 // pred_fallthru
        _
      %p5620 = scmp.le.s32.totalorder 2, %s12
      // Predicated region
      $region167: #{tpu_custom_call.1} parent=5 // pred_check
        %p5621 = pneg %p5620
      $region168: #{tpu_custom_call.1} parent=5 // pred_check_branch
        %5623 = sbr.rel (%p5621) target = $region170
      $region169: #{tpu_custom_call.1} parent=5 // pred_region
        %s5624 = ssub.s32 %s12, 2
        // Predicated region
        $region171: #{tpu_custom_call.1} parent=169 // pred_check
          %p5625 = pneg %p119
        $region172: #{tpu_custom_call.1} parent=169 // pred_check_branch
          %5627 = sbr.rel (%p5625) target = $region174
        $region173: #{tpu_custom_call.1} parent=169 // pred_region
          %s5628 = sand.u32 %s104, 1
          %s5629 = sand.u32 %s104, 1
          %s5630 = smul.addr %s5629, 1456
          %s5631 = scalar_lea.vmem [#allocation2], %s5630
        $region174: #{tpu_custom_call.1} parent=169 // pred_fallthru
          _
        // Predicated region
        $region175: #{tpu_custom_call.1} parent=169 // pred_check
          %p5632 = pneg %p145
        $region176: #{tpu_custom_call.1} parent=169 // pred_check_branch
          %5634 = sbr.rel (%p5632) target = $region178
        $region177: #{tpu_custom_call.1} parent=169 // pred_region
          %s5635 = sand.u32 %s130, 1
          %s5636 = sand.u32 %s130, 1
          %s5637 = smul.addr %s5636, 728
          %s5638 = scalar_lea.vmem [#allocation3], %s5637
        $region178: #{tpu_custom_call.1} parent=169 // pred_fallthru
          _
        // Predicated region
        $region179: #{tpu_custom_call.1} parent=169 // pred_check
          %p5639 = pneg %p171
        $region180: #{tpu_custom_call.1} parent=169 // pred_check_branch
          %5641 = sbr.rel (%p5639) target = $region182
        $region181: #{tpu_custom_call.1} parent=169 // pred_region
          %s5642 = sand.u32 %s156, 1
          %s5643 = sand.u32 %s156, 1
          %s5644 = smul.addr %s5643, 728
          %s5645 = scalar_lea.vmem [#allocation4], %s5644
        $region182: #{tpu_custom_call.1} parent=169 // pred_fallthru
          _
      $region170: #{tpu_custom_call.1} parent=5 // pred_fallthru
        _
    $region6: #{tpu_custom_call.1} parent=1 // loop_footer
      %s16 = sadd.s32 1, %s12
    $region7: #{tpu_custom_call.1} parent=1 // loop_footer_branch
      %11 = sbr.rel target = $region3
    $region8: #{tpu_custom_call.1} parent=1 // loop_exit
      _

</llo_original>
